<compile_context>
chip_gen: v7x
topology: tpu7x:2x2x1
jax: 0.10.0
libtpu: 0.0.40
codegen_flags: <defaults>
</compile_context>

<pallas_src>
import jax
import jax.numpy as jnp
from jax import lax
from jax.experimental import pallas as pl
from jax.experimental.pallas import tpu as pltpu  # noqa: F401

# ----- small, deterministic hyper-parameters consistent with the torch module -----
B = 2          # batch_size
S = 8          # sequence_length
E = 16         # embed_size
D = 32         # encoding_size (per-layer model dim)
HEADS = 4
DK = 8
DV = 8
HDK = HEADS * DK           # 32
HDV = HEADS * DV           # 32
NUM_LAYERS = 2
FWD_EXP = 32               # forward_expansion default inside TransformerDecoderLayer
FF_HID = FWD_EXP * D       # 1024
EPS = 1e-5
BS = B * S                 # batch folded into the matmul M dimension


def _layernorm(z, w, b):
    mu = jnp.mean(z, axis=-1, keepdims=True)
    var = jnp.mean((z - mu) ** 2, axis=-1, keepdims=True)
    return (z - mu) * lax.rsqrt(var + EPS) * w + b


# ---------------------------- fused Pallas kernel ----------------------------

def fused_decoder_kernel(x_ref, pe_ref, mask_ref, khead_ref, diagx_ref, denx_ref,
                         enc_w_ref, enc_b_ref,
                         wq_ref, wk_ref, wv_ref, wo_ref, vecs_ref,
                         w1_ref, b1_ref, w2t_ref,
                         dec_w_ref, dec_b_ref, out_ref):
    """Single invocation (no grid); entire forward resident in VMEM."""
    # Positional-encoding add + encoding linear (embed -> encoding).
    x = x_ref[...] + pe_ref[...]                                          # (BS, E)
    enc = jnp.dot(x, enc_w_ref[...],
                  preferred_element_type=jnp.float32) + enc_b_ref[...]    # (BS, D)

    addmask = mask_ref[...]        # (BS, H*BS): 0 keep / -1e20 masked, head-tiled
    khead = khead_ref[...]         # (H*BS, HDK): head selector for stacked K
    diag_expand = diagx_ref[...]   # (HDK, HDV): per-head diag(q*k) reducer + d_v expander
    denom_expand = denx_ref[...]   # (H*BS, HDV): per-head row-sum reducer + d_v expander

    out = enc
    for l in range(NUM_LAYERS):                                           # unrolled (2 layers)
        vecs = vecs_ref[l]                                                # (6, D)
        bo, ln1w, ln1b = vecs[0:1], vecs[1:2], vecs[2:3]
        b2, ln3w, ln3b = vecs[3:4], vecs[4:5], vecs[5:6]

        q = jnp.dot(out, wq_ref[l], preferred_element_type=jnp.float32)   # (BS, HDK)
        k = jnp.dot(out, wk_ref[l], preferred_element_type=jnp.float32)   # (BS, HDK)
        v = jnp.dot(out, wv_ref[l], preferred_element_type=jnp.float32)   # (BS, HDV)

        # All-head scores in ONE MXU matmul: K is stacked head-major along sublanes with
        # non-head channels zeroed, so column block h of `scores` equals q_h @ k_h^T.
        k_stacked = jnp.concatenate([k] * HEADS, axis=0) * khead          # (H*BS, HDK)
        scores = lax.dot_general(q, k_stacked, (((1,), (1,)), ((), ())),
                                 preferred_element_type=jnp.float32) + addmask  # (BS, H*BS)

        # Softmax statistics with one per-row max shared across heads (shift-invariant).
        m = jnp.max(scores, axis=-1, keepdims=True)                       # (BS, 1)
        e = jnp.exp(scores - m)                                           # masked -> 0
        denom = jnp.dot(e, denom_expand,
                        preferred_element_type=jnp.float32)               # (BS, HDV)
        # Diagonal score s_ii = q_i.k_i per head (valid: causal mask never masks the
        # diagonal), reduced per head and broadcast to d_v lanes by one small matmul.
        diag_s = jnp.dot(q * k, diag_expand,
                         preferred_element_type=jnp.float32)              # (BS, HDV)
        scale = jnp.exp(diag_s - m) / denom                               # (BS, HDV)

        attn_out = jnp.dot(scale * v, wo_ref[l],
                           preferred_element_type=jnp.float32) + bo       # (BS, D)

        query = _layernorm(attn_out + enc, ln1w, ln1b)
        # FF weights stored bf16 (halves their HBM traffic); up-cast in VMEM, f32 math.
        w1 = w1_ref[l].astype(jnp.float32)                                # (D, FF_HID)
        h1 = jnp.maximum(
            jnp.dot(query, w1, preferred_element_type=jnp.float32) + b1_ref[l], 0.0)
        w2t = w2t_ref[l].astype(jnp.float32)                              # (D, FF_HID) lane-dense
        ff = lax.dot_general(h1, w2t, (((1,), (1,)), ((), ())),
                             preferred_element_type=jnp.float32) + b2     # (BS, D)
        out = _layernorm(query + ff, ln3w, ln3b)

    # Decoding linear (encoding -> embed); the only HBM write of the forward.
    out_ref[...] = jnp.dot(out, dec_w_ref[...],
                           preferred_element_type=jnp.float32) + dec_b_ref[...]


# ---------------------------- pallas_call wrapper ----------------------------

def transformer_decoder_forward(x, future_mask, packed):
    """Equivalent of TransformerDecoder.forward(batch_size, x, future_mask).

    The batch is folded into the matmul M dimension (B*S rows); batch separation is
    enforced by a block-diagonal additive mask, so one kernel invocation runs the whole
    forward.  NOTE: the in-kernel diagonal-softmax shortcut requires the mask to never
    cover the diagonal (true for the triu(k=1) causal future mask).
    """
    Bx, Sx, Ex = x.shape
    assert (Bx, Sx, Ex) == (B, S, E)

    # Block-diagonal additive mask: cross-batch entries masked; within-batch blocks use
    # the caller's per-batch future_mask.  Tiled H times along columns to match the
    # head-packed score layout used inside the kernel.
    eyeB = jnp.eye(Bx, dtype=bool)
    mask4 = jnp.where(eyeB[:, None, :, None], future_mask[:, :, None, :], True)   # (B,S,B,S)
    addmask = jnp.where(mask4.reshape(BS, BS), jnp.float32(-1e20), jnp.float32(0.0))
    mask_tiled = jnp.tile(addmask, (1, HEADS))                                     # (BS, H*BS)

    out_flat = pl.pallas_call(
        fused_decoder_kernel,
        out_shape=jax.ShapeDtypeStruct((BS, E), jnp.float32),
    )(x.reshape(BS, E), packed['pe'], mask_tiled,
      packed['khead'], packed['diag_expand'], packed['denom_expand'],
      packed['enc_w'], packed['enc_b'],
      packed['wq'], packed['wk'], packed['wv'], packed['wo'], packed['vecs'],
      packed['w1'], packed['b1'], packed['w2t'],
      packed['dec_w'], packed['dec_b'])
    return out_flat.reshape(Bx, Sx, Ex)


# ---------------------------- parameters, packing & reference ----------------------------

def init_params(key):
    def dense(k, shape, scale=0.05):
        return scale * jax.random.normal(k, shape, dtype=jnp.float32)

    keys = jax.random.split(key, 4 + NUM_LAYERS)

    # PositionalEncoding buffer (N=144, D=E), exact toy construction.
    N = 144
    position = jnp.arange(N, dtype=jnp.float32)[:, None]
    div_term = jnp.power(10000.0, jnp.arange(0, E, 2, dtype=jnp.float32) / E)
    pe = jnp.zeros((N, E), dtype=jnp.float32)
    pe = pe.at[:, 0::2].set(jnp.sin(position * div_term))
    pe = pe.at[:, 1::2].set(jnp.cos(position * div_term))  # E is even
    pe = pe[None]

    params = {
        'pe': pe,
        'enc_w': dense(keys[0], (E, D)),
        'enc_b': dense(keys[1], (1, D)),
        'dec_w': dense(keys[2], (D, E)),
        'dec_b': dense(keys[3], (1, E)),
        'layers': [],
    }
    for i in range(NUM_LAYERS):
        lk = jax.random.split(keys[4 + i], 9)
        params['layers'].append({
            'wq': dense(lk[0], (D, HDK)),
            'wk': dense(lk[1], (D, HDK)),
            'wv': dense(lk[2], (D, HDV)),
            'wo': dense(lk[3], (HDV, D)),
            'bo': dense(lk[4], (1, D)),
            'ln1w': jnp.ones((1, D), jnp.float32),
            'ln1b': jnp.zeros((1, D), jnp.float32),
            'w1': dense(lk[5], (D, FF_HID)),
            'b1': dense(lk[6], (1, FF_HID)),
            'w2': dense(lk[7], (FF_HID, D)),
            'b2': dense(lk[8], (1, D)),
            'ln3w': jnp.ones((1, D), jnp.float32),
            'ln3b': jnp.zeros((1, D), jnp.float32),
        })
    return params


def pack_params(params):
    """One-time packing: stack per-layer weights on a leading L axis, cast the large FF
    weights to bf16 (w2 also transposed to a lane-dense layout), pack the small (1,D)
    vectors into one (L,6,D) array, and precompute the constant head-selector matrices
    used by the vectorized attention."""
    layers = params['layers']
    wq = jnp.stack([lp['wq'] for lp in layers])                            # (L, D, HDK)
    wk = jnp.stack([lp['wk'] for lp in layers])                            # (L, D, HDK)
    wv = jnp.stack([lp['wv'] for lp in layers])                            # (L, D, HDV)
    wo = jnp.stack([lp['wo'] for lp in layers])                            # (L, HDV, D)
    w1 = jnp.stack([lp['w1'] for lp in layers]).astype(jnp.bfloat16)       # (L, D, FF_HID)
    b1 = jnp.stack([lp['b1'] for lp in layers])                            # (L, 1, FF_HID)
    w2t = jnp.stack([lp['w2'].T for lp in layers]).astype(jnp.bfloat16)    # (L, D, FF_HID)
    vecs = jnp.stack([jnp.concatenate([lp['bo'], lp['ln1w'], lp['ln1b'],
                                       lp['b2'], lp['ln3w'], lp['ln3b']], axis=0)
                      for lp in layers])                                   # (L, 6, D)

    # Constant head-selector matrices (turn per-head reductions/expansions into matmuls).
    row_head = jnp.arange(HEADS * BS) // BS          # head index of each stacked-K row
    colk_head = jnp.arange(HDK) // DK                # head index of each q/k channel
    colv_head = jnp.arange(HDV) // DV                # head index of each v channel
    khead = (row_head[:, None] == colk_head[None, :]).astype(jnp.float32)        # (H*BS, HDK)
    diag_expand = (colk_head[:, None] == colv_head[None, :]).astype(jnp.float32)  # (HDK, HDV)
    denom_expand = (row_head[:, None] == colv_head[None, :]).astype(jnp.float32)  # (H*BS, HDV)

    return {
        'pe': jnp.tile(params['pe'][0, :S, :], (B, 1)),                    # (B*S, E)
        'enc_w': params['enc_w'], 'enc_b': params['enc_b'],
        'dec_w': params['dec_w'], 'dec_b': params['dec_b'],
        'wq': wq, 'wk': wk, 'wv': wv, 'wo': wo, 'vecs': vecs,
        'w1': w1, 'b1': b1, 'w2t': w2t,
        'khead': khead, 'diag_expand': diag_expand, 'denom_expand': denom_expand,
    }


def reference_forward(x, future_mask, params):
    """Pure-JAX mirror of the torch forward (for correctness check)."""
    pe = params['pe'][:, :x.shape[1], :]
    hx = (x + pe) @ params['enc_w'] + params['enc_b'][0]
    out = hx
    for lp in params['layers']:
        q = (out @ lp['wq']).reshape(B, S, HEADS, DK).transpose(0, 2, 1, 3)
        k = (out @ lp['wk']).reshape(B, S, HEADS, DK).transpose(0, 2, 1, 3)
        v = (out @ lp['wv']).reshape(B, S, HEADS, DV).transpose(0, 2, 1, 3)
        scores = jnp.einsum('bhnk,bhmk->bhnm', q, k)
        scores = jnp.where(future_mask[:, None, :, :], -1e20, scores)
        attn = jax.nn.softmax(scores, axis=-1)
        diag = jnp.diagonal(attn, axis1=2, axis2=3)           # (B, H, S)
        multi = diag[..., None] * v                           # (B, H, S, DV)
        multi = multi.transpose(0, 2, 1, 3).reshape(B, S, HDV)
        attn_out = multi @ lp['wo'] + lp['bo'][0]
        query = _layernorm(attn_out + hx, lp['ln1w'][0], lp['ln1b'][0])
        ff = jax.nn.relu(query @ lp['w1'] + lp['b1'][0]) @ lp['w2'] + lp['b2'][0]
        out = _layernorm(query + ff, lp['ln3w'][0], lp['ln3b'][0])
    return out @ params['dec_w'] + params['dec_b'][0]


if __name__ == "__main__":
    key = jax.random.PRNGKey(0)
    pkey, xkey = jax.random.split(key)
    params = init_params(pkey)
    packed = pack_params(params)

    x = jax.random.normal(xkey, (B, S, E), dtype=jnp.float32)
    # future (causal) mask: True == masked
    future_mask = jnp.broadcast_to(
        jnp.triu(jnp.ones((S, S), dtype=bool), k=1)[None], (B, S, S))
    # Guard for the diagonal-softmax shortcut: the mask must never cover the diagonal.
    assert not bool(jnp.any(jnp.diagonal(future_mask, axis1=1, axis2=2)))

    out = transformer_decoder_forward(x, future_mask, packed)
    out = jax.block_until_ready(out)

    ref = reference_forward(x, future_mask, params)
    assert out.shape == (B, S, E)
    assert bool(jnp.all(jnp.isfinite(out)))
    max_diff = float(jnp.max(jnp.abs(out - ref)))
    assert bool(jnp.allclose(out, ref, atol=1e-2, rtol=1e-2)), f"max abs diff {max_diff}"

    print("KERNEL_OK")
</pallas_src>

<mosaic_0001>
module attributes {stable_mosaic.version = 11 : i64} {
  func.func @fused_decoder_kernel(%arg0: memref<16x16xf32, #tpu.memory_space<vmem>>, %arg1: memref<16x16xf32, #tpu.memory_space<vmem>>, %arg2: memref<16x64xf32, #tpu.memory_space<vmem>>, %arg3: memref<64x32xf32, #tpu.memory_space<vmem>>, %arg4: memref<32x32xf32, #tpu.memory_space<vmem>>, %arg5: memref<64x32xf32, #tpu.memory_space<vmem>>, %arg6: memref<16x32xf32, #tpu.memory_space<vmem>>, %arg7: memref<1x32xf32, #tpu.memory_space<vmem>>, %arg8: memref<2x32x32xf32, #tpu.memory_space<vmem>>, %arg9: memref<2x32x32xf32, #tpu.memory_space<vmem>>, %arg10: memref<2x32x32xf32, #tpu.memory_space<vmem>>, %arg11: memref<2x32x32xf32, #tpu.memory_space<vmem>>, %arg12: memref<2x6x32xf32, #tpu.memory_space<vmem>>, %arg13: memref<2x32x1024xbf16, #tpu.memory_space<vmem>>, %arg14: memref<2x1x1024xf32, #tpu.memory_space<vmem>>, %arg15: memref<2x32x1024xbf16, #tpu.memory_space<vmem>>, %arg16: memref<32x16xf32, #tpu.memory_space<vmem>>, %arg17: memref<1x16xf32, #tpu.memory_space<vmem>>, %arg18: memref<16x16xf32, #tpu.memory_space<vmem>>) attributes {dimension_semantics = [], scalar_prefetch = 0 : i64, scratch_operands = 0 : i64, tpu.core_type = #tpu.core_type<tc>} {
    %c0 = arith.constant 0 : index
    %c0_0 = arith.constant 0 : index
    %0 = vector.load %arg0[%c0, %c0_0] : memref<16x16xf32, #tpu.memory_space<vmem>>, vector<16x16xf32>
    %c0_1 = arith.constant 0 : index
    %c0_2 = arith.constant 0 : index
    %1 = vector.load %arg1[%c0_1, %c0_2] : memref<16x16xf32, #tpu.memory_space<vmem>>, vector<16x16xf32>
    %2 = arith.addf %0, %1 : vector<16x16xf32>
    %c0_3 = arith.constant 0 : index
    %c0_4 = arith.constant 0 : index
    %3 = vector.load %arg6[%c0_3, %c0_4] : memref<16x32xf32, #tpu.memory_space<vmem>>, vector<16x32xf32>
    %cst = arith.constant dense<0.000000e+00> : vector<16x32xf32>
    %4 = tpu.matmul %2, %3, %cst {dimension_numbers = #tpu.dot_dimension_numbers<[1], [0], [0], [1], [0, 0, 1, 1], [], []>} : vector<16x16xf32>, vector<16x32xf32>, vector<16x32xf32> -> vector<16x32xf32>
    %c0_5 = arith.constant 0 : index
    %c0_6 = arith.constant 0 : index
    %5 = vector.load %arg7[%c0_5, %c0_6] : memref<1x32xf32, #tpu.memory_space<vmem>>, vector<1x32xf32>
    %6 = vector.broadcast %5 : vector<1x32xf32> to vector<16x32xf32>
    %7 = arith.addf %4, %6 : vector<16x32xf32>
    %c0_7 = arith.constant 0 : index
    %c0_8 = arith.constant 0 : index
    %8 = vector.load %arg2[%c0_7, %c0_8] : memref<16x64xf32, #tpu.memory_space<vmem>>, vector<16x64xf32>
    %c0_9 = arith.constant 0 : index
    %c0_10 = arith.constant 0 : index
    %9 = vector.load %arg3[%c0_9, %c0_10] : memref<64x32xf32, #tpu.memory_space<vmem>>, vector<64x32xf32>
    %c0_11 = arith.constant 0 : index
    %c0_12 = arith.constant 0 : index
    %10 = vector.load %arg4[%c0_11, %c0_12] : memref<32x32xf32, #tpu.memory_space<vmem>>, vector<32x32xf32>
    %c0_13 = arith.constant 0 : index
    %c0_14 = arith.constant 0 : index
    %11 = vector.load %arg5[%c0_13, %c0_14] : memref<64x32xf32, #tpu.memory_space<vmem>>, vector<64x32xf32>
    %c0_15 = arith.constant 0 : index
    %c0_16 = arith.constant 0 : index
    %c0_17 = arith.constant 0 : index
    %12 = vector.load %arg12[%c0_15, %c0_16, %c0_17] : memref<2x6x32xf32, #tpu.memory_space<vmem>>, vector<1x6x32xf32>
    %13 = vector.shape_cast %12 : vector<1x6x32xf32> to vector<6x32xf32>
    %14 = vector.extract_strided_slice %13 {offsets = [0, 0], sizes = [1, 32], strides = [1, 1]} : vector<6x32xf32> to vector<1x32xf32>
    %15 = vector.extract_strided_slice %13 {offsets = [1, 0], sizes = [1, 32], strides = [1, 1]} : vector<6x32xf32> to vector<1x32xf32>
    %16 = vector.extract_strided_slice %13 {offsets = [2, 0], sizes = [1, 32], strides = [1, 1]} : vector<6x32xf32> to vector<1x32xf32>
    %17 = vector.extract_strided_slice %13 {offsets = [3, 0], sizes = [1, 32], strides = [1, 1]} : vector<6x32xf32> to vector<1x32xf32>
    %18 = vector.extract_strided_slice %13 {offsets = [4, 0], sizes = [1, 32], strides = [1, 1]} : vector<6x32xf32> to vector<1x32xf32>
    %19 = vector.extract_strided_slice %13 {offsets = [5, 0], sizes = [1, 32], strides = [1, 1]} : vector<6x32xf32> to vector<1x32xf32>
    %c0_18 = arith.constant 0 : index
    %c0_19 = arith.constant 0 : index
    %c0_20 = arith.constant 0 : index
    %20 = vector.load %arg8[%c0_18, %c0_19, %c0_20] : memref<2x32x32xf32, #tpu.memory_space<vmem>>, vector<1x32x32xf32>
    %21 = vector.shape_cast %20 : vector<1x32x32xf32> to vector<32x32xf32>
    %cst_21 = arith.constant dense<0.000000e+00> : vector<16x32xf32>
    %22 = tpu.matmul %7, %21, %cst_21 {dimension_numbers = #tpu.dot_dimension_numbers<[1], [0], [0], [1], [0, 0, 1, 1], [], []>} : vector<16x32xf32>, vector<32x32xf32>, vector<16x32xf32> -> vector<16x32xf32>
    %c0_22 = arith.constant 0 : index
    %c0_23 = arith.constant 0 : index
    %c0_24 = arith.constant 0 : index
    %23 = vector.load %arg9[%c0_22, %c0_23, %c0_24] : memref<2x32x32xf32, #tpu.memory_space<vmem>>, vector<1x32x32xf32>
    %24 = vector.shape_cast %23 : vector<1x32x32xf32> to vector<32x32xf32>
    %cst_25 = arith.constant dense<0.000000e+00> : vector<16x32xf32>
    %25 = tpu.matmul %7, %24, %cst_25 {dimension_numbers = #tpu.dot_dimension_numbers<[1], [0], [0], [1], [0, 0, 1, 1], [], []>} : vector<16x32xf32>, vector<32x32xf32>, vector<16x32xf32> -> vector<16x32xf32>
    %c0_26 = arith.constant 0 : index
    %c0_27 = arith.constant 0 : index
    %c0_28 = arith.constant 0 : index
    %26 = vector.load %arg10[%c0_26, %c0_27, %c0_28] : memref<2x32x32xf32, #tpu.memory_space<vmem>>, vector<1x32x32xf32>
    %27 = vector.shape_cast %26 : vector<1x32x32xf32> to vector<32x32xf32>
    %cst_29 = arith.constant dense<0.000000e+00> : vector<16x32xf32>
    %28 = tpu.matmul %7, %27, %cst_29 {dimension_numbers = #tpu.dot_dimension_numbers<[1], [0], [0], [1], [0, 0, 1, 1], [], []>} : vector<16x32xf32>, vector<32x32xf32>, vector<16x32xf32> -> vector<16x32xf32>
    %29 = tpu.concatenate %25, %25, %25, %25 in 0 : vector<16x32xf32>, vector<16x32xf32>, vector<16x32xf32>, vector<16x32xf32> -> vector<64x32xf32>
    %30 = arith.mulf %29, %9 : vector<64x32xf32>
    %cst_30 = arith.constant dense<0.000000e+00> : vector<16x64xf32>
    %31 = tpu.matmul %22, %30, %cst_30 {dimension_numbers = #tpu.dot_dimension_numbers<[1], [1], [0], [0], [0, 0, 1, 0], [], []>} : vector<16x32xf32>, vector<64x32xf32>, vector<16x64xf32> -> vector<16x64xf32>
    %32 = arith.addf %31, %8 : vector<16x64xf32>
    %cst_31 = arith.constant dense<0xFF800000> : vector<16xf32>
    %33 = vector.multi_reduction <maximumf>, %32, %cst_31 [1] : vector<16x64xf32> to vector<16xf32>
    %34 = vector.shape_cast %33 : vector<16xf32> to vector<16x1xf32>
    %35 = vector.broadcast %34 : vector<16x1xf32> to vector<16x64xf32>
    %36 = arith.subf %32, %35 : vector<16x64xf32>
    %37 = math.exp %36 : vector<16x64xf32>
    %cst_32 = arith.constant dense<0.000000e+00> : vector<16x32xf32>
    %38 = tpu.matmul %37, %11, %cst_32 {dimension_numbers = #tpu.dot_dimension_numbers<[1], [0], [0], [1], [0, 0, 1, 1], [], []>} : vector<16x64xf32>, vector<64x32xf32>, vector<16x32xf32> -> vector<16x32xf32>
    %39 = arith.mulf %22, %25 : vector<16x32xf32>
    %cst_33 = arith.constant dense<0.000000e+00> : vector<16x32xf32>
    %40 = tpu.matmul %39, %10, %cst_33 {dimension_numbers = #tpu.dot_dimension_numbers<[1], [0], [0], [1], [0, 0, 1, 1], [], []>} : vector<16x32xf32>, vector<32x32xf32>, vector<16x32xf32> -> vector<16x32xf32>
    %41 = vector.broadcast %34 : vector<16x1xf32> to vector<16x32xf32>
    %42 = arith.subf %40, %41 : vector<16x32xf32>
    %43 = math.exp %42 : vector<16x32xf32>
    %44 = arith.divf %43, %38 : vector<16x32xf32>
    %45 = arith.mulf %44, %28 : vector<16x32xf32>
    %c0_34 = arith.constant 0 : index
    %c0_35 = arith.constant 0 : index
    %c0_36 = arith.constant 0 : index
    %46 = vector.load %arg11[%c0_34, %c0_35, %c0_36] : memref<2x32x32xf32, #tpu.memory_space<vmem>>, vector<1x32x32xf32>
    %47 = vector.shape_cast %46 : vector<1x32x32xf32> to vector<32x32xf32>
    %cst_37 = arith.constant dense<0.000000e+00> : vector<16x32xf32>
    %48 = tpu.matmul %45, %47, %cst_37 {dimension_numbers = #tpu.dot_dimension_numbers<[1], [0], [0], [1], [0, 0, 1, 1], [], []>} : vector<16x32xf32>, vector<32x32xf32>, vector<16x32xf32> -> vector<16x32xf32>
    %49 = vector.broadcast %14 : vector<1x32xf32> to vector<16x32xf32>
    %50 = arith.addf %48, %49 : vector<16x32xf32>
    %51 = arith.addf %50, %7 : vector<16x32xf32>
    %cst_38 = arith.constant dense<0.000000e+00> : vector<16xf32>
    %52 = vector.multi_reduction <add>, %51, %cst_38 [1] : vector<16x32xf32> to vector<16xf32>
    %53 = vector.shape_cast %52 : vector<16xf32> to vector<16x1xf32>
    %cst_39 = arith.constant 3.200000e+01 : f32
    %54 = vector.broadcast %cst_39 : f32 to vector<16x1xf32>
    %55 = arith.divf %53, %54 : vector<16x1xf32>
    %56 = vector.broadcast %55 : vector<16x1xf32> to vector<16x32xf32>
    %57 = arith.subf %51, %56 : vector<16x32xf32>
    %58 = arith.mulf %57, %57 : vector<16x32xf32>
    %cst_40 = arith.constant dense<0.000000e+00> : vector<16xf32>
    %59 = vector.multi_reduction <add>, %58, %cst_40 [1] : vector<16x32xf32> to vector<16xf32>
    %60 = vector.shape_cast %59 : vector<16xf32> to vector<16x1xf32>
    %cst_41 = arith.constant 3.200000e+01 : f32
    %61 = vector.broadcast %cst_41 : f32 to vector<16x1xf32>
    %62 = arith.divf %60, %61 : vector<16x1xf32>
    %63 = vector.broadcast %55 : vector<16x1xf32> to vector<16x32xf32>
    %64 = arith.subf %51, %63 : vector<16x32xf32>
    %cst_42 = arith.constant 9.99999974E-6 : f32
    %65 = vector.broadcast %cst_42 : f32 to vector<16x1xf32>
    %66 = arith.addf %62, %65 : vector<16x1xf32>
    %67 = math.rsqrt %66 : vector<16x1xf32>
    %68 = vector.broadcast %67 : vector<16x1xf32> to vector<16x32xf32>
    %69 = arith.mulf %64, %68 : vector<16x32xf32>
    %70 = vector.broadcast %15 : vector<1x32xf32> to vector<16x32xf32>
    %71 = arith.mulf %69, %70 : vector<16x32xf32>
    %72 = vector.broadcast %16 : vector<1x32xf32> to vector<16x32xf32>
    %73 = arith.addf %71, %72 : vector<16x32xf32>
    %c0_43 = arith.constant 0 : index
    %c0_44 = arith.constant 0 : index
    %c0_45 = arith.constant 0 : index
    %74 = vector.load %arg13[%c0_43, %c0_44, %c0_45] : memref<2x32x1024xbf16, #tpu.memory_space<vmem>>, vector<1x32x1024xbf16>
    %75 = vector.shape_cast %74 : vector<1x32x1024xbf16> to vector<32x1024xbf16>
    %76 = arith.extf %75 : vector<32x1024xbf16> to vector<32x1024xf32>
    %cst_46 = arith.constant dense<0.000000e+00> : vector<16x1024xf32>
    %77 = tpu.matmul %73, %76, %cst_46 {dimension_numbers = #tpu.dot_dimension_numbers<[1], [0], [0], [1], [0, 0, 1, 1], [], []>} : vector<16x32xf32>, vector<32x1024xf32>, vector<16x1024xf32> -> vector<16x1024xf32>
    %c0_47 = arith.constant 0 : index
    %c0_48 = arith.constant 0 : index
    %c0_49 = arith.constant 0 : index
    %78 = vector.load %arg14[%c0_47, %c0_48, %c0_49] : memref<2x1x1024xf32, #tpu.memory_space<vmem>>, vector<1x1x1024xf32>
    %79 = vector.shape_cast %78 : vector<1x1x1024xf32> to vector<1x1024xf32>
    %80 = vector.broadcast %79 : vector<1x1024xf32> to vector<16x1024xf32>
    %81 = arith.addf %77, %80 : vector<16x1024xf32>
    %cst_50 = arith.constant 0.000000e+00 : f32
    %82 = vector.broadcast %cst_50 : f32 to vector<16x1024xf32>
    %83 = arith.maximumf %81, %82 : vector<16x1024xf32>
    %c0_51 = arith.constant 0 : index
    %c0_52 = arith.constant 0 : index
    %c0_53 = arith.constant 0 : index
    %84 = vector.load %arg15[%c0_51, %c0_52, %c0_53] : memref<2x32x1024xbf16, #tpu.memory_space<vmem>>, vector<1x32x1024xbf16>
    %85 = vector.shape_cast %84 : vector<1x32x1024xbf16> to vector<32x1024xbf16>
    %86 = arith.extf %85 : vector<32x1024xbf16> to vector<32x1024xf32>
    %cst_54 = arith.constant dense<0.000000e+00> : vector<16x32xf32>
    %87 = tpu.matmul %83, %86, %cst_54 {dimension_numbers = #tpu.dot_dimension_numbers<[1], [1], [0], [0], [0, 0, 1, 0], [], []>} : vector<16x1024xf32>, vector<32x1024xf32>, vector<16x32xf32> -> vector<16x32xf32>
    %88 = vector.broadcast %17 : vector<1x32xf32> to vector<16x32xf32>
    %89 = arith.addf %87, %88 : vector<16x32xf32>
    %90 = arith.addf %73, %89 : vector<16x32xf32>
    %cst_55 = arith.constant dense<0.000000e+00> : vector<16xf32>
    %91 = vector.multi_reduction <add>, %90, %cst_55 [1] : vector<16x32xf32> to vector<16xf32>
    %92 = vector.shape_cast %91 : vector<16xf32> to vector<16x1xf32>
    %cst_56 = arith.constant 3.200000e+01 : f32
    %93 = vector.broadcast %cst_56 : f32 to vector<16x1xf32>
    %94 = arith.divf %92, %93 : vector<16x1xf32>
    %95 = vector.broadcast %94 : vector<16x1xf32> to vector<16x32xf32>
    %96 = arith.subf %90, %95 : vector<16x32xf32>
    %97 = arith.mulf %96, %96 : vector<16x32xf32>
    %cst_57 = arith.constant dense<0.000000e+00> : vector<16xf32>
    %98 = vector.multi_reduction <add>, %97, %cst_57 [1] : vector<16x32xf32> to vector<16xf32>
    %99 = vector.shape_cast %98 : vector<16xf32> to vector<16x1xf32>
    %cst_58 = arith.constant 3.200000e+01 : f32
    %100 = vector.broadcast %cst_58 : f32 to vector<16x1xf32>
    %101 = arith.divf %99, %100 : vector<16x1xf32>
    %102 = vector.broadcast %94 : vector<16x1xf32> to vector<16x32xf32>
    %103 = arith.subf %90, %102 : vector<16x32xf32>
    %cst_59 = arith.constant 9.99999974E-6 : f32
    %104 = vector.broadcast %cst_59 : f32 to vector<16x1xf32>
    %105 = arith.addf %101, %104 : vector<16x1xf32>
    %106 = math.rsqrt %105 : vector<16x1xf32>
    %107 = vector.broadcast %106 : vector<16x1xf32> to vector<16x32xf32>
    %108 = arith.mulf %103, %107 : vector<16x32xf32>
    %109 = vector.broadcast %18 : vector<1x32xf32> to vector<16x32xf32>
    %110 = arith.mulf %108, %109 : vector<16x32xf32>
    %111 = vector.broadcast %19 : vector<1x32xf32> to vector<16x32xf32>
    %112 = arith.addf %110, %111 : vector<16x32xf32>
    %c1 = arith.constant 1 : index
    %c0_60 = arith.constant 0 : index
    %c0_61 = arith.constant 0 : index
    %113 = vector.load %arg12[%c1, %c0_60, %c0_61] : memref<2x6x32xf32, #tpu.memory_space<vmem>>, vector<1x6x32xf32>
    %114 = vector.shape_cast %113 : vector<1x6x32xf32> to vector<6x32xf32>
    %115 = vector.extract_strided_slice %114 {offsets = [0, 0], sizes = [1, 32], strides = [1, 1]} : vector<6x32xf32> to vector<1x32xf32>
    %116 = vector.extract_strided_slice %114 {offsets = [1, 0], sizes = [1, 32], strides = [1, 1]} : vector<6x32xf32> to vector<1x32xf32>
    %117 = vector.extract_strided_slice %114 {offsets = [2, 0], sizes = [1, 32], strides = [1, 1]} : vector<6x32xf32> to vector<1x32xf32>
    %118 = vector.extract_strided_slice %114 {offsets = [3, 0], sizes = [1, 32], strides = [1, 1]} : vector<6x32xf32> to vector<1x32xf32>
    %119 = vector.extract_strided_slice %114 {offsets = [4, 0], sizes = [1, 32], strides = [1, 1]} : vector<6x32xf32> to vector<1x32xf32>
    %120 = vector.extract_strided_slice %114 {offsets = [5, 0], sizes = [1, 32], strides = [1, 1]} : vector<6x32xf32> to vector<1x32xf32>
    %c1_62 = arith.constant 1 : index
    %c0_63 = arith.constant 0 : index
    %c0_64 = arith.constant 0 : index
    %121 = vector.load %arg8[%c1_62, %c0_63, %c0_64] : memref<2x32x32xf32, #tpu.memory_space<vmem>>, vector<1x32x32xf32>
    %122 = vector.shape_cast %121 : vector<1x32x32xf32> to vector<32x32xf32>
    %cst_65 = arith.constant dense<0.000000e+00> : vector<16x32xf32>
    %123 = tpu.matmul %112, %122, %cst_65 {dimension_numbers = #tpu.dot_dimension_numbers<[1], [0], [0], [1], [0, 0, 1, 1], [], []>} : vector<16x32xf32>, vector<32x32xf32>, vector<16x32xf32> -> vector<16x32xf32>
    %c1_66 = arith.constant 1 : index
    %c0_67 = arith.constant 0 : index
    %c0_68 = arith.constant 0 : index
    %124 = vector.load %arg9[%c1_66, %c0_67, %c0_68] : memref<2x32x32xf32, #tpu.memory_space<vmem>>, vector<1x32x32xf32>
    %125 = vector.shape_cast %124 : vector<1x32x32xf32> to vector<32x32xf32>
    %cst_69 = arith.constant dense<0.000000e+00> : vector<16x32xf32>
    %126 = tpu.matmul %112, %125, %cst_69 {dimension_numbers = #tpu.dot_dimension_numbers<[1], [0], [0], [1], [0, 0, 1, 1], [], []>} : vector<16x32xf32>, vector<32x32xf32>, vector<16x32xf32> -> vector<16x32xf32>
    %c1_70 = arith.constant 1 : index
    %c0_71 = arith.constant 0 : index
    %c0_72 = arith.constant 0 : index
    %127 = vector.load %arg10[%c1_70, %c0_71, %c0_72] : memref<2x32x32xf32, #tpu.memory_space<vmem>>, vector<1x32x32xf32>
    %128 = vector.shape_cast %127 : vector<1x32x32xf32> to vector<32x32xf32>
    %cst_73 = arith.constant dense<0.000000e+00> : vector<16x32xf32>
    %129 = tpu.matmul %112, %128, %cst_73 {dimension_numbers = #tpu.dot_dimension_numbers<[1], [0], [0], [1], [0, 0, 1, 1], [], []>} : vector<16x32xf32>, vector<32x32xf32>, vector<16x32xf32> -> vector<16x32xf32>
    %130 = tpu.concatenate %126, %126, %126, %126 in 0 : vector<16x32xf32>, vector<16x32xf32>, vector<16x32xf32>, vector<16x32xf32> -> vector<64x32xf32>
    %131 = arith.mulf %130, %9 : vector<64x32xf32>
    %cst_74 = arith.constant dense<0.000000e+00> : vector<16x64xf32>
    %132 = tpu.matmul %123, %131, %cst_74 {dimension_numbers = #tpu.dot_dimension_numbers<[1], [1], [0], [0], [0, 0, 1, 0], [], []>} : vector<16x32xf32>, vector<64x32xf32>, vector<16x64xf32> -> vector<16x64xf32>
    %133 = arith.addf %132, %8 : vector<16x64xf32>
    %cst_75 = arith.constant dense<0xFF800000> : vector<16xf32>
    %134 = vector.multi_reduction <maximumf>, %133, %cst_75 [1] : vector<16x64xf32> to vector<16xf32>
    %135 = vector.shape_cast %134 : vector<16xf32> to vector<16x1xf32>
    %136 = vector.broadcast %135 : vector<16x1xf32> to vector<16x64xf32>
    %137 = arith.subf %133, %136 : vector<16x64xf32>
    %138 = math.exp %137 : vector<16x64xf32>
    %cst_76 = arith.constant dense<0.000000e+00> : vector<16x32xf32>
    %139 = tpu.matmul %138, %11, %cst_76 {dimension_numbers = #tpu.dot_dimension_numbers<[1], [0], [0], [1], [0, 0, 1, 1], [], []>} : vector<16x64xf32>, vector<64x32xf32>, vector<16x32xf32> -> vector<16x32xf32>
    %140 = arith.mulf %123, %126 : vector<16x32xf32>
    %cst_77 = arith.constant dense<0.000000e+00> : vector<16x32xf32>
    %141 = tpu.matmul %140, %10, %cst_77 {dimension_numbers = #tpu.dot_dimension_numbers<[1], [0], [0], [1], [0, 0, 1, 1], [], []>} : vector<16x32xf32>, vector<32x32xf32>, vector<16x32xf32> -> vector<16x32xf32>
    %142 = vector.broadcast %135 : vector<16x1xf32> to vector<16x32xf32>
    %143 = arith.subf %141, %142 : vector<16x32xf32>
    %144 = math.exp %143 : vector<16x32xf32>
    %145 = arith.divf %144, %139 : vector<16x32xf32>
    %146 = arith.mulf %145, %129 : vector<16x32xf32>
    %c1_78 = arith.constant 1 : index
    %c0_79 = arith.constant 0 : index
    %c0_80 = arith.constant 0 : index
    %147 = vector.load %arg11[%c1_78, %c0_79, %c0_80] : memref<2x32x32xf32, #tpu.memory_space<vmem>>, vector<1x32x32xf32>
    %148 = vector.shape_cast %147 : vector<1x32x32xf32> to vector<32x32xf32>
    %cst_81 = arith.constant dense<0.000000e+00> : vector<16x32xf32>
    %149 = tpu.matmul %146, %148, %cst_81 {dimension_numbers = #tpu.dot_dimension_numbers<[1], [0], [0], [1], [0, 0, 1, 1], [], []>} : vector<16x32xf32>, vector<32x32xf32>, vector<16x32xf32> -> vector<16x32xf32>
    %150 = vector.broadcast %115 : vector<1x32xf32> to vector<16x32xf32>
    %151 = arith.addf %149, %150 : vector<16x32xf32>
    %152 = arith.addf %151, %7 : vector<16x32xf32>
    %cst_82 = arith.constant dense<0.000000e+00> : vector<16xf32>
    %153 = vector.multi_reduction <add>, %152, %cst_82 [1] : vector<16x32xf32> to vector<16xf32>
    %154 = vector.shape_cast %153 : vector<16xf32> to vector<16x1xf32>
    %cst_83 = arith.constant 3.200000e+01 : f32
    %155 = vector.broadcast %cst_83 : f32 to vector<16x1xf32>
    %156 = arith.divf %154, %155 : vector<16x1xf32>
    %157 = vector.broadcast %156 : vector<16x1xf32> to vector<16x32xf32>
    %158 = arith.subf %152, %157 : vector<16x32xf32>
    %159 = arith.mulf %158, %158 : vector<16x32xf32>
    %cst_84 = arith.constant dense<0.000000e+00> : vector<16xf32>
    %160 = vector.multi_reduction <add>, %159, %cst_84 [1] : vector<16x32xf32> to vector<16xf32>
    %161 = vector.shape_cast %160 : vector<16xf32> to vector<16x1xf32>
    %cst_85 = arith.constant 3.200000e+01 : f32
    %162 = vector.broadcast %cst_85 : f32 to vector<16x1xf32>
    %163 = arith.divf %161, %162 : vector<16x1xf32>
    %164 = vector.broadcast %156 : vector<16x1xf32> to vector<16x32xf32>
    %165 = arith.subf %152, %164 : vector<16x32xf32>
    %cst_86 = arith.constant 9.99999974E-6 : f32
    %166 = vector.broadcast %cst_86 : f32 to vector<16x1xf32>
    %167 = arith.addf %163, %166 : vector<16x1xf32>
    %168 = math.rsqrt %167 : vector<16x1xf32>
    %169 = vector.broadcast %168 : vector<16x1xf32> to vector<16x32xf32>
    %170 = arith.mulf %165, %169 : vector<16x32xf32>
    %171 = vector.broadcast %116 : vector<1x32xf32> to vector<16x32xf32>
    %172 = arith.mulf %170, %171 : vector<16x32xf32>
    %173 = vector.broadcast %117 : vector<1x32xf32> to vector<16x32xf32>
    %174 = arith.addf %172, %173 : vector<16x32xf32>
    %c1_87 = arith.constant 1 : index
    %c0_88 = arith.constant 0 : index
    %c0_89 = arith.constant 0 : index
    %175 = vector.load %arg13[%c1_87, %c0_88, %c0_89] : memref<2x32x1024xbf16, #tpu.memory_space<vmem>>, vector<1x32x1024xbf16>
    %176 = vector.shape_cast %175 : vector<1x32x1024xbf16> to vector<32x1024xbf16>
    %177 = arith.extf %176 : vector<32x1024xbf16> to vector<32x1024xf32>
    %cst_90 = arith.constant dense<0.000000e+00> : vector<16x1024xf32>
    %178 = tpu.matmul %174, %177, %cst_90 {dimension_numbers = #tpu.dot_dimension_numbers<[1], [0], [0], [1], [0, 0, 1, 1], [], []>} : vector<16x32xf32>, vector<32x1024xf32>, vector<16x1024xf32> -> vector<16x1024xf32>
    %c1_91 = arith.constant 1 : index
    %c0_92 = arith.constant 0 : index
    %c0_93 = arith.constant 0 : index
    %179 = vector.load %arg14[%c1_91, %c0_92, %c0_93] : memref<2x1x1024xf32, #tpu.memory_space<vmem>>, vector<1x1x1024xf32>
    %180 = vector.shape_cast %179 : vector<1x1x1024xf32> to vector<1x1024xf32>
    %181 = vector.broadcast %180 : vector<1x1024xf32> to vector<16x1024xf32>
    %182 = arith.addf %178, %181 : vector<16x1024xf32>
    %cst_94 = arith.constant 0.000000e+00 : f32
    %183 = vector.broadcast %cst_94 : f32 to vector<16x1024xf32>
    %184 = arith.maximumf %182, %183 : vector<16x1024xf32>
    %c1_95 = arith.constant 1 : index
    %c0_96 = arith.constant 0 : index
    %c0_97 = arith.constant 0 : index
    %185 = vector.load %arg15[%c1_95, %c0_96, %c0_97] : memref<2x32x1024xbf16, #tpu.memory_space<vmem>>, vector<1x32x1024xbf16>
    %186 = vector.shape_cast %185 : vector<1x32x1024xbf16> to vector<32x1024xbf16>
    %187 = arith.extf %186 : vector<32x1024xbf16> to vector<32x1024xf32>
    %cst_98 = arith.constant dense<0.000000e+00> : vector<16x32xf32>
    %188 = tpu.matmul %184, %187, %cst_98 {dimension_numbers = #tpu.dot_dimension_numbers<[1], [1], [0], [0], [0, 0, 1, 0], [], []>} : vector<16x1024xf32>, vector<32x1024xf32>, vector<16x32xf32> -> vector<16x32xf32>
    %189 = vector.broadcast %118 : vector<1x32xf32> to vector<16x32xf32>
    %190 = arith.addf %188, %189 : vector<16x32xf32>
    %191 = arith.addf %174, %190 : vector<16x32xf32>
    %cst_99 = arith.constant dense<0.000000e+00> : vector<16xf32>
    %192 = vector.multi_reduction <add>, %191, %cst_99 [1] : vector<16x32xf32> to vector<16xf32>
    %193 = vector.shape_cast %192 : vector<16xf32> to vector<16x1xf32>
    %cst_100 = arith.constant 3.200000e+01 : f32
    %194 = vector.broadcast %cst_100 : f32 to vector<16x1xf32>
    %195 = arith.divf %193, %194 : vector<16x1xf32>
    %196 = vector.broadcast %195 : vector<16x1xf32> to vector<16x32xf32>
    %197 = arith.subf %191, %196 : vector<16x32xf32>
    %198 = arith.mulf %197, %197 : vector<16x32xf32>
    %cst_101 = arith.constant dense<0.000000e+00> : vector<16xf32>
    %199 = vector.multi_reduction <add>, %198, %cst_101 [1] : vector<16x32xf32> to vector<16xf32>
    %200 = vector.shape_cast %199 : vector<16xf32> to vector<16x1xf32>
    %cst_102 = arith.constant 3.200000e+01 : f32
    %201 = vector.broadcast %cst_102 : f32 to vector<16x1xf32>
    %202 = arith.divf %200, %201 : vector<16x1xf32>
    %203 = vector.broadcast %195 : vector<16x1xf32> to vector<16x32xf32>
    %204 = arith.subf %191, %203 : vector<16x32xf32>
    %cst_103 = arith.constant 9.99999974E-6 : f32
    %205 = vector.broadcast %cst_103 : f32 to vector<16x1xf32>
    %206 = arith.addf %202, %205 : vector<16x1xf32>
    %207 = math.rsqrt %206 : vector<16x1xf32>
    %208 = vector.broadcast %207 : vector<16x1xf32> to vector<16x32xf32>
    %209 = arith.mulf %204, %208 : vector<16x32xf32>
    %210 = vector.broadcast %119 : vector<1x32xf32> to vector<16x32xf32>
    %211 = arith.mulf %209, %210 : vector<16x32xf32>
    %212 = vector.broadcast %120 : vector<1x32xf32> to vector<16x32xf32>
    %213 = arith.addf %211, %212 : vector<16x32xf32>
    %c0_104 = arith.constant 0 : index
    %c0_105 = arith.constant 0 : index
    %214 = vector.load %arg16[%c0_104, %c0_105] : memref<32x16xf32, #tpu.memory_space<vmem>>, vector<32x16xf32>
    %cst_106 = arith.constant dense<0.000000e+00> : vector<16x16xf32>
    %215 = tpu.matmul %213, %214, %cst_106 {dimension_numbers = #tpu.dot_dimension_numbers<[1], [0], [0], [1], [0, 0, 1, 1], [], []>} : vector<16x32xf32>, vector<32x16xf32>, vector<16x16xf32> -> vector<16x16xf32>
    %c0_107 = arith.constant 0 : index
    %c0_108 = arith.constant 0 : index
    %216 = vector.load %arg17[%c0_107, %c0_108] : memref<1x16xf32, #tpu.memory_space<vmem>>, vector<1x16xf32>
    %217 = vector.broadcast %216 : vector<1x16xf32> to vector<16x16xf32>
    %218 = arith.addf %215, %217 : vector<16x16xf32>
    %c0_109 = arith.constant 0 : index
    %c0_110 = arith.constant 0 : index
    %219 = vector.load %arg18[%c0_109, %c0_110] : memref<16x16xf32, #tpu.memory_space<vmem>>, vector<16x16xf32>
    tpu.vector_store %arg18[%c0_109, %c0_110], %218 {strides = array<i32>} : memref<16x16xf32, #tpu.memory_space<vmem>>, vector<16x16xf32>,
    return
  }
}

</mosaic_0001>

<llo_original>
// kernel: tpu_custom_call.1
$region0: #{tpu_custom_call.1}
  #allocation0 [shape = 'u32[]', space=smem, size = 0x4, offset = 0x4, fixed_abs, tag = 'smem constant byte address 0x4 - core index']
  #allocation1 [shape = 'u32[144,128]{1,0:T(1,128)}', space=vmem, size = 0x12000, scoped, tag = 'internal scratch']
  %s0 = inlined_call_operand.vmem [shape: f32[16,16], index: 0, kind: input, shape index: {}]
  %s1 = inlined_call_operand.hbm [shape: f32[16,16], index: 1, kind: input, shape index: {}]
  %s2 = inlined_call_operand.hbm [shape: f32[16,64], index: 2, kind: input, shape index: {}]
  %s3 = inlined_call_operand.vmem [shape: f32[64,32], index: 3, kind: input, shape index: {}]
  %s4 = inlined_call_operand.vmem [shape: f32[32,32], index: 4, kind: input, shape index: {}]
  %s5 = inlined_call_operand.vmem [shape: f32[64,32], index: 5, kind: input, shape index: {}]
  %s6 = inlined_call_operand.hbm [shape: f32[16,32], index: 6, kind: input, shape index: {}]
  %s7 = inlined_call_operand.hbm [shape: f32[1,32], index: 7, kind: input, shape index: {}]
  %s8 = inlined_call_operand.hbm [shape: f32[2,32,32], index: 8, kind: input, shape index: {}]
  %s9 = inlined_call_operand.hbm [shape: f32[2,32,32], index: 9, kind: input, shape index: {}]
  %s10 = inlined_call_operand.hbm [shape: f32[2,32,32], index: 10, kind: input, shape index: {}]
  %s11 = inlined_call_operand.hbm [shape: f32[2,32,32], index: 11, kind: input, shape index: {}]
  %s12 = inlined_call_operand.vmem [shape: f32[2,6,32], index: 12, kind: input, shape index: {}]
  %s13 = inlined_call_operand.vmem [shape: bf16[2,32,1024], index: 13, kind: input, shape index: {}]
  %s14 = inlined_call_operand.vmem [shape: f32[2,1,1024], index: 14, kind: input, shape index: {}]
  %s15 = inlined_call_operand.hbm [shape: bf16[2,32,1024], index: 15, kind: input, shape index: {}]
  %s16 = inlined_call_operand.vmem [shape: f32[32,16], index: 16, kind: input, shape index: {}]
  %s17 = inlined_call_operand.vmem [shape: f32[1,16], index: 17, kind: input, shape index: {}]
  %s18 = inlined_call_operand.hbm [shape: f32[16,16], index: 18, kind: output, shape index: {}]
  %s19 = sld [smem:[#allocation0]]
  $region118: #{tpu_custom_call.1} parent=0
    _
  %s21 = ssub.s32 1, %s19
  %s22 = scalar_select 0, %s21, %s19
  $region1: #{tpu_custom_call.1} parent=0
    #allocation2 [shape = 'u8[8192]{0}', space=vmem, size = 0x2000, scoped, tag = 'input window, operand 1, single buffered']
    #allocation3 [shape = 's32[1]{0}', space=sflag, size = 0x4, scoped, tag = 'scoped memory for tpu_custom_call.1']
    #allocation4 [shape = 's32[1]{0}', space=sflag, size = 0x4, scoped, tag = 'scoped memory for tpu_custom_call.1']
    #allocation5 [shape = 'u8[8192]{0}', space=vmem, size = 0x2000, scoped, tag = 'input window, operand 2, single buffered']
    #allocation6 [shape = 's32[1]{0}', space=sflag, size = 0x4, scoped, tag = 'scoped memory for tpu_custom_call.1']
    #allocation7 [shape = 'u8[8192]{0}', space=vmem, size = 0x2000, scoped, tag = 'input window, operand 6, single buffered']
    #allocation8 [shape = 'u8[512]{0}', space=vmem, size = 0x400, scoped, tag = 'input window, operand 7, single buffered']
    #allocation9 [shape = 's32[1]{0}', space=sflag, size = 0x4, scoped, tag = 'scoped memory for tpu_custom_call.1']
    #allocation10 [shape = 'u8[32768]{0}', space=vmem, size = 0x8000, scoped, tag = 'input window, operand 8, single buffered']
    #allocation11 [shape = 'u8[32768]{0}', space=vmem, size = 0x8000, scoped, tag = 'input window, operand 9, single buffered']
    #allocation12 [shape = 's32[1]{0}', space=sflag, size = 0x4, scoped, tag = 'scoped memory for tpu_custom_call.1']
    #allocation13 [shape = 'u8[32768]{0}', space=vmem, size = 0x8000, scoped, tag = 'input window, operand 10, single buffered']
    #allocation14 [shape = 'u8[32768]{0}', space=vmem, size = 0x8000, scoped, tag = 'input window, operand 11, single buffered']
    #allocation15 [shape = 's32[1]{0}', space=sflag, size = 0x4, scoped, tag = 'scoped memory for tpu_custom_call.1']
    #allocation16 [shape = 'u8[131072]{0}', space=vmem, size = 0x20000, scoped, tag = 'input window, operand 15, single buffered']
    #allocation17 [shape = 'u8[8192]{0}', space=vmem, size = 0x2000, scoped, tag = 'output window, operand 0, single buffered']
    %23 = vsyncpa [#allocation3], 0
    %24 = vsyncpa [#allocation6], 0
    %25 = vsyncpa [#allocation9], 0
    %26 = vsyncpa [#allocation12], 0
    %27 = vsyncpa [#allocation15], 0
    %28 = vsyncpa [#allocation4], 0
    // Predicated region
    $region2: #{tpu_custom_call.1} parent=1 // pred_check
      _
    $region3: #{tpu_custom_call.1} parent=1 // pred_check_branch
      %30 = sbr.rel (0) target = $region5
    $region4: #{tpu_custom_call.1} parent=1 // pred_region
      _
    $region5: #{tpu_custom_call.1} parent=1 // pred_fallthru
      _
    // Predicated region
    $region6: #{tpu_custom_call.1} parent=1 // pred_check
      _
    $region7: #{tpu_custom_call.1} parent=1 // pred_check_branch
      %32 = sbr.rel (0) target = $region9
    $region8: #{tpu_custom_call.1} parent=1 // pred_region
      %s34 = ssub.s32 256, 256
      %35 = vsyncadd [#allocation3], %s34
      %s36 = sshll.u32 [#allocation2], 4
      %s37 = int_to_ptr.vmem [resolvable:$true] %s36
      %42 = dma.hbm_to_vmem [thread:$0]  %s1, 256, %s37, [#allocation3], 128, 128, 8
    $region9: #{tpu_custom_call.1} parent=1 // pred_fallthru
      _
    // Predicated region
    $region10: #{tpu_custom_call.1} parent=1 // pred_check
      _
    $region11: #{tpu_custom_call.1} parent=1 // pred_check_branch
      %44 = sbr.rel (0) target = $region13
    $region12: #{tpu_custom_call.1} parent=1 // pred_region
      %s46 = ssub.s32 256, 256
      %47 = vsyncadd [#allocation6], %s46
      %s48 = sshll.u32 [#allocation5], 4
      %s49 = int_to_ptr.vmem [resolvable:$true] %s48
      %54 = dma.hbm_to_vmem [thread:$0]  %s2, 256, %s49, [#allocation6], 128, 128, 8
    $region13: #{tpu_custom_call.1} parent=1 // pred_fallthru
      _
    // Predicated region
    $region14: #{tpu_custom_call.1} parent=1 // pred_check
      _
    $region15: #{tpu_custom_call.1} parent=1 // pred_check_branch
      %56 = sbr.rel (0) target = $region17
    $region16: #{tpu_custom_call.1} parent=1 // pred_region
      _
    $region17: #{tpu_custom_call.1} parent=1 // pred_fallthru
      _
    // Predicated region
    $region18: #{tpu_custom_call.1} parent=1 // pred_check
      _
    $region19: #{tpu_custom_call.1} parent=1 // pred_check_branch
      %58 = sbr.rel (0) target = $region21
    $region20: #{tpu_custom_call.1} parent=1 // pred_region
      _
    $region21: #{tpu_custom_call.1} parent=1 // pred_fallthru
      _
    // Predicated region
    $region22: #{tpu_custom_call.1} parent=1 // pred_check
      _
    $region23: #{tpu_custom_call.1} parent=1 // pred_check_branch
      %60 = sbr.rel (0) target = $region25
    $region24: #{tpu_custom_call.1} parent=1 // pred_region
      _
    $region25: #{tpu_custom_call.1} parent=1 // pred_fallthru
      _
    // Predicated region
    $region26: #{tpu_custom_call.1} parent=1 // pred_check
      _
    $region27: #{tpu_custom_call.1} parent=1 // pred_check_branch
      %62 = sbr.rel (0) target = $region29
    $region28: #{tpu_custom_call.1} parent=1 // pred_region
      %s64 = ssub.s32 256, 256
      %65 = vsyncadd [#allocation6], %s64
      %s66 = sshll.u32 [#allocation7], 4
      %s67 = int_to_ptr.vmem [resolvable:$true] %s66
      %72 = dma.hbm_to_vmem [thread:$0]  %s6, 256, %s67, [#allocation6], 128, 128, 8
    $region29: #{tpu_custom_call.1} parent=1 // pred_fallthru
      _
    // Predicated region
    $region30: #{tpu_custom_call.1} parent=1 // pred_check
      _
    $region31: #{tpu_custom_call.1} parent=1 // pred_check_branch
      %74 = sbr.rel (0) target = $region33
    $region32: #{tpu_custom_call.1} parent=1 // pred_region
      %s76 = ssub.s32 16, 16
      %77 = vsyncadd [#allocation9], %s76
      %s79 = sshll.u32 [#allocation8], 4
      %s80 = int_to_ptr.vmem [resolvable:$true] %s79
      %82 = dma.hbm_to_vmem [thread:$0]  %s7, 16, %s80, [#allocation9]
    $region33: #{tpu_custom_call.1} parent=1 // pred_fallthru
      _
    // Predicated region
    $region34: #{tpu_custom_call.1} parent=1 // pred_check
      _
    $region35: #{tpu_custom_call.1} parent=1 // pred_check_branch
      %84 = sbr.rel (0) target = $region37
    $region36: #{tpu_custom_call.1} parent=1 // pred_region
      %s86 = ssub.s32 1024, 1024
      %87 = vsyncadd [#allocation9], %s86
      %s88 = sshll.u32 [#allocation10], 4
      %s89 = int_to_ptr.vmem [resolvable:$true] %s88
      %94 = dma.hbm_to_vmem [thread:$0]  %s8, 1024, %s89, [#allocation9], 128, 128, 8
    $region37: #{tpu_custom_call.1} parent=1 // pred_fallthru
      _
    // Predicated region
    $region38: #{tpu_custom_call.1} parent=1 // pred_check
      _
    $region39: #{tpu_custom_call.1} parent=1 // pred_check_branch
      %96 = sbr.rel (0) target = $region41
    $region40: #{tpu_custom_call.1} parent=1 // pred_region
      %s98 = ssub.s32 1024, 1024
      %99 = vsyncadd [#allocation12], %s98
      %s100 = sshll.u32 [#allocation11], 4
      %s101 = int_to_ptr.vmem [resolvable:$true] %s100
      %106 = dma.hbm_to_vmem [thread:$0]  %s9, 1024, %s101, [#allocation12], 128, 128, 8
    $region41: #{tpu_custom_call.1} parent=1 // pred_fallthru
      _
    // Predicated region
    $region42: #{tpu_custom_call.1} parent=1 // pred_check
      _
    $region43: #{tpu_custom_call.1} parent=1 // pred_check_branch
      %108 = sbr.rel (0) target = $region45
    $region44: #{tpu_custom_call.1} parent=1 // pred_region
      %s110 = ssub.s32 1024, 1024
      %111 = vsyncadd [#allocation12], %s110
      %s112 = sshll.u32 [#allocation13], 4
      %s113 = int_to_ptr.vmem [resolvable:$true] %s112
      %118 = dma.hbm_to_vmem [thread:$0]  %s10, 1024, %s113, [#allocation12], 128, 128, 8
    $region45: #{tpu_custom_call.1} parent=1 // pred_fallthru
      _
    // Predicated region
    $region46: #{tpu_custom_call.1} parent=1 // pred_check
      _
    $region47: #{tpu_custom_call.1} parent=1 // pred_check_branch
      %120 = sbr.rel (0) target = $region49
    $region48: #{tpu_custom_call.1} parent=1 // pred_region
      %s122 = ssub.s32 1024, 1024
      %123 = vsyncadd [#allocation15], %s122
      %s124 = sshll.u32 [#allocation14], 4
      %s125 = int_to_ptr.vmem [resolvable:$true] %s124
      %130 = dma.hbm_to_vmem [thread:$0]  %s11, 1024, %s125, [#allocation15], 128, 128, 8
    $region49: #{tpu_custom_call.1} parent=1 // pred_fallthru
      _
    // Predicated region
    $region50: #{tpu_custom_call.1} parent=1 // pred_check
      _
    $region51: #{tpu_custom_call.1} parent=1 // pred_check_branch
      %132 = sbr.rel (0) target = $region53
    $region52: #{tpu_custom_call.1} parent=1 // pred_region
      _
    $region53: #{tpu_custom_call.1} parent=1 // pred_fallthru
      _
    // Predicated region
    $region54: #{tpu_custom_call.1} parent=1 // pred_check
      _
    $region55: #{tpu_custom_call.1} parent=1 // pred_check_branch
      %134 = sbr.rel (0) target = $region57
    $region56: #{tpu_custom_call.1} parent=1 // pred_region
      _
    $region57: #{tpu_custom_call.1} parent=1 // pred_fallthru
      _
    // Predicated region
    $region58: #{tpu_custom_call.1} parent=1 // pred_check
      _
    $region59: #{tpu_custom_call.1} parent=1 // pred_check_branch
      %136 = sbr.rel (0) target = $region61
    $region60: #{tpu_custom_call.1} parent=1 // pred_region
      _
    $region61: #{tpu_custom_call.1} parent=1 // pred_fallthru
      _
    // Predicated region
    $region62: #{tpu_custom_call.1} parent=1 // pred_check
      _
    $region63: #{tpu_custom_call.1} parent=1 // pred_check_branch
      %138 = sbr.rel (0) target = $region65
    $region64: #{tpu_custom_call.1} parent=1 // pred_region
      %s140 = ssub.s32 4096, 4096
      %141 = vsyncadd [#allocation15], %s140
      %s142 = sshll.u32 [#allocation16], 4
      %s143 = int_to_ptr.vmem [resolvable:$true] %s142
      %148 = dma.hbm_to_vmem [thread:$0]  %s15, 4096, %s143, [#allocation15], 512, 512, 32
    $region65: #{tpu_custom_call.1} parent=1 // pred_fallthru
      _
    // Predicated region
    $region66: #{tpu_custom_call.1} parent=1 // pred_check
      _
    $region67: #{tpu_custom_call.1} parent=1 // pred_check_branch
      %150 = sbr.rel (0) target = $region69
    $region68: #{tpu_custom_call.1} parent=1 // pred_region
      _
    $region69: #{tpu_custom_call.1} parent=1 // pred_fallthru
      _
    // Predicated region
    $region70: #{tpu_custom_call.1} parent=1 // pred_check
      _
    $region71: #{tpu_custom_call.1} parent=1 // pred_check_branch
      %152 = sbr.rel (0) target = $region73
    $region72: #{tpu_custom_call.1} parent=1 // pred_region
      _
    $region73: #{tpu_custom_call.1} parent=1 // pred_fallthru
      _
    // Predicated region
    $region74: #{tpu_custom_call.1} parent=1 // pred_check
      _
    $region75: #{tpu_custom_call.1} parent=1 // pred_check_branch
      %154 = sbr.rel (0) target = $region77
    $region76: #{tpu_custom_call.1} parent=1 // pred_region
      %155 = dma.done [#allocation3], 256
    $region77: #{tpu_custom_call.1} parent=1 // pred_fallthru
      _
    // Predicated region
    $region78: #{tpu_custom_call.1} parent=1 // pred_check
      _
    $region79: #{tpu_custom_call.1} parent=1 // pred_check_branch
      %157 = sbr.rel (0) target = $region81
    $region80: #{tpu_custom_call.1} parent=1 // pred_region
      %158 = dma.done [#allocation6], 256
    $region81: #{tpu_custom_call.1} parent=1 // pred_fallthru
      _
    // Predicated region
    $region82: #{tpu_custom_call.1} parent=1 // pred_check
      _
    $region83: #{tpu_custom_call.1} parent=1 // pred_check_branch
      %160 = sbr.rel (0) target = $region85
    $region84: #{tpu_custom_call.1} parent=1 // pred_region
      %161 = dma.done [#allocation6], 256
    $region85: #{tpu_custom_call.1} parent=1 // pred_fallthru
      _
    // Predicated region
    $region86: #{tpu_custom_call.1} parent=1 // pred_check
      _
    $region87: #{tpu_custom_call.1} parent=1 // pred_check_branch
      %163 = sbr.rel (0) target = $region89
    $region88: #{tpu_custom_call.1} parent=1 // pred_region
      %164 = dma.done [#allocation9], 16
    $region89: #{tpu_custom_call.1} parent=1 // pred_fallthru
      _
    // Predicated region
    $region90: #{tpu_custom_call.1} parent=1 // pred_check
      _
    $region91: #{tpu_custom_call.1} parent=1 // pred_check_branch
      %166 = sbr.rel (0) target = $region93
    $region92: #{tpu_custom_call.1} parent=1 // pred_region
      %167 = dma.done [#allocation9], 1024
    $region93: #{tpu_custom_call.1} parent=1 // pred_fallthru
      _
    // Predicated region
    $region94: #{tpu_custom_call.1} parent=1 // pred_check
      _
    $region95: #{tpu_custom_call.1} parent=1 // pred_check_branch
      %169 = sbr.rel (0) target = $region97
    $region96: #{tpu_custom_call.1} parent=1 // pred_region
      %170 = dma.done [#allocation12], 1024
    $region97: #{tpu_custom_call.1} parent=1 // pred_fallthru
      _
    // Predicated region
    $region98: #{tpu_custom_call.1} parent=1 // pred_check
      _
    $region99: #{tpu_custom_call.1} parent=1 // pred_check_branch
      %172 = sbr.rel (0) target = $region101
    $region100: #{tpu_custom_call.1} parent=1 // pred_region
      %173 = dma.done [#allocation12], 1024
    $region101: #{tpu_custom_call.1} parent=1 // pred_fallthru
      _
    // Predicated region
    $region102: #{tpu_custom_call.1} parent=1 // pred_check
      _
    $region103: #{tpu_custom_call.1} parent=1 // pred_check_branch
      %175 = sbr.rel (0) target = $region105
    $region104: #{tpu_custom_call.1} parent=1 // pred_region
      %176 = dma.done [#allocation15], 1024
    $region105: #{tpu_custom_call.1} parent=1 // pred_fallthru
      _
    // Predicated region
    $region106: #{tpu_custom_call.1} parent=1 // pred_check
      _
    $region107: #{tpu_custom_call.1} parent=1 // pred_check_branch
      %178 = sbr.rel (0) target = $region109
    $region108: #{tpu_custom_call.1} parent=1 // pred_region
      %179 = dma.done [#allocation15], 4096
    $region109: #{tpu_custom_call.1} parent=1 // pred_fallthru
      _
    %v180 = vld [vmem:[%s0] sm:$0xff]
    %v181 = vld [vmem:[%s0 + $0x8] sm:$0xff]
    %v182 = vld [vmem:[#allocation2] sm:$0xff]
    %v183 = vld [vmem:[#allocation2 + $0x8] sm:$0xff]
    %v184 = vadd.f32 %v180, %v182
    %v185 = vadd.f32 %v181, %v183
    %v186 = vld [vmem:[#allocation7] sm:$0xff]
    %v187 = vld [vmem:[#allocation7 + $0x8] sm:$0xff]
    %v188 = vld [vmem:[#allocation8] sm:$0x1]
    %v190 = vlaneseq
    %v191 = vshrl.u32 %v190, 7
    %v192 = vsub.s32 0, %v191
    %v193 = vrot.slane %v188, %v192
    %vm195 = vcmask 130048
    %v197 = vsel %vm195, %v184, 0
    %v200 = vsel %vm195, %v185, 0
    %202 = vmatprep.subr.mxu0 0.0
    %203 = vmatpush1.msra.mxu0 %v186
    %204 = vmatprep.subr.mxu0 0.0
    %205 = vmatpush1.msra.mxu0 %v187
    %206 = vmatprep.subr.mxu0 0.0
    %207 = vmatpush1.msra.mxu0 0.0
    %208 = vmatprep.subr.mxu0 0.0
    %209 = vmatpush1.msra.mxu0 0.0
    %210 = vmatprep.subr.mxu0 0.0
    %211 = vmatpush1.msra.mxu0 0.0
    %212 = vmatprep.subr.mxu0 0.0
    %213 = vmatpush1.msra.mxu0 0.0
    %214 = vmatprep.subr.mxu0 0.0
    %215 = vmatpush1.msra.mxu0 0.0
    %216 = vmatprep.subr.mxu0 0.0
    %217 = vmatpush1.msra.mxu0 0.0
    %218 = vmatprep.subr.mxu0 0.0
    %219 = vmatpush1.msra.mxu0 0.0
    %220 = vmatprep.subr.mxu0 0.0
    %221 = vmatpush1.msra.mxu0 0.0
    %222 = vmatprep.subr.mxu0 0.0
    %223 = vmatpush1.msra.mxu0 0.0
    %224 = vmatprep.subr.mxu0 0.0
    %225 = vmatpush1.msra.mxu0 0.0
    %226 = vmatprep.subr.mxu0 0.0
    %227 = vmatpush1.msra.mxu0 0.0
    %228 = vmatprep.subr.mxu0 0.0
    %229 = vmatpush1.msra.mxu0 0.0
    %230 = vmatprep.subr.mxu0 0.0
    %231 = vmatpush1.msra.mxu0 0.0
    %232 = vmatprep.subr.mxu0 0.0
    %233 = vmatpush1.msra.mxu0 0.0
    %234 = vmatprep.subr.mxu0 0.0
    %235 = vmatpush1.msra.mxu0 0.0
    %236 = vmatprep.subr.mxu0 0.0
    %237 = vmatpush1.msra.mxu0 0.0
    %238 = vmatprep.subr.mxu0 0.0
    %239 = vmatpush1.msra.mxu0 0.0
    %240 = vmatprep.subr.mxu0 0.0
    %241 = vmatpush1.msra.mxu0 0.0
    %242 = vmatprep.subr.mxu0 0.0
    %243 = vmatpush1.msra.mxu0 0.0
    %244 = vmatprep.subr.mxu0 0.0
    %245 = vmatpush1.msra.mxu0 0.0
    %246 = vmatprep.subr.mxu0 0.0
    %247 = vmatpush1.msra.mxu0 0.0
    %248 = vmatprep.subr.mxu0 0.0
    %249 = vmatpush1.msra.mxu0 0.0
    %250 = vmatprep.subr.mxu0 0.0
    %251 = vmatpush1.msra.mxu0 0.0
    %252 = vmatprep.subr.mxu0 0.0
    %253 = vmatpush1.msra.mxu0 0.0
    %254 = vmatprep.subr.mxu0 0.0
    %255 = vmatpush1.msra.mxu0 0.0
    %256 = vmatprep.subr.mxu0 0.0
    %257 = vmatpush1.msra.mxu0 0.0
    %258 = vmatprep.subr.mxu0 0.0
    %259 = vmatpush1.msra.mxu0 0.0
    %260 = vmatprep.subr.mxu0 0.0
    %261 = vmatpush1.msra.mxu0 0.0
    %262 = vmatprep.subr.mxu0 0.0
    %263 = vmatpush1.msra.mxu0 0.0
    %264 = vmatprep.subr.mxu0 0.0
    %265 = vmatpush1.msra.mxu0 0.0
    %266 = vmatprep.mubr.f32.mxu0 0.0
    %267 = vmatmul.mubr.f32.gmra.mrb[0].mxu0 %v197
    %v268 = vpop.f32.mrb[0].mxu0
    %v269 = vadd.f32 %v193, %v268
    %v270 = vpop.f32.mrb[0].mxu0
    %271 = vmatprep.mubr.f32.mxu0 0.0
    %272 = vmatmul.mubr.f32.gmra.mrb[0].mxu0 %v200
    %v273 = vpop.f32.mrb[0].mxu0
    %v274 = vadd.f32 %v193, %v273
    %v275 = vpop.f32.mrb[0].mxu0
    %276 = vdwg.mxu0
    %v277 = vld [vmem:[#allocation5] sm:$0xff]
    %v278 = vld [vmem:[#allocation5 + $0x8] sm:$0xff]
    %v279 = vld [vmem:[%s3] sm:$0xff]
    %v280 = vld [vmem:[%s3 + $0x8] sm:$0xff]
    %v281 = vld [vmem:[%s3 + $0x10] sm:$0xff]
    %v282 = vld [vmem:[%s3 + $0x18] sm:$0xff]
    %v283 = vld [vmem:[%s3 + $0x20] sm:$0xff]
    %v284 = vld [vmem:[%s3 + $0x28] sm:$0xff]
    %v285 = vld [vmem:[%s3 + $0x30] sm:$0xff]
    %v286 = vld [vmem:[%s3 + $0x38] sm:$0xff]
    %v287 = vld [vmem:[%s4] sm:$0xff]
    %v288 = vld [vmem:[%s4 + $0x8] sm:$0xff]
    %v289 = vld [vmem:[%s4 + $0x10] sm:$0xff]
    %v290 = vld [vmem:[%s4 + $0x18] sm:$0xff]
    %v291 = vld [vmem:[%s5] sm:$0xff]
    %v292 = vld [vmem:[%s5 + $0x8] sm:$0xff]
    %v293 = vld [vmem:[%s5 + $0x10] sm:$0xff]
    %v294 = vld [vmem:[%s5 + $0x18] sm:$0xff]
    %v295 = vld [vmem:[%s5 + $0x20] sm:$0xff]
    %v296 = vld [vmem:[%s5 + $0x28] sm:$0xff]
    %v297 = vld [vmem:[%s5 + $0x30] sm:$0xff]
    %v298 = vld [vmem:[%s5 + $0x38] sm:$0xff]
    %v299 = vld [vmem:[%s12] sm:$0x3f]
    %v300 = vld [vmem:[#allocation10] sm:$0xff]
    %v301 = vld [vmem:[#allocation10 + $0x8] sm:$0xff]
    %v302 = vld [vmem:[#allocation10 + $0x10] sm:$0xff]
    %v303 = vld [vmem:[#allocation10 + $0x18] sm:$0xff]
    %vm304 = vcmask 261120
    %v306 = vsel %vm304, %v269, 0
    %v309 = vsel %vm304, %v274, 0
    %311 = vmatprep.subr.mxu0 0.0
    %312 = vmatpush1.msra.mxu0 %v300
    %313 = vmatprep.subr.mxu0 0.0
    %314 = vmatpush1.msra.mxu0 %v301
    %315 = vmatprep.subr.mxu0 0.0
    %316 = vmatpush1.msra.mxu0 %v302
    %317 = vmatprep.subr.mxu0 0.0
    %318 = vmatpush1.msra.mxu0 %v303
    %319 = vmatprep.subr.mxu0 0.0
    %320 = vmatpush1.msra.mxu0 0.0
    %321 = vmatprep.subr.mxu0 0.0
    %322 = vmatpush1.msra.mxu0 0.0
    %323 = vmatprep.subr.mxu0 0.0
    %324 = vmatpush1.msra.mxu0 0.0
    %325 = vmatprep.subr.mxu0 0.0
    %326 = vmatpush1.msra.mxu0 0.0
    %327 = vmatprep.subr.mxu0 0.0
    %328 = vmatpush1.msra.mxu0 0.0
    %329 = vmatprep.subr.mxu0 0.0
    %330 = vmatpush1.msra.mxu0 0.0
    %331 = vmatprep.subr.mxu0 0.0
    %332 = vmatpush1.msra.mxu0 0.0
    %333 = vmatprep.subr.mxu0 0.0
    %334 = vmatpush1.msra.mxu0 0.0
    %335 = vmatprep.subr.mxu0 0.0
    %336 = vmatpush1.msra.mxu0 0.0
    %337 = vmatprep.subr.mxu0 0.0
    %338 = vmatpush1.msra.mxu0 0.0
    %339 = vmatprep.subr.mxu0 0.0
    %340 = vmatpush1.msra.mxu0 0.0
    %341 = vmatprep.subr.mxu0 0.0
    %342 = vmatpush1.msra.mxu0 0.0
    %343 = vmatprep.subr.mxu0 0.0
    %344 = vmatpush1.msra.mxu0 0.0
    %345 = vmatprep.subr.mxu0 0.0
    %346 = vmatpush1.msra.mxu0 0.0
    %347 = vmatprep.subr.mxu0 0.0
    %348 = vmatpush1.msra.mxu0 0.0
    %349 = vmatprep.subr.mxu0 0.0
    %350 = vmatpush1.msra.mxu0 0.0
    %351 = vmatprep.subr.mxu0 0.0
    %352 = vmatpush1.msra.mxu0 0.0
    %353 = vmatprep.subr.mxu0 0.0
    %354 = vmatpush1.msra.mxu0 0.0
    %355 = vmatprep.subr.mxu0 0.0
    %356 = vmatpush1.msra.mxu0 0.0
    %357 = vmatprep.subr.mxu0 0.0
    %358 = vmatpush1.msra.mxu0 0.0
    %359 = vmatprep.subr.mxu0 0.0
    %360 = vmatpush1.msra.mxu0 0.0
    %361 = vmatprep.subr.mxu0 0.0
    %362 = vmatpush1.msra.mxu0 0.0
    %363 = vmatprep.subr.mxu0 0.0
    %364 = vmatpush1.msra.mxu0 0.0
    %365 = vmatprep.subr.mxu0 0.0
    %366 = vmatpush1.msra.mxu0 0.0
    %367 = vmatprep.subr.mxu0 0.0
    %368 = vmatpush1.msra.mxu0 0.0
    %369 = vmatprep.subr.mxu0 0.0
    %370 = vmatpush1.msra.mxu0 0.0
    %371 = vmatprep.subr.mxu0 0.0
    %372 = vmatpush1.msra.mxu0 0.0
    %373 = vmatprep.subr.mxu0 0.0
    %374 = vmatpush1.msra.mxu0 0.0
    %375 = vmatprep.mubr.f32.mxu0 0.0
    %376 = vmatmul.mubr.f32.gmra.mrb[0].mxu0 %v306
    %v377 = vpop.f32.mrb[0].mxu0
    %v378 = vadd.f32 0.0, %v377
    %v379 = vpop.f32.mrb[0].mxu0
    %380 = vmatprep.mubr.f32.mxu0 0.0
    %381 = vmatmul.mubr.f32.gmra.mrb[0].mxu0 %v309
    %v382 = vpop.f32.mrb[0].mxu0
    %v383 = vadd.f32 0.0, %v382
    %v384 = vpop.f32.mrb[0].mxu0
    %385 = vdwg.mxu0
    %v386 = vld [vmem:[#allocation11] sm:$0xff]
    %v387 = vld [vmem:[#allocation11 + $0x8] sm:$0xff]
    %v388 = vld [vmem:[#allocation11 + $0x10] sm:$0xff]
    %v389 = vld [vmem:[#allocation11 + $0x18] sm:$0xff]
    %390 = vmatprep.subr.mxu0 0.0
    %391 = vmatpush1.msra.mxu0 %v386
    %392 = vmatprep.subr.mxu0 0.0
    %393 = vmatpush1.msra.mxu0 %v387
    %394 = vmatprep.subr.mxu0 0.0
    %395 = vmatpush1.msra.mxu0 %v388
    %396 = vmatprep.subr.mxu0 0.0
    %397 = vmatpush1.msra.mxu0 %v389
    %398 = vmatprep.subr.mxu0 0.0
    %399 = vmatpush1.msra.mxu0 0.0
    %400 = vmatprep.subr.mxu0 0.0
    %401 = vmatpush1.msra.mxu0 0.0
    %402 = vmatprep.subr.mxu0 0.0
    %403 = vmatpush1.msra.mxu0 0.0
    %404 = vmatprep.subr.mxu0 0.0
    %405 = vmatpush1.msra.mxu0 0.0
    %406 = vmatprep.subr.mxu0 0.0
    %407 = vmatpush1.msra.mxu0 0.0
    %408 = vmatprep.subr.mxu0 0.0
    %409 = vmatpush1.msra.mxu0 0.0
    %410 = vmatprep.subr.mxu0 0.0
    %411 = vmatpush1.msra.mxu0 0.0
    %412 = vmatprep.subr.mxu0 0.0
    %413 = vmatpush1.msra.mxu0 0.0
    %414 = vmatprep.subr.mxu0 0.0
    %415 = vmatpush1.msra.mxu0 0.0
    %416 = vmatprep.subr.mxu0 0.0
    %417 = vmatpush1.msra.mxu0 0.0
    %418 = vmatprep.subr.mxu0 0.0
    %419 = vmatpush1.msra.mxu0 0.0
    %420 = vmatprep.subr.mxu0 0.0
    %421 = vmatpush1.msra.mxu0 0.0
    %422 = vmatprep.subr.mxu0 0.0
    %423 = vmatpush1.msra.mxu0 0.0
    %424 = vmatprep.subr.mxu0 0.0
    %425 = vmatpush1.msra.mxu0 0.0
    %426 = vmatprep.subr.mxu0 0.0
    %427 = vmatpush1.msra.mxu0 0.0
    %428 = vmatprep.subr.mxu0 0.0
    %429 = vmatpush1.msra.mxu0 0.0
    %430 = vmatprep.subr.mxu0 0.0
    %431 = vmatpush1.msra.mxu0 0.0
    %432 = vmatprep.subr.mxu0 0.0
    %433 = vmatpush1.msra.mxu0 0.0
    %434 = vmatprep.subr.mxu0 0.0
    %435 = vmatpush1.msra.mxu0 0.0
    %436 = vmatprep.subr.mxu0 0.0
    %437 = vmatpush1.msra.mxu0 0.0
    %438 = vmatprep.subr.mxu0 0.0
    %439 = vmatpush1.msra.mxu0 0.0
    %440 = vmatprep.subr.mxu0 0.0
    %441 = vmatpush1.msra.mxu0 0.0
    %442 = vmatprep.subr.mxu0 0.0
    %443 = vmatpush1.msra.mxu0 0.0
    %444 = vmatprep.subr.mxu0 0.0
    %445 = vmatpush1.msra.mxu0 0.0
    %446 = vmatprep.subr.mxu0 0.0
    %447 = vmatpush1.msra.mxu0 0.0
    %448 = vmatprep.subr.mxu0 0.0
    %449 = vmatpush1.msra.mxu0 0.0
    %450 = vmatprep.subr.mxu0 0.0
    %451 = vmatpush1.msra.mxu0 0.0
    %452 = vmatprep.subr.mxu0 0.0
    %453 = vmatpush1.msra.mxu0 0.0
    %454 = vmatprep.mubr.f32.mxu0 0.0
    %455 = vmatmul.mubr.f32.gmra.mrb[0].mxu0 %v306
    %v456 = vpop.f32.mrb[0].mxu0
    %v457 = vadd.f32 0.0, %v456
    %v458 = vpop.f32.mrb[0].mxu0
    %459 = vmatprep.mubr.f32.mxu0 0.0
    %460 = vmatmul.mubr.f32.gmra.mrb[0].mxu0 %v309
    %v461 = vpop.f32.mrb[0].mxu0
    %v462 = vadd.f32 0.0, %v461
    %v463 = vpop.f32.mrb[0].mxu0
    %464 = vdwg.mxu0
    %v465 = vld [vmem:[#allocation13] sm:$0xff]
    %v466 = vld [vmem:[#allocation13 + $0x8] sm:$0xff]
    %v467 = vld [vmem:[#allocation13 + $0x10] sm:$0xff]
    %v468 = vld [vmem:[#allocation13 + $0x18] sm:$0xff]
    %469 = vmatprep.subr.mxu0 0.0
    %470 = vmatpush1.msra.mxu0 %v465
    %471 = vmatprep.subr.mxu0 0.0
    %472 = vmatpush1.msra.mxu0 %v466
    %473 = vmatprep.subr.mxu0 0.0
    %474 = vmatpush1.msra.mxu0 %v467
    %475 = vmatprep.subr.mxu0 0.0
    %476 = vmatpush1.msra.mxu0 %v468
    %477 = vmatprep.subr.mxu0 0.0
    %478 = vmatpush1.msra.mxu0 0.0
    %479 = vmatprep.subr.mxu0 0.0
    %480 = vmatpush1.msra.mxu0 0.0
    %481 = vmatprep.subr.mxu0 0.0
    %482 = vmatpush1.msra.mxu0 0.0
    %483 = vmatprep.subr.mxu0 0.0
    %484 = vmatpush1.msra.mxu0 0.0
    %485 = vmatprep.subr.mxu0 0.0
    %486 = vmatpush1.msra.mxu0 0.0
    %487 = vmatprep.subr.mxu0 0.0
    %488 = vmatpush1.msra.mxu0 0.0
    %489 = vmatprep.subr.mxu0 0.0
    %490 = vmatpush1.msra.mxu0 0.0
    %491 = vmatprep.subr.mxu0 0.0
    %492 = vmatpush1.msra.mxu0 0.0
    %493 = vmatprep.subr.mxu0 0.0
    %494 = vmatpush1.msra.mxu0 0.0
    %495 = vmatprep.subr.mxu0 0.0
    %496 = vmatpush1.msra.mxu0 0.0
    %497 = vmatprep.subr.mxu0 0.0
    %498 = vmatpush1.msra.mxu0 0.0
    %499 = vmatprep.subr.mxu0 0.0
    %500 = vmatpush1.msra.mxu0 0.0
    %501 = vmatprep.subr.mxu0 0.0
    %502 = vmatpush1.msra.mxu0 0.0
    %503 = vmatprep.subr.mxu0 0.0
    %504 = vmatpush1.msra.mxu0 0.0
    %505 = vmatprep.subr.mxu0 0.0
    %506 = vmatpush1.msra.mxu0 0.0
    %507 = vmatprep.subr.mxu0 0.0
    %508 = vmatpush1.msra.mxu0 0.0
    %509 = vmatprep.subr.mxu0 0.0
    %510 = vmatpush1.msra.mxu0 0.0
    %511 = vmatprep.subr.mxu0 0.0
    %512 = vmatpush1.msra.mxu0 0.0
    %513 = vmatprep.subr.mxu0 0.0
    %514 = vmatpush1.msra.mxu0 0.0
    %515 = vmatprep.subr.mxu0 0.0
    %516 = vmatpush1.msra.mxu0 0.0
    %517 = vmatprep.subr.mxu0 0.0
    %518 = vmatpush1.msra.mxu0 0.0
    %519 = vmatprep.subr.mxu0 0.0
    %520 = vmatpush1.msra.mxu0 0.0
    %521 = vmatprep.subr.mxu0 0.0
    %522 = vmatpush1.msra.mxu0 0.0
    %523 = vmatprep.subr.mxu0 0.0
    %524 = vmatpush1.msra.mxu0 0.0
    %525 = vmatprep.subr.mxu0 0.0
    %526 = vmatpush1.msra.mxu0 0.0
    %527 = vmatprep.subr.mxu0 0.0
    %528 = vmatpush1.msra.mxu0 0.0
    %529 = vmatprep.subr.mxu0 0.0
    %530 = vmatpush1.msra.mxu0 0.0
    %531 = vmatprep.subr.mxu0 0.0
    %532 = vmatpush1.msra.mxu0 0.0
    %533 = vmatprep.mubr.f32.mxu0 0.0
    %534 = vmatmul.mubr.f32.gmra.mrb[0].mxu0 %v306
    %v535 = vpop.f32.mrb[0].mxu0
    %v536 = vadd.f32 0.0, %v535
    %v537 = vpop.f32.mrb[0].mxu0
    %538 = vmatprep.mubr.f32.mxu0 0.0
    %539 = vmatmul.mubr.f32.gmra.mrb[0].mxu0 %v309
    %v540 = vpop.f32.mrb[0].mxu0
    %v541 = vadd.f32 0.0, %v540
    %v542 = vpop.f32.mrb[0].mxu0
    %543 = vdwg.mxu0
    %v544 = vmul.f32 %v457, %v279
    %v545 = vmul.f32 %v462, %v280
    %v546 = vmul.f32 %v457, %v281
    %v547 = vmul.f32 %v462, %v282
    %v548 = vmul.f32 %v457, %v283
    %v549 = vmul.f32 %v462, %v284
    %v550 = vmul.f32 %v457, %v285
    %v551 = vmul.f32 %v462, %v286
    %v553 = vsel %vm304, %v378, 0
    %v556 = vsel %vm304, %v383, 0
    %v559 = vsel %vm304, %v544, 0
    %v562 = vsel %vm304, %v545, 0
    %v565 = vsel %vm304, %v546, 0
    %v568 = vsel %vm304, %v547, 0
    %v571 = vsel %vm304, %v548, 0
    %v574 = vsel %vm304, %v549, 0
    %v577 = vsel %vm304, %v550, 0
    %v580 = vsel %vm304, %v551, 0
    %582 = vmatprep.subr.mxu0 0.0
    %583 = vmatpush1.xpose.msra.mxu0 %v559
    %584 = vmatprep.subr.mxu0 0.0
    %585 = vmatpush1.xpose.msra.mxu0 %v562
    %586 = vmatprep.subr.mxu0 0.0
    %587 = vmatpush1.xpose.msra.mxu0 %v565
    %588 = vmatprep.subr.mxu0 0.0
    %589 = vmatpush1.xpose.msra.mxu0 %v568
    %590 = vmatprep.subr.mxu0 0.0
    %591 = vmatpush1.xpose.msra.mxu0 %v571
    %592 = vmatprep.subr.mxu0 0.0
    %593 = vmatpush1.xpose.msra.mxu0 %v574
    %594 = vmatprep.subr.mxu0 0.0
    %595 = vmatpush1.xpose.msra.mxu0 %v577
    %596 = vmatprep.subr.mxu0 0.0
    %597 = vmatpush1.xpose.msra.mxu0 %v580
    %598 = vmatprep.subr.mxu0 0.0
    %599 = vmatpush1.xpose.msra.mxu0 0.0
    %600 = vmatprep.subr.mxu0 0.0
    %601 = vmatpush1.xpose.msra.mxu0 0.0
    %602 = vmatprep.subr.mxu0 0.0
    %603 = vmatpush1.xpose.msra.mxu0 0.0
    %604 = vmatprep.subr.mxu0 0.0
    %605 = vmatpush1.xpose.msra.mxu0 0.0
    %606 = vmatprep.subr.mxu0 0.0
    %607 = vmatpush1.xpose.msra.mxu0 0.0
    %608 = vmatprep.subr.mxu0 0.0
    %609 = vmatpush1.xpose.msra.mxu0 0.0
    %610 = vmatprep.subr.mxu0 0.0
    %611 = vmatpush1.xpose.msra.mxu0 0.0
    %612 = vmatprep.subr.mxu0 0.0
    %613 = vmatpush1.xpose.msra.mxu0 0.0
    %614 = vmatprep.subr.mxu0 0.0
    %615 = vmatpush1.xpose.msra.mxu0 0.0
    %616 = vmatprep.subr.mxu0 0.0
    %617 = vmatpush1.xpose.msra.mxu0 0.0
    %618 = vmatprep.subr.mxu0 0.0
    %619 = vmatpush1.xpose.msra.mxu0 0.0
    %620 = vmatprep.subr.mxu0 0.0
    %621 = vmatpush1.xpose.msra.mxu0 0.0
    %622 = vmatprep.subr.mxu0 0.0
    %623 = vmatpush1.xpose.msra.mxu0 0.0
    %624 = vmatprep.subr.mxu0 0.0
    %625 = vmatpush1.xpose.msra.mxu0 0.0
    %626 = vmatprep.subr.mxu0 0.0
    %627 = vmatpush1.xpose.msra.mxu0 0.0
    %628 = vmatprep.subr.mxu0 0.0
    %629 = vmatpush1.xpose.msra.mxu0 0.0
    %630 = vmatprep.subr.mxu0 0.0
    %631 = vmatpush1.xpose.msra.mxu0 0.0
    %632 = vmatprep.subr.mxu0 0.0
    %633 = vmatpush1.xpose.msra.mxu0 0.0
    %634 = vmatprep.subr.mxu0 0.0
    %635 = vmatpush1.xpose.msra.mxu0 0.0
    %636 = vmatprep.subr.mxu0 0.0
    %637 = vmatpush1.xpose.msra.mxu0 0.0
    %638 = vmatprep.subr.mxu0 0.0
    %639 = vmatpush1.xpose.msra.mxu0 0.0
    %640 = vmatprep.subr.mxu0 0.0
    %641 = vmatpush1.xpose.msra.mxu0 0.0
    %642 = vmatprep.subr.mxu0 0.0
    %643 = vmatpush1.xpose.msra.mxu0 0.0
    %644 = vmatprep.subr.mxu0 0.0
    %645 = vmatpush1.xpose.msra.mxu0 0.0
    %646 = vmatprep.mubr.f32.mxu0 0.0
    %647 = vmatmul.mubr.f32.gmra.mrb[0].mxu0 %v553
    %v648 = vpop.f32.mrb[0].mxu0
    %v649 = vadd.f32 %v277, %v648
    %v650 = vpop.f32.mrb[0].mxu0
    %651 = vmatprep.mubr.f32.mxu0 0.0
    %652 = vmatmul.mubr.f32.gmra.mrb[0].mxu0 %v556
    %v653 = vpop.f32.mrb[0].mxu0
    %v654 = vadd.f32 %v278, %v653
    %v655 = vpop.f32.mrb[0].mxu0
    %656 = vdwg.mxu0
    %vm657 = vcmask 523264
    %v658 = vsel %vm657, %v649, -inf
    %659 = vmax.xlane.f32.xlu0 %v658
    %v660 = vpop.xlane.xlu0 %659
    %v661 = vsel %vm657, %v654, -inf
    %662 = vmax.xlane.f32.xlu0 %v661
    %v663 = vpop.xlane.xlu0 %662
    %v664 = vsub.f32 %v649, %v660
    %v665 = vsub.f32 %v654, %v663
    %v666 = vmul.f32 %v664, 1.442695
    %v667 = vpow.pop %v666
    %v668 = vmul.f32 %v665, 1.442695
    %v669 = vpow.pop %v668
    %v671 = vsel %vm657, %v667, 0
    %v674 = vsel %vm657, %v669, 0
    %676 = vmatprep.subr.mxu0 0.0
    %677 = vmatpush1.msra.mxu0 %v291
    %678 = vmatprep.subr.mxu0 0.0
    %679 = vmatpush1.msra.mxu0 %v292
    %680 = vmatprep.subr.mxu0 0.0
    %681 = vmatpush1.msra.mxu0 %v293
    %682 = vmatprep.subr.mxu0 0.0
    %683 = vmatpush1.msra.mxu0 %v294
    %684 = vmatprep.subr.mxu0 0.0
    %685 = vmatpush1.msra.mxu0 %v295
    %686 = vmatprep.subr.mxu0 0.0
    %687 = vmatpush1.msra.mxu0 %v296
    %688 = vmatprep.subr.mxu0 0.0
    %689 = vmatpush1.msra.mxu0 %v297
    %690 = vmatprep.subr.mxu0 0.0
    %691 = vmatpush1.msra.mxu0 %v298
    %692 = vmatprep.subr.mxu0 0.0
    %693 = vmatpush1.msra.mxu0 0.0
    %694 = vmatprep.subr.mxu0 0.0
    %695 = vmatpush1.msra.mxu0 0.0
    %696 = vmatprep.subr.mxu0 0.0
    %697 = vmatpush1.msra.mxu0 0.0
    %698 = vmatprep.subr.mxu0 0.0
    %699 = vmatpush1.msra.mxu0 0.0
    %700 = vmatprep.subr.mxu0 0.0
    %701 = vmatpush1.msra.mxu0 0.0
    %702 = vmatprep.subr.mxu0 0.0
    %703 = vmatpush1.msra.mxu0 0.0
    %704 = vmatprep.subr.mxu0 0.0
    %705 = vmatpush1.msra.mxu0 0.0
    %706 = vmatprep.subr.mxu0 0.0
    %707 = vmatpush1.msra.mxu0 0.0
    %708 = vmatprep.subr.mxu0 0.0
    %709 = vmatpush1.msra.mxu0 0.0
    %710 = vmatprep.subr.mxu0 0.0
    %711 = vmatpush1.msra.mxu0 0.0
    %712 = vmatprep.subr.mxu0 0.0
    %713 = vmatpush1.msra.mxu0 0.0
    %714 = vmatprep.subr.mxu0 0.0
    %715 = vmatpush1.msra.mxu0 0.0
    %716 = vmatprep.subr.mxu0 0.0
    %717 = vmatpush1.msra.mxu0 0.0
    %718 = vmatprep.subr.mxu0 0.0
    %719 = vmatpush1.msra.mxu0 0.0
    %720 = vmatprep.subr.mxu0 0.0
    %721 = vmatpush1.msra.mxu0 0.0
    %722 = vmatprep.subr.mxu0 0.0
    %723 = vmatpush1.msra.mxu0 0.0
    %724 = vmatprep.subr.mxu0 0.0
    %725 = vmatpush1.msra.mxu0 0.0
    %726 = vmatprep.subr.mxu0 0.0
    %727 = vmatpush1.msra.mxu0 0.0
    %728 = vmatprep.subr.mxu0 0.0
    %729 = vmatpush1.msra.mxu0 0.0
    %730 = vmatprep.subr.mxu0 0.0
    %731 = vmatpush1.msra.mxu0 0.0
    %732 = vmatprep.subr.mxu0 0.0
    %733 = vmatpush1.msra.mxu0 0.0
    %734 = vmatprep.subr.mxu0 0.0
    %735 = vmatpush1.msra.mxu0 0.0
    %736 = vmatprep.subr.mxu0 0.0
    %737 = vmatpush1.msra.mxu0 0.0
    %738 = vmatprep.subr.mxu0 0.0
    %739 = vmatpush1.msra.mxu0 0.0
    %740 = vmatprep.mubr.f32.mxu0 0.0
    %741 = vmatmul.mubr.f32.gmra.mrb[0].mxu0 %v671
    %v742 = vpop.f32.mrb[0].mxu0
    %v743 = vadd.f32 0.0, %v742
    %v744 = vpop.f32.mrb[0].mxu0
    %745 = vmatprep.mubr.f32.mxu0 0.0
    %746 = vmatmul.mubr.f32.gmra.mrb[0].mxu0 %v674
    %v747 = vpop.f32.mrb[0].mxu0
    %v748 = vadd.f32 0.0, %v747
    %v749 = vpop.f32.mrb[0].mxu0
    %750 = vdwg.mxu0
    %v751 = vmul.f32 %v378, %v457
    %v752 = vmul.f32 %v383, %v462
    %v754 = vsel %vm304, %v751, 0
    %v757 = vsel %vm304, %v752, 0
    %759 = vmatprep.subr.mxu0 0.0
    %760 = vmatpush1.msra.mxu0 %v287
    %761 = vmatprep.subr.mxu0 0.0
    %762 = vmatpush1.msra.mxu0 %v288
    %763 = vmatprep.subr.mxu0 0.0
    %764 = vmatpush1.msra.mxu0 %v289
    %765 = vmatprep.subr.mxu0 0.0
    %766 = vmatpush1.msra.mxu0 %v290
    %767 = vmatprep.subr.mxu0 0.0
    %768 = vmatpush1.msra.mxu0 0.0
    %769 = vmatprep.subr.mxu0 0.0
    %770 = vmatpush1.msra.mxu0 0.0
    %771 = vmatprep.subr.mxu0 0.0
    %772 = vmatpush1.msra.mxu0 0.0
    %773 = vmatprep.subr.mxu0 0.0
    %774 = vmatpush1.msra.mxu0 0.0
    %775 = vmatprep.subr.mxu0 0.0
    %776 = vmatpush1.msra.mxu0 0.0
    %777 = vmatprep.subr.mxu0 0.0
    %778 = vmatpush1.msra.mxu0 0.0
    %779 = vmatprep.subr.mxu0 0.0
    %780 = vmatpush1.msra.mxu0 0.0
    %781 = vmatprep.subr.mxu0 0.0
    %782 = vmatpush1.msra.mxu0 0.0
    %783 = vmatprep.subr.mxu0 0.0
    %784 = vmatpush1.msra.mxu0 0.0
    %785 = vmatprep.subr.mxu0 0.0
    %786 = vmatpush1.msra.mxu0 0.0
    %787 = vmatprep.subr.mxu0 0.0
    %788 = vmatpush1.msra.mxu0 0.0
    %789 = vmatprep.subr.mxu0 0.0
    %790 = vmatpush1.msra.mxu0 0.0
    %791 = vmatprep.subr.mxu0 0.0
    %792 = vmatpush1.msra.mxu0 0.0
    %793 = vmatprep.subr.mxu0 0.0
    %794 = vmatpush1.msra.mxu0 0.0
    %795 = vmatprep.subr.mxu0 0.0
    %796 = vmatpush1.msra.mxu0 0.0
    %797 = vmatprep.subr.mxu0 0.0
    %798 = vmatpush1.msra.mxu0 0.0
    %799 = vmatprep.subr.mxu0 0.0
    %800 = vmatpush1.msra.mxu0 0.0
    %801 = vmatprep.subr.mxu0 0.0
    %802 = vmatpush1.msra.mxu0 0.0
    %803 = vmatprep.subr.mxu0 0.0
    %804 = vmatpush1.msra.mxu0 0.0
    %805 = vmatprep.subr.mxu0 0.0
    %806 = vmatpush1.msra.mxu0 0.0
    %807 = vmatprep.subr.mxu0 0.0
    %808 = vmatpush1.msra.mxu0 0.0
    %809 = vmatprep.subr.mxu0 0.0
    %810 = vmatpush1.msra.mxu0 0.0
    %811 = vmatprep.subr.mxu0 0.0
    %812 = vmatpush1.msra.mxu0 0.0
    %813 = vmatprep.subr.mxu0 0.0
    %814 = vmatpush1.msra.mxu0 0.0
    %815 = vmatprep.subr.mxu0 0.0
    %816 = vmatpush1.msra.mxu0 0.0
    %817 = vmatprep.subr.mxu0 0.0
    %818 = vmatpush1.msra.mxu0 0.0
    %819 = vmatprep.subr.mxu0 0.0
    %820 = vmatpush1.msra.mxu0 0.0
    %821 = vmatprep.subr.mxu0 0.0
    %822 = vmatpush1.msra.mxu0 0.0
    %823 = vmatprep.mubr.f32.mxu0 0.0
    %824 = vmatmul.mubr.f32.gmra.mrb[0].mxu0 %v754
    %v825 = vpop.f32.mrb[0].mxu0
    %v826 = vadd.f32 0.0, %v825
    %v827 = vpop.f32.mrb[0].mxu0
    %828 = vmatprep.mubr.f32.mxu0 0.0
    %829 = vmatmul.mubr.f32.gmra.mrb[0].mxu0 %v757
    %v830 = vpop.f32.mrb[0].mxu0
    %v831 = vadd.f32 0.0, %v830
    %v832 = vpop.f32.mrb[0].mxu0
    %833 = vdwg.mxu0
    %v834 = vsub.f32 %v826, %v660
    %v835 = vsub.f32 %v831, %v663
    %v836 = vmul.f32 %v834, 1.442695
    %v837 = vpow.pop %v836
    %v838 = vmul.f32 %v835, 1.442695
    %v839 = vpow.pop %v838
    %v840 = vrcp.pop %v743
    %v841 = vmul.f32 %v837, %v840
    %v842 = vrcp.pop %v748
    %v843 = vmul.f32 %v839, %v842
    %v844 = vmul.f32 %v841, %v536
    %v845 = vmul.f32 %v843, %v541
    %v846 = vld [vmem:[#allocation14] sm:$0xff]
    %v847 = vld [vmem:[#allocation14 + $0x8] sm:$0xff]
    %v848 = vld [vmem:[#allocation14 + $0x10] sm:$0xff]
    %v849 = vld [vmem:[#allocation14 + $0x18] sm:$0xff]
    %v850 = vlaneseq
    %v851 = vshrl.u32 %v850, 7
    %v852 = vsub.s32 0, %v851
    %v853 = vrot.slane %v299, %v852
    %v855 = vsel %vm304, %v844, 0
    %v858 = vsel %vm304, %v845, 0
    %860 = vmatprep.subr.mxu0 0.0
    %861 = vmatpush1.msra.mxu0 %v846
    %862 = vmatprep.subr.mxu0 0.0
    %863 = vmatpush1.msra.mxu0 %v847
    %864 = vmatprep.subr.mxu0 0.0
    %865 = vmatpush1.msra.mxu0 %v848
    %866 = vmatprep.subr.mxu0 0.0
    %867 = vmatpush1.msra.mxu0 %v849
    %868 = vmatprep.subr.mxu0 0.0
    %869 = vmatpush1.msra.mxu0 0.0
    %870 = vmatprep.subr.mxu0 0.0
    %871 = vmatpush1.msra.mxu0 0.0
    %872 = vmatprep.subr.mxu0 0.0
    %873 = vmatpush1.msra.mxu0 0.0
    %874 = vmatprep.subr.mxu0 0.0
    %875 = vmatpush1.msra.mxu0 0.0
    %876 = vmatprep.subr.mxu0 0.0
    %877 = vmatpush1.msra.mxu0 0.0
    %878 = vmatprep.subr.mxu0 0.0
    %879 = vmatpush1.msra.mxu0 0.0
    %880 = vmatprep.subr.mxu0 0.0
    %881 = vmatpush1.msra.mxu0 0.0
    %882 = vmatprep.subr.mxu0 0.0
    %883 = vmatpush1.msra.mxu0 0.0
    %884 = vmatprep.subr.mxu0 0.0
    %885 = vmatpush1.msra.mxu0 0.0
    %886 = vmatprep.subr.mxu0 0.0
    %887 = vmatpush1.msra.mxu0 0.0
    %888 = vmatprep.subr.mxu0 0.0
    %889 = vmatpush1.msra.mxu0 0.0
    %890 = vmatprep.subr.mxu0 0.0
    %891 = vmatpush1.msra.mxu0 0.0
    %892 = vmatprep.subr.mxu0 0.0
    %893 = vmatpush1.msra.mxu0 0.0
    %894 = vmatprep.subr.mxu0 0.0
    %895 = vmatpush1.msra.mxu0 0.0
    %896 = vmatprep.subr.mxu0 0.0
    %897 = vmatpush1.msra.mxu0 0.0
    %898 = vmatprep.subr.mxu0 0.0
    %899 = vmatpush1.msra.mxu0 0.0
    %900 = vmatprep.subr.mxu0 0.0
    %901 = vmatpush1.msra.mxu0 0.0
    %902 = vmatprep.subr.mxu0 0.0
    %903 = vmatpush1.msra.mxu0 0.0
    %904 = vmatprep.subr.mxu0 0.0
    %905 = vmatpush1.msra.mxu0 0.0
    %906 = vmatprep.subr.mxu0 0.0
    %907 = vmatpush1.msra.mxu0 0.0
    %908 = vmatprep.subr.mxu0 0.0
    %909 = vmatpush1.msra.mxu0 0.0
    %910 = vmatprep.subr.mxu0 0.0
    %911 = vmatpush1.msra.mxu0 0.0
    %912 = vmatprep.subr.mxu0 0.0
    %913 = vmatpush1.msra.mxu0 0.0
    %914 = vmatprep.subr.mxu0 0.0
    %915 = vmatpush1.msra.mxu0 0.0
    %916 = vmatprep.subr.mxu0 0.0
    %917 = vmatpush1.msra.mxu0 0.0
    %918 = vmatprep.subr.mxu0 0.0
    %919 = vmatpush1.msra.mxu0 0.0
    %920 = vmatprep.subr.mxu0 0.0
    %921 = vmatpush1.msra.mxu0 0.0
    %922 = vmatprep.subr.mxu0 0.0
    %923 = vmatpush1.msra.mxu0 0.0
    %924 = vmatprep.mubr.f32.mxu0 0.0
    %925 = vmatmul.mubr.f32.gmra.mrb[0].mxu0 %v855
    %v926 = vpop.f32.mrb[0].mxu0
    %v927 = vadd.f32 %v853, %v926
    %v928 = vpop.f32.mrb[0].mxu0
    %929 = vmatprep.mubr.f32.mxu0 0.0
    %930 = vmatmul.mubr.f32.gmra.mrb[0].mxu0 %v858
    %v931 = vpop.f32.mrb[0].mxu0
    %v932 = vadd.f32 %v853, %v931
    %v933 = vpop.f32.mrb[0].mxu0
    %934 = vdwg.mxu0
    %v935 = vadd.f32 %v927, %v269
    %v936 = vadd.f32 %v932, %v274
    %v937 = vsel %vm304, %v935, 0.0
    %938 = vadd.xlane.f32.xlu0 %v937
    %v939 = vpop.xlane.xlu0 %938
    %v940 = vsel %vm304, %v936, 0.0
    %941 = vadd.xlane.f32.xlu0 %v940
    %v942 = vpop.xlane.xlu0 %941
    %v943 = vrcp.pop 32.0
    %v944 = vmul.f32 %v939, %v943
    %v945 = vmul.f32 %v942, %v943
    %v946 = vsub.f32 %v935, %v944
    %v947 = vsub.f32 %v936, %v945
    %v948 = vmul.f32 %v946, %v946
    %v949 = vmul.f32 %v947, %v947
    %v950 = vsel %vm304, %v948, 0.0
    %951 = vadd.xlane.f32.xlu0 %v950
    %v952 = vpop.xlane.xlu0 %951
    %v953 = vsel %vm304, %v949, 0.0
    %954 = vadd.xlane.f32.xlu0 %v953
    %v955 = vpop.xlane.xlu0 %954
    %v956 = vmul.f32 %v952, %v943
    %v957 = vmul.f32 %v955, %v943
    %v958 = vadd.f32 %v956, 1e-05
    %v959 = vadd.f32 %v957, 1e-05
    %v960 = vrsqrt.pop %v958
    %v961 = vrsqrt.pop %v959
    %v962 = vmul.f32 %v946, %v960
    %v963 = vmul.f32 %v947, %v961
    %v964 = vlaneseq
    %v965 = vshrl.u32 %v964, 7
    %v966 = vsub.s32 1, %v965
    %v967 = vrot.slane %v299, %v966
    %v968 = vmul.f32 %v962, %v967
    %v969 = vmul.f32 %v963, %v967
    %v970 = vlaneseq
    %v971 = vshrl.u32 %v970, 7
    %v972 = vsub.s32 2, %v971
    %v973 = vrot.slane %v299, %v972
    %v974 = vadd.f32 %v968, %v973
    %v975 = vadd.f32 %v969, %v973
    %v976 = vld [vmem:[%s13] sm:$0xff]
    %v977 = vld [vmem:[%s13 + $0x8] sm:$0xff]
    %v978 = vld [vmem:[%s13 + $0x10] sm:$0xff]
    %v979 = vld [vmem:[%s13 + $0x18] sm:$0xff]
    %v980 = vld [vmem:[%s13 + $0x20] sm:$0xff]
    %v981 = vld [vmem:[%s13 + $0x28] sm:$0xff]
    %v982 = vld [vmem:[%s13 + $0x30] sm:$0xff]
    %v983 = vld [vmem:[%s13 + $0x38] sm:$0xff]
    %v984 = vld [vmem:[%s13 + $0x40] sm:$0xff]
    %v985 = vld [vmem:[%s13 + $0x48] sm:$0xff]
    %v986 = vld [vmem:[%s13 + $0x50] sm:$0xff]
    %v987 = vld [vmem:[%s13 + $0x58] sm:$0xff]
    %v988 = vld [vmem:[%s13 + $0x60] sm:$0xff]
    %v989 = vld [vmem:[%s13 + $0x68] sm:$0xff]
    %v990 = vld [vmem:[%s13 + $0x70] sm:$0xff]
    %v991 = vld [vmem:[%s13 + $0x78] sm:$0xff]
    %v992 = vunpack.c.l.bf16 %v976
    %v993 = vunpack.c.h.bf16 %v976
    %v994 = vunpack.c.l.bf16 %v977
    %v995 = vunpack.c.h.bf16 %v977
    %v996 = vunpack.c.l.bf16 %v978
    %v997 = vunpack.c.h.bf16 %v978
    %v998 = vunpack.c.l.bf16 %v979
    %v999 = vunpack.c.h.bf16 %v979
    %v1000 = vunpack.c.l.bf16 %v980
    %v1001 = vunpack.c.h.bf16 %v980
    %v1002 = vunpack.c.l.bf16 %v981
    %v1003 = vunpack.c.h.bf16 %v981
    %v1004 = vunpack.c.l.bf16 %v982
    %v1005 = vunpack.c.h.bf16 %v982
    %v1006 = vunpack.c.l.bf16 %v983
    %v1007 = vunpack.c.h.bf16 %v983
    %v1008 = vunpack.c.l.bf16 %v984
    %v1009 = vunpack.c.h.bf16 %v984
    %v1010 = vunpack.c.l.bf16 %v985
    %v1011 = vunpack.c.h.bf16 %v985
    %v1012 = vunpack.c.l.bf16 %v986
    %v1013 = vunpack.c.h.bf16 %v986
    %v1014 = vunpack.c.l.bf16 %v987
    %v1015 = vunpack.c.h.bf16 %v987
    %v1016 = vunpack.c.l.bf16 %v988
    %v1017 = vunpack.c.h.bf16 %v988
    %v1018 = vunpack.c.l.bf16 %v989
    %v1019 = vunpack.c.h.bf16 %v989
    %v1020 = vunpack.c.l.bf16 %v990
    %v1021 = vunpack.c.h.bf16 %v990
    %v1022 = vunpack.c.l.bf16 %v991
    %v1023 = vunpack.c.h.bf16 %v991
    %v1024 = vld [vmem:[%s14] sm:$0xff]
    %v1026 = vlaneseq
    %v1027 = vshrl.u32 %v1026, 7
    %v1028 = vsub.s32 0, %v1027
    %v1029 = vrot.slane %v1024, %v1028
    %v1030 = vlaneseq
    %v1031 = vshrl.u32 %v1030, 7
    %v1032 = vsub.s32 1, %v1031
    %v1033 = vrot.slane %v1024, %v1032
    %v1034 = vlaneseq
    %v1035 = vshrl.u32 %v1034, 7
    %v1036 = vsub.s32 2, %v1035
    %v1037 = vrot.slane %v1024, %v1036
    %v1038 = vlaneseq
    %v1039 = vshrl.u32 %v1038, 7
    %v1040 = vsub.s32 3, %v1039
    %v1041 = vrot.slane %v1024, %v1040
    %v1042 = vlaneseq
    %v1043 = vshrl.u32 %v1042, 7
    %v1044 = vsub.s32 4, %v1043
    %v1045 = vrot.slane %v1024, %v1044
    %v1046 = vlaneseq
    %v1047 = vshrl.u32 %v1046, 7
    %v1048 = vsub.s32 5, %v1047
    %v1049 = vrot.slane %v1024, %v1048
    %v1050 = vlaneseq
    %v1051 = vshrl.u32 %v1050, 7
    %v1052 = vsub.s32 6, %v1051
    %v1053 = vrot.slane %v1024, %v1052
    %v1054 = vlaneseq
    %v1055 = vshrl.u32 %v1054, 7
    %v1056 = vsub.s32 7, %v1055
    %v1057 = vrot.slane %v1024, %v1056
    %v1067 = vsel %vm304, %v974, 0
    %v1070 = vsel %vm304, %v975, 0
    %1072 = vmatprep.subr.mxu0 %v993
    %1073 = vmatpush1.msra.mxu0 %v992
    %1074 = vmatprep.subr.mxu0 %v1001
    %1075 = vmatpush1.msra.mxu0 %v1000
    %1076 = vmatprep.subr.mxu0 %v1009
    %1077 = vmatpush1.msra.mxu0 %v1008
    %1078 = vmatprep.subr.mxu0 %v1017
    %1079 = vmatpush1.msra.mxu0 %v1016
    %1080 = vmatprep.subr.mxu0 0.0
    %1081 = vmatpush1.msra.mxu0 0.0
    %1082 = vmatprep.subr.mxu0 0.0
    %1083 = vmatpush1.msra.mxu0 0.0
    %1084 = vmatprep.subr.mxu0 0.0
    %1085 = vmatpush1.msra.mxu0 0.0
    %1086 = vmatprep.subr.mxu0 0.0
    %1087 = vmatpush1.msra.mxu0 0.0
    %1088 = vmatprep.subr.mxu0 0.0
    %1089 = vmatpush1.msra.mxu0 0.0
    %1090 = vmatprep.subr.mxu0 0.0
    %1091 = vmatpush1.msra.mxu0 0.0
    %1092 = vmatprep.subr.mxu0 0.0
    %1093 = vmatpush1.msra.mxu0 0.0
    %1094 = vmatprep.subr.mxu0 0.0
    %1095 = vmatpush1.msra.mxu0 0.0
    %1096 = vmatprep.subr.mxu0 0.0
    %1097 = vmatpush1.msra.mxu0 0.0
    %1098 = vmatprep.subr.mxu0 0.0
    %1099 = vmatpush1.msra.mxu0 0.0
    %1100 = vmatprep.subr.mxu0 0.0
    %1101 = vmatpush1.msra.mxu0 0.0
    %1102 = vmatprep.subr.mxu0 0.0
    %1103 = vmatpush1.msra.mxu0 0.0
    %1104 = vmatprep.subr.mxu0 0.0
    %1105 = vmatpush1.msra.mxu0 0.0
    %1106 = vmatprep.subr.mxu0 0.0
    %1107 = vmatpush1.msra.mxu0 0.0
    %1108 = vmatprep.subr.mxu0 0.0
    %1109 = vmatpush1.msra.mxu0 0.0
    %1110 = vmatprep.subr.mxu0 0.0
    %1111 = vmatpush1.msra.mxu0 0.0
    %1112 = vmatprep.subr.mxu0 0.0
    %1113 = vmatpush1.msra.mxu0 0.0
    %1114 = vmatprep.subr.mxu0 0.0
    %1115 = vmatpush1.msra.mxu0 0.0
    %1116 = vmatprep.subr.mxu0 0.0
    %1117 = vmatpush1.msra.mxu0 0.0
    %1118 = vmatprep.subr.mxu0 0.0
    %1119 = vmatpush1.msra.mxu0 0.0
    %1120 = vmatprep.subr.mxu0 0.0
    %1121 = vmatpush1.msra.mxu0 0.0
    %1122 = vmatprep.subr.mxu0 0.0
    %1123 = vmatpush1.msra.mxu0 0.0
    %1124 = vmatprep.subr.mxu0 0.0
    %1125 = vmatpush1.msra.mxu0 0.0
    %1126 = vmatprep.subr.mxu0 0.0
    %1127 = vmatpush1.msra.mxu0 0.0
    %1128 = vmatprep.subr.mxu0 0.0
    %1129 = vmatpush1.msra.mxu0 0.0
    %1130 = vmatprep.subr.mxu0 0.0
    %1131 = vmatpush1.msra.mxu0 0.0
    %1132 = vmatprep.subr.mxu0 0.0
    %1133 = vmatpush1.msra.mxu0 0.0
    %1134 = vmatprep.subr.mxu0 0.0
    %1135 = vmatpush1.msra.mxu0 0.0
    %1136 = vmatprep.mubr.f32.mxu0 0.0
    %1137 = vmatmul.mubr.f32.gmra.mrb[0].mxu0 %v1067
    %v1138 = vpop.f32.mrb[0].mxu0
    %v1139 = vadd.f32 %v1029, %v1138
    %v1140 = vpop.f32.mrb[0].mxu0
    %v1141 = vadd.f32 %v1033, %v1140
    %1142 = vmatprep.mubr.f32.mxu0 0.0
    %1143 = vmatmul.mubr.f32.gmra.mrb[0].mxu0 %v1070
    %v1144 = vpop.f32.mrb[0].mxu0
    %v1145 = vadd.f32 %v1029, %v1144
    %v1146 = vpop.f32.mrb[0].mxu0
    %v1147 = vadd.f32 %v1033, %v1146
    %1148 = vdwg.mxu0
    %1149 = vmatprep.subr.mxu0 %v995
    %1150 = vmatpush1.msra.mxu0 %v994
    %1151 = vmatprep.subr.mxu0 %v1003
    %1152 = vmatpush1.msra.mxu0 %v1002
    %1153 = vmatprep.subr.mxu0 %v1011
    %1154 = vmatpush1.msra.mxu0 %v1010
    %1155 = vmatprep.subr.mxu0 %v1019
    %1156 = vmatpush1.msra.mxu0 %v1018
    %1157 = vmatprep.subr.mxu0 0.0
    %1158 = vmatpush1.msra.mxu0 0.0
    %1159 = vmatprep.subr.mxu0 0.0
    %1160 = vmatpush1.msra.mxu0 0.0
    %1161 = vmatprep.subr.mxu0 0.0
    %1162 = vmatpush1.msra.mxu0 0.0
    %1163 = vmatprep.subr.mxu0 0.0
    %1164 = vmatpush1.msra.mxu0 0.0
    %1165 = vmatprep.subr.mxu0 0.0
    %1166 = vmatpush1.msra.mxu0 0.0
    %1167 = vmatprep.subr.mxu0 0.0
    %1168 = vmatpush1.msra.mxu0 0.0
    %1169 = vmatprep.subr.mxu0 0.0
    %1170 = vmatpush1.msra.mxu0 0.0
    %1171 = vmatprep.subr.mxu0 0.0
    %1172 = vmatpush1.msra.mxu0 0.0
    %1173 = vmatprep.subr.mxu0 0.0
    %1174 = vmatpush1.msra.mxu0 0.0
    %1175 = vmatprep.subr.mxu0 0.0
    %1176 = vmatpush1.msra.mxu0 0.0
    %1177 = vmatprep.subr.mxu0 0.0
    %1178 = vmatpush1.msra.mxu0 0.0
    %1179 = vmatprep.subr.mxu0 0.0
    %1180 = vmatpush1.msra.mxu0 0.0
    %1181 = vmatprep.subr.mxu0 0.0
    %1182 = vmatpush1.msra.mxu0 0.0
    %1183 = vmatprep.subr.mxu0 0.0
    %1184 = vmatpush1.msra.mxu0 0.0
    %1185 = vmatprep.subr.mxu0 0.0
    %1186 = vmatpush1.msra.mxu0 0.0
    %1187 = vmatprep.subr.mxu0 0.0
    %1188 = vmatpush1.msra.mxu0 0.0
    %1189 = vmatprep.subr.mxu0 0.0
    %1190 = vmatpush1.msra.mxu0 0.0
    %1191 = vmatprep.subr.mxu0 0.0
    %1192 = vmatpush1.msra.mxu0 0.0
    %1193 = vmatprep.subr.mxu0 0.0
    %1194 = vmatpush1.msra.mxu0 0.0
    %1195 = vmatprep.subr.mxu0 0.0
    %1196 = vmatpush1.msra.mxu0 0.0
    %1197 = vmatprep.subr.mxu0 0.0
    %1198 = vmatpush1.msra.mxu0 0.0
    %1199 = vmatprep.subr.mxu0 0.0
    %1200 = vmatpush1.msra.mxu0 0.0
    %1201 = vmatprep.subr.mxu0 0.0
    %1202 = vmatpush1.msra.mxu0 0.0
    %1203 = vmatprep.subr.mxu0 0.0
    %1204 = vmatpush1.msra.mxu0 0.0
    %1205 = vmatprep.subr.mxu0 0.0
    %1206 = vmatpush1.msra.mxu0 0.0
    %1207 = vmatprep.subr.mxu0 0.0
    %1208 = vmatpush1.msra.mxu0 0.0
    %1209 = vmatprep.subr.mxu0 0.0
    %1210 = vmatpush1.msra.mxu0 0.0
    %1211 = vmatprep.subr.mxu0 0.0
    %1212 = vmatpush1.msra.mxu0 0.0
    %1213 = vmatprep.mubr.f32.mxu0 0.0
    %1214 = vmatmul.mubr.f32.gmra.mrb[0].mxu0 %v1067
    %v1215 = vpop.f32.mrb[0].mxu0
    %v1216 = vadd.f32 %v1037, %v1215
    %v1217 = vpop.f32.mrb[0].mxu0
    %v1218 = vadd.f32 %v1041, %v1217
    %1219 = vmatprep.mubr.f32.mxu0 0.0
    %1220 = vmatmul.mubr.f32.gmra.mrb[0].mxu0 %v1070
    %v1221 = vpop.f32.mrb[0].mxu0
    %v1222 = vadd.f32 %v1037, %v1221
    %v1223 = vpop.f32.mrb[0].mxu0
    %v1224 = vadd.f32 %v1041, %v1223
    %1225 = vdwg.mxu0
    %1226 = vmatprep.subr.mxu0 %v997
    %1227 = vmatpush1.msra.mxu0 %v996
    %1228 = vmatprep.subr.mxu0 %v1005
    %1229 = vmatpush1.msra.mxu0 %v1004
    %1230 = vmatprep.subr.mxu0 %v1013
    %1231 = vmatpush1.msra.mxu0 %v1012
    %1232 = vmatprep.subr.mxu0 %v1021
    %1233 = vmatpush1.msra.mxu0 %v1020
    %1234 = vmatprep.subr.mxu0 0.0
    %1235 = vmatpush1.msra.mxu0 0.0
    %1236 = vmatprep.subr.mxu0 0.0
    %1237 = vmatpush1.msra.mxu0 0.0
    %1238 = vmatprep.subr.mxu0 0.0
    %1239 = vmatpush1.msra.mxu0 0.0
    %1240 = vmatprep.subr.mxu0 0.0
    %1241 = vmatpush1.msra.mxu0 0.0
    %1242 = vmatprep.subr.mxu0 0.0
    %1243 = vmatpush1.msra.mxu0 0.0
    %1244 = vmatprep.subr.mxu0 0.0
    %1245 = vmatpush1.msra.mxu0 0.0
    %1246 = vmatprep.subr.mxu0 0.0
    %1247 = vmatpush1.msra.mxu0 0.0
    %1248 = vmatprep.subr.mxu0 0.0
    %1249 = vmatpush1.msra.mxu0 0.0
    %1250 = vmatprep.subr.mxu0 0.0
    %1251 = vmatpush1.msra.mxu0 0.0
    %1252 = vmatprep.subr.mxu0 0.0
    %1253 = vmatpush1.msra.mxu0 0.0
    %1254 = vmatprep.subr.mxu0 0.0
    %1255 = vmatpush1.msra.mxu0 0.0
    %1256 = vmatprep.subr.mxu0 0.0
    %1257 = vmatpush1.msra.mxu0 0.0
    %1258 = vmatprep.subr.mxu0 0.0
    %1259 = vmatpush1.msra.mxu0 0.0
    %1260 = vmatprep.subr.mxu0 0.0
    %1261 = vmatpush1.msra.mxu0 0.0
    %1262 = vmatprep.subr.mxu0 0.0
    %1263 = vmatpush1.msra.mxu0 0.0
    %1264 = vmatprep.subr.mxu0 0.0
    %1265 = vmatpush1.msra.mxu0 0.0
    %1266 = vmatprep.subr.mxu0 0.0
    %1267 = vmatpush1.msra.mxu0 0.0
    %1268 = vmatprep.subr.mxu0 0.0
    %1269 = vmatpush1.msra.mxu0 0.0
    %1270 = vmatprep.subr.mxu0 0.0
    %1271 = vmatpush1.msra.mxu0 0.0
    %1272 = vmatprep.subr.mxu0 0.0
    %1273 = vmatpush1.msra.mxu0 0.0
    %1274 = vmatprep.subr.mxu0 0.0
    %1275 = vmatpush1.msra.mxu0 0.0
    %1276 = vmatprep.subr.mxu0 0.0
    %1277 = vmatpush1.msra.mxu0 0.0
    %1278 = vmatprep.subr.mxu0 0.0
    %1279 = vmatpush1.msra.mxu0 0.0
    %1280 = vmatprep.subr.mxu0 0.0
    %1281 = vmatpush1.msra.mxu0 0.0
    %1282 = vmatprep.subr.mxu0 0.0
    %1283 = vmatpush1.msra.mxu0 0.0
    %1284 = vmatprep.subr.mxu0 0.0
    %1285 = vmatpush1.msra.mxu0 0.0
    %1286 = vmatprep.subr.mxu0 0.0
    %1287 = vmatpush1.msra.mxu0 0.0
    %1288 = vmatprep.subr.mxu0 0.0
    %1289 = vmatpush1.msra.mxu0 0.0
    %1290 = vmatprep.mubr.f32.mxu0 0.0
    %1291 = vmatmul.mubr.f32.gmra.mrb[0].mxu0 %v1067
    %v1292 = vpop.f32.mrb[0].mxu0
    %v1293 = vadd.f32 %v1045, %v1292
    %v1294 = vpop.f32.mrb[0].mxu0
    %v1295 = vadd.f32 %v1049, %v1294
    %1296 = vmatprep.mubr.f32.mxu0 0.0
    %1297 = vmatmul.mubr.f32.gmra.mrb[0].mxu0 %v1070
    %v1298 = vpop.f32.mrb[0].mxu0
    %v1299 = vadd.f32 %v1045, %v1298
    %v1300 = vpop.f32.mrb[0].mxu0
    %v1301 = vadd.f32 %v1049, %v1300
    %1302 = vdwg.mxu0
    %1303 = vmatprep.subr.mxu0 %v999
    %1304 = vmatpush1.msra.mxu0 %v998
    %1305 = vmatprep.subr.mxu0 %v1007
    %1306 = vmatpush1.msra.mxu0 %v1006
    %1307 = vmatprep.subr.mxu0 %v1015
    %1308 = vmatpush1.msra.mxu0 %v1014
    %1309 = vmatprep.subr.mxu0 %v1023
    %1310 = vmatpush1.msra.mxu0 %v1022
    %1311 = vmatprep.subr.mxu0 0.0
    %1312 = vmatpush1.msra.mxu0 0.0
    %1313 = vmatprep.subr.mxu0 0.0
    %1314 = vmatpush1.msra.mxu0 0.0
    %1315 = vmatprep.subr.mxu0 0.0
    %1316 = vmatpush1.msra.mxu0 0.0
    %1317 = vmatprep.subr.mxu0 0.0
    %1318 = vmatpush1.msra.mxu0 0.0
    %1319 = vmatprep.subr.mxu0 0.0
    %1320 = vmatpush1.msra.mxu0 0.0
    %1321 = vmatprep.subr.mxu0 0.0
    %1322 = vmatpush1.msra.mxu0 0.0
    %1323 = vmatprep.subr.mxu0 0.0
    %1324 = vmatpush1.msra.mxu0 0.0
    %1325 = vmatprep.subr.mxu0 0.0
    %1326 = vmatpush1.msra.mxu0 0.0
    %1327 = vmatprep.subr.mxu0 0.0
    %1328 = vmatpush1.msra.mxu0 0.0
    %1329 = vmatprep.subr.mxu0 0.0
    %1330 = vmatpush1.msra.mxu0 0.0
    %1331 = vmatprep.subr.mxu0 0.0
    %1332 = vmatpush1.msra.mxu0 0.0
    %1333 = vmatprep.subr.mxu0 0.0
    %1334 = vmatpush1.msra.mxu0 0.0
    %1335 = vmatprep.subr.mxu0 0.0
    %1336 = vmatpush1.msra.mxu0 0.0
    %1337 = vmatprep.subr.mxu0 0.0
    %1338 = vmatpush1.msra.mxu0 0.0
    %1339 = vmatprep.subr.mxu0 0.0
    %1340 = vmatpush1.msra.mxu0 0.0
    %1341 = vmatprep.subr.mxu0 0.0
    %1342 = vmatpush1.msra.mxu0 0.0
    %1343 = vmatprep.subr.mxu0 0.0
    %1344 = vmatpush1.msra.mxu0 0.0
    %1345 = vmatprep.subr.mxu0 0.0
    %1346 = vmatpush1.msra.mxu0 0.0
    %1347 = vmatprep.subr.mxu0 0.0
    %1348 = vmatpush1.msra.mxu0 0.0
    %1349 = vmatprep.subr.mxu0 0.0
    %1350 = vmatpush1.msra.mxu0 0.0
    %1351 = vmatprep.subr.mxu0 0.0
    %1352 = vmatpush1.msra.mxu0 0.0
    %1353 = vmatprep.subr.mxu0 0.0
    %1354 = vmatpush1.msra.mxu0 0.0
    %1355 = vmatprep.subr.mxu0 0.0
    %1356 = vmatpush1.msra.mxu0 0.0
    %1357 = vmatprep.subr.mxu0 0.0
    %1358 = vmatpush1.msra.mxu0 0.0
    %1359 = vmatprep.subr.mxu0 0.0
    %1360 = vmatpush1.msra.mxu0 0.0
    %1361 = vmatprep.subr.mxu0 0.0
    %1362 = vmatpush1.msra.mxu0 0.0
    %1363 = vmatprep.subr.mxu0 0.0
    %1364 = vmatpush1.msra.mxu0 0.0
    %1365 = vmatprep.subr.mxu0 0.0
    %1366 = vmatpush1.msra.mxu0 0.0
    %1367 = vmatprep.mubr.f32.mxu0 0.0
    %1368 = vmatmul.mubr.f32.gmra.mrb[0].mxu0 %v1067
    %v1369 = vpop.f32.mrb[0].mxu0
    %v1370 = vadd.f32 %v1053, %v1369
    %v1371 = vpop.f32.mrb[0].mxu0
    %v1372 = vadd.f32 %v1057, %v1371
    %1373 = vmatprep.mubr.f32.mxu0 0.0
    %1374 = vmatmul.mubr.f32.gmra.mrb[0].mxu0 %v1070
    %v1375 = vpop.f32.mrb[0].mxu0
    %v1376 = vadd.f32 %v1053, %v1375
    %v1377 = vpop.f32.mrb[0].mxu0
    %v1378 = vadd.f32 %v1057, %v1377
    %1379 = vdwg.mxu0
    %v1380 = vmax.f32 %v1139, 0.0
    %v1381 = vmax.f32 %v1141, 0.0
    %v1382 = vmax.f32 %v1216, 0.0
    %v1383 = vmax.f32 %v1218, 0.0
    %v1384 = vmax.f32 %v1293, 0.0
    %v1385 = vmax.f32 %v1295, 0.0
    %v1386 = vmax.f32 %v1370, 0.0
    %v1387 = vmax.f32 %v1372, 0.0
    %v1388 = vmax.f32 %v1145, 0.0
    %v1389 = vmax.f32 %v1147, 0.0
    %v1390 = vmax.f32 %v1222, 0.0
    %v1391 = vmax.f32 %v1224, 0.0
    %v1392 = vmax.f32 %v1299, 0.0
    %v1393 = vmax.f32 %v1301, 0.0
    %v1394 = vmax.f32 %v1376, 0.0
    %v1395 = vmax.f32 %v1378, 0.0
    %v1396 = vld [vmem:[#allocation16] sm:$0xff]
    %v1397 = vld [vmem:[#allocation16 + $0x8] sm:$0xff]
    %v1398 = vld [vmem:[#allocation16 + $0x10] sm:$0xff]
    %v1399 = vld [vmem:[#allocation16 + $0x18] sm:$0xff]
    %v1400 = vld [vmem:[#allocation16 + $0x20] sm:$0xff]
    %v1401 = vld [vmem:[#allocation16 + $0x28] sm:$0xff]
    %v1402 = vld [vmem:[#allocation16 + $0x30] sm:$0xff]
    %v1403 = vld [vmem:[#allocation16 + $0x38] sm:$0xff]
    %v1404 = vld [vmem:[#allocation16 + $0x40] sm:$0xff]
    %v1405 = vld [vmem:[#allocation16 + $0x48] sm:$0xff]
    %v1406 = vld [vmem:[#allocation16 + $0x50] sm:$0xff]
    %v1407 = vld [vmem:[#allocation16 + $0x58] sm:$0xff]
    %v1408 = vld [vmem:[#allocation16 + $0x60] sm:$0xff]
    %v1409 = vld [vmem:[#allocation16 + $0x68] sm:$0xff]
    %v1410 = vld [vmem:[#allocation16 + $0x70] sm:$0xff]
    %v1411 = vld [vmem:[#allocation16 + $0x78] sm:$0xff]
    %v1412 = vunpack.c.l.bf16 %v1396
    %v1413 = vunpack.c.h.bf16 %v1396
    %v1414 = vunpack.c.l.bf16 %v1397
    %v1415 = vunpack.c.h.bf16 %v1397
    %v1416 = vunpack.c.l.bf16 %v1398
    %v1417 = vunpack.c.h.bf16 %v1398
    %v1418 = vunpack.c.l.bf16 %v1399
    %v1419 = vunpack.c.h.bf16 %v1399
    %v1420 = vunpack.c.l.bf16 %v1400
    %v1421 = vunpack.c.h.bf16 %v1400
    %v1422 = vunpack.c.l.bf16 %v1401
    %v1423 = vunpack.c.h.bf16 %v1401
    %v1424 = vunpack.c.l.bf16 %v1402
    %v1425 = vunpack.c.h.bf16 %v1402
    %v1426 = vunpack.c.l.bf16 %v1403
    %v1427 = vunpack.c.h.bf16 %v1403
    %v1428 = vunpack.c.l.bf16 %v1404
    %v1429 = vunpack.c.h.bf16 %v1404
    %v1430 = vunpack.c.l.bf16 %v1405
    %v1431 = vunpack.c.h.bf16 %v1405
    %v1432 = vunpack.c.l.bf16 %v1406
    %v1433 = vunpack.c.h.bf16 %v1406
    %v1434 = vunpack.c.l.bf16 %v1407
    %v1435 = vunpack.c.h.bf16 %v1407
    %v1436 = vunpack.c.l.bf16 %v1408
    %v1437 = vunpack.c.h.bf16 %v1408
    %v1438 = vunpack.c.l.bf16 %v1409
    %v1439 = vunpack.c.h.bf16 %v1409
    %v1440 = vunpack.c.l.bf16 %v1410
    %v1441 = vunpack.c.h.bf16 %v1410
    %v1442 = vunpack.c.l.bf16 %v1411
    %v1443 = vunpack.c.h.bf16 %v1411
    %v1444 = vlaneseq
    %v1445 = vshrl.u32 %v1444, 7
    %v1446 = vsub.s32 3, %v1445
    %v1447 = vrot.slane %v299, %v1446
    %1448 = vmatprep.subr.mxu0 %v1413
    %1449 = vmatpush1.xpose.msra.mxu0 %v1412
    %1450 = vmatprep.subr.mxu0 %v1421
    %1451 = vmatpush1.xpose.msra.mxu0 %v1420
    %1452 = vmatprep.subr.mxu0 %v1429
    %1453 = vmatpush1.xpose.msra.mxu0 %v1428
    %1454 = vmatprep.subr.mxu0 %v1437
    %1455 = vmatpush1.xpose.msra.mxu0 %v1436
    %1456 = vmatprep.subr.mxu0 0.0
    %1457 = vmatpush1.xpose.msra.mxu0 0.0
    %1458 = vmatprep.subr.mxu0 0.0
    %1459 = vmatpush1.xpose.msra.mxu0 0.0
    %1460 = vmatprep.subr.mxu0 0.0
    %1461 = vmatpush1.xpose.msra.mxu0 0.0
    %1462 = vmatprep.subr.mxu0 0.0
    %1463 = vmatpush1.xpose.msra.mxu0 0.0
    %1464 = vmatprep.subr.mxu0 0.0
    %1465 = vmatpush1.xpose.msra.mxu0 0.0
    %1466 = vmatprep.subr.mxu0 0.0
    %1467 = vmatpush1.xpose.msra.mxu0 0.0
    %1468 = vmatprep.subr.mxu0 0.0
    %1469 = vmatpush1.xpose.msra.mxu0 0.0
    %1470 = vmatprep.subr.mxu0 0.0
    %1471 = vmatpush1.xpose.msra.mxu0 0.0
    %1472 = vmatprep.subr.mxu0 0.0
    %1473 = vmatpush1.xpose.msra.mxu0 0.0
    %1474 = vmatprep.subr.mxu0 0.0
    %1475 = vmatpush1.xpose.msra.mxu0 0.0
    %1476 = vmatprep.subr.mxu0 0.0
    %1477 = vmatpush1.xpose.msra.mxu0 0.0
    %1478 = vmatprep.subr.mxu0 0.0
    %1479 = vmatpush1.xpose.msra.mxu0 0.0
    %1480 = vmatprep.subr.mxu0 0.0
    %1481 = vmatpush1.xpose.msra.mxu0 0.0
    %1482 = vmatprep.subr.mxu0 0.0
    %1483 = vmatpush1.xpose.msra.mxu0 0.0
    %1484 = vmatprep.subr.mxu0 0.0
    %1485 = vmatpush1.xpose.msra.mxu0 0.0
    %1486 = vmatprep.subr.mxu0 0.0
    %1487 = vmatpush1.xpose.msra.mxu0 0.0
    %1488 = vmatprep.subr.mxu0 0.0
    %1489 = vmatpush1.xpose.msra.mxu0 0.0
    %1490 = vmatprep.subr.mxu0 0.0
    %1491 = vmatpush1.xpose.msra.mxu0 0.0
    %1492 = vmatprep.subr.mxu0 0.0
    %1493 = vmatpush1.xpose.msra.mxu0 0.0
    %1494 = vmatprep.subr.mxu0 0.0
    %1495 = vmatpush1.xpose.msra.mxu0 0.0
    %1496 = vmatprep.subr.mxu0 0.0
    %1497 = vmatpush1.xpose.msra.mxu0 0.0
    %1498 = vmatprep.subr.mxu0 0.0
    %1499 = vmatpush1.xpose.msra.mxu0 0.0
    %1500 = vmatprep.subr.mxu0 0.0
    %1501 = vmatpush1.xpose.msra.mxu0 0.0
    %1502 = vmatprep.subr.mxu0 0.0
    %1503 = vmatpush1.xpose.msra.mxu0 0.0
    %1504 = vmatprep.subr.mxu0 0.0
    %1505 = vmatpush1.xpose.msra.mxu0 0.0
    %1506 = vmatprep.subr.mxu0 0.0
    %1507 = vmatpush1.xpose.msra.mxu0 0.0
    %1508 = vmatprep.subr.mxu0 0.0
    %1509 = vmatpush1.xpose.msra.mxu0 0.0
    %1510 = vmatprep.subr.mxu0 0.0
    %1511 = vmatpush1.xpose.msra.mxu0 0.0
    %1512 = vmatprep.mubr.f32.mxu0 %v1381
    %1513 = vmatmul.mubr.f32.gmra.mrb[0].mxu0 %v1380
    %v1514 = vpop.f32.mrb[0].mxu0
    %v1515 = vadd.f32 %v1447, %v1514
    %v1516 = vpop.f32.mrb[0].mxu0
    %1517 = vmatprep.mubr.f32.mxu0 %v1389
    %1518 = vmatmul.mubr.f32.gmra.mrb[0].mxu0 %v1388
    %v1519 = vpop.f32.mrb[0].mxu0
    %v1520 = vadd.f32 %v1447, %v1519
    %v1521 = vpop.f32.mrb[0].mxu0
    %1522 = vdwg.mxu0
    %1523 = vmatprep.subr.mxu0 %v1415
    %1524 = vmatpush1.xpose.msra.mxu0 %v1414
    %1525 = vmatprep.subr.mxu0 %v1423
    %1526 = vmatpush1.xpose.msra.mxu0 %v1422
    %1527 = vmatprep.subr.mxu0 %v1431
    %1528 = vmatpush1.xpose.msra.mxu0 %v1430
    %1529 = vmatprep.subr.mxu0 %v1439
    %1530 = vmatpush1.xpose.msra.mxu0 %v1438
    %1531 = vmatprep.subr.mxu0 0.0
    %1532 = vmatpush1.xpose.msra.mxu0 0.0
    %1533 = vmatprep.subr.mxu0 0.0
    %1534 = vmatpush1.xpose.msra.mxu0 0.0
    %1535 = vmatprep.subr.mxu0 0.0
    %1536 = vmatpush1.xpose.msra.mxu0 0.0
    %1537 = vmatprep.subr.mxu0 0.0
    %1538 = vmatpush1.xpose.msra.mxu0 0.0
    %1539 = vmatprep.subr.mxu0 0.0
    %1540 = vmatpush1.xpose.msra.mxu0 0.0
    %1541 = vmatprep.subr.mxu0 0.0
    %1542 = vmatpush1.xpose.msra.mxu0 0.0
    %1543 = vmatprep.subr.mxu0 0.0
    %1544 = vmatpush1.xpose.msra.mxu0 0.0
    %1545 = vmatprep.subr.mxu0 0.0
    %1546 = vmatpush1.xpose.msra.mxu0 0.0
    %1547 = vmatprep.subr.mxu0 0.0
    %1548 = vmatpush1.xpose.msra.mxu0 0.0
    %1549 = vmatprep.subr.mxu0 0.0
    %1550 = vmatpush1.xpose.msra.mxu0 0.0
    %1551 = vmatprep.subr.mxu0 0.0
    %1552 = vmatpush1.xpose.msra.mxu0 0.0
    %1553 = vmatprep.subr.mxu0 0.0
    %1554 = vmatpush1.xpose.msra.mxu0 0.0
    %1555 = vmatprep.subr.mxu0 0.0
    %1556 = vmatpush1.xpose.msra.mxu0 0.0
    %1557 = vmatprep.subr.mxu0 0.0
    %1558 = vmatpush1.xpose.msra.mxu0 0.0
    %1559 = vmatprep.subr.mxu0 0.0
    %1560 = vmatpush1.xpose.msra.mxu0 0.0
    %1561 = vmatprep.subr.mxu0 0.0
    %1562 = vmatpush1.xpose.msra.mxu0 0.0
    %1563 = vmatprep.subr.mxu0 0.0
    %1564 = vmatpush1.xpose.msra.mxu0 0.0
    %1565 = vmatprep.subr.mxu0 0.0
    %1566 = vmatpush1.xpose.msra.mxu0 0.0
    %1567 = vmatprep.subr.mxu0 0.0
    %1568 = vmatpush1.xpose.msra.mxu0 0.0
    %1569 = vmatprep.subr.mxu0 0.0
    %1570 = vmatpush1.xpose.msra.mxu0 0.0
    %1571 = vmatprep.subr.mxu0 0.0
    %1572 = vmatpush1.xpose.msra.mxu0 0.0
    %1573 = vmatprep.subr.mxu0 0.0
    %1574 = vmatpush1.xpose.msra.mxu0 0.0
    %1575 = vmatprep.subr.mxu0 0.0
    %1576 = vmatpush1.xpose.msra.mxu0 0.0
    %1577 = vmatprep.subr.mxu0 0.0
    %1578 = vmatpush1.xpose.msra.mxu0 0.0
    %1579 = vmatprep.subr.mxu0 0.0
    %1580 = vmatpush1.xpose.msra.mxu0 0.0
    %1581 = vmatprep.subr.mxu0 0.0
    %1582 = vmatpush1.xpose.msra.mxu0 0.0
    %1583 = vmatprep.subr.mxu0 0.0
    %1584 = vmatpush1.xpose.msra.mxu0 0.0
    %1585 = vmatprep.subr.mxu0 0.0
    %1586 = vmatpush1.xpose.msra.mxu0 0.0
    %1587 = vmatprep.mubr.f32.mxu0 %v1383
    %1588 = vmatmul.mubr.f32.gmra.mrb[0].mxu0 %v1382
    %v1589 = vpop.f32.mrb[0].mxu0
    %v1590 = vadd.f32 %v1515, %v1589
    %v1591 = vpop.f32.mrb[0].mxu0
    %1592 = vmatprep.mubr.f32.mxu0 %v1391
    %1593 = vmatmul.mubr.f32.gmra.mrb[0].mxu0 %v1390
    %v1594 = vpop.f32.mrb[0].mxu0
    %v1595 = vadd.f32 %v1520, %v1594
    %v1596 = vpop.f32.mrb[0].mxu0
    %1597 = vdwg.mxu0
    %1598 = vmatprep.subr.mxu0 %v1417
    %1599 = vmatpush1.xpose.msra.mxu0 %v1416
    %1600 = vmatprep.subr.mxu0 %v1425
    %1601 = vmatpush1.xpose.msra.mxu0 %v1424
    %1602 = vmatprep.subr.mxu0 %v1433
    %1603 = vmatpush1.xpose.msra.mxu0 %v1432
    %1604 = vmatprep.subr.mxu0 %v1441
    %1605 = vmatpush1.xpose.msra.mxu0 %v1440
    %1606 = vmatprep.subr.mxu0 0.0
    %1607 = vmatpush1.xpose.msra.mxu0 0.0
    %1608 = vmatprep.subr.mxu0 0.0
    %1609 = vmatpush1.xpose.msra.mxu0 0.0
    %1610 = vmatprep.subr.mxu0 0.0
    %1611 = vmatpush1.xpose.msra.mxu0 0.0
    %1612 = vmatprep.subr.mxu0 0.0
    %1613 = vmatpush1.xpose.msra.mxu0 0.0
    %1614 = vmatprep.subr.mxu0 0.0
    %1615 = vmatpush1.xpose.msra.mxu0 0.0
    %1616 = vmatprep.subr.mxu0 0.0
    %1617 = vmatpush1.xpose.msra.mxu0 0.0
    %1618 = vmatprep.subr.mxu0 0.0
    %1619 = vmatpush1.xpose.msra.mxu0 0.0
    %1620 = vmatprep.subr.mxu0 0.0
    %1621 = vmatpush1.xpose.msra.mxu0 0.0
    %1622 = vmatprep.subr.mxu0 0.0
    %1623 = vmatpush1.xpose.msra.mxu0 0.0
    %1624 = vmatprep.subr.mxu0 0.0
    %1625 = vmatpush1.xpose.msra.mxu0 0.0
    %1626 = vmatprep.subr.mxu0 0.0
    %1627 = vmatpush1.xpose.msra.mxu0 0.0
    %1628 = vmatprep.subr.mxu0 0.0
    %1629 = vmatpush1.xpose.msra.mxu0 0.0
    %1630 = vmatprep.subr.mxu0 0.0
    %1631 = vmatpush1.xpose.msra.mxu0 0.0
    %1632 = vmatprep.subr.mxu0 0.0
    %1633 = vmatpush1.xpose.msra.mxu0 0.0
    %1634 = vmatprep.subr.mxu0 0.0
    %1635 = vmatpush1.xpose.msra.mxu0 0.0
    %1636 = vmatprep.subr.mxu0 0.0
    %1637 = vmatpush1.xpose.msra.mxu0 0.0
    %1638 = vmatprep.subr.mxu0 0.0
    %1639 = vmatpush1.xpose.msra.mxu0 0.0
    %1640 = vmatprep.subr.mxu0 0.0
    %1641 = vmatpush1.xpose.msra.mxu0 0.0
    %1642 = vmatprep.subr.mxu0 0.0
    %1643 = vmatpush1.xpose.msra.mxu0 0.0
    %1644 = vmatprep.subr.mxu0 0.0
    %1645 = vmatpush1.xpose.msra.mxu0 0.0
    %1646 = vmatprep.subr.mxu0 0.0
    %1647 = vmatpush1.xpose.msra.mxu0 0.0
    %1648 = vmatprep.subr.mxu0 0.0
    %1649 = vmatpush1.xpose.msra.mxu0 0.0
    %1650 = vmatprep.subr.mxu0 0.0
    %1651 = vmatpush1.xpose.msra.mxu0 0.0
    %1652 = vmatprep.subr.mxu0 0.0
    %1653 = vmatpush1.xpose.msra.mxu0 0.0
    %1654 = vmatprep.subr.mxu0 0.0
    %1655 = vmatpush1.xpose.msra.mxu0 0.0
    %1656 = vmatprep.subr.mxu0 0.0
    %1657 = vmatpush1.xpose.msra.mxu0 0.0
    %1658 = vmatprep.subr.mxu0 0.0
    %1659 = vmatpush1.xpose.msra.mxu0 0.0
    %1660 = vmatprep.subr.mxu0 0.0
    %1661 = vmatpush1.xpose.msra.mxu0 0.0
    %1662 = vmatprep.mubr.f32.mxu0 %v1385
    %1663 = vmatmul.mubr.f32.gmra.mrb[0].mxu0 %v1384
    %v1664 = vpop.f32.mrb[0].mxu0
    %v1665 = vadd.f32 %v1590, %v1664
    %v1666 = vpop.f32.mrb[0].mxu0
    %1667 = vmatprep.mubr.f32.mxu0 %v1393
    %1668 = vmatmul.mubr.f32.gmra.mrb[0].mxu0 %v1392
    %v1669 = vpop.f32.mrb[0].mxu0
    %v1670 = vadd.f32 %v1595, %v1669
    %v1671 = vpop.f32.mrb[0].mxu0
    %1672 = vdwg.mxu0
    %1673 = vmatprep.subr.mxu0 %v1419
    %1674 = vmatpush1.xpose.msra.mxu0 %v1418
    %1675 = vmatprep.subr.mxu0 %v1427
    %1676 = vmatpush1.xpose.msra.mxu0 %v1426
    %1677 = vmatprep.subr.mxu0 %v1435
    %1678 = vmatpush1.xpose.msra.mxu0 %v1434
    %1679 = vmatprep.subr.mxu0 %v1443
    %1680 = vmatpush1.xpose.msra.mxu0 %v1442
    %1681 = vmatprep.subr.mxu0 0.0
    %1682 = vmatpush1.xpose.msra.mxu0 0.0
    %1683 = vmatprep.subr.mxu0 0.0
    %1684 = vmatpush1.xpose.msra.mxu0 0.0
    %1685 = vmatprep.subr.mxu0 0.0
    %1686 = vmatpush1.xpose.msra.mxu0 0.0
    %1687 = vmatprep.subr.mxu0 0.0
    %1688 = vmatpush1.xpose.msra.mxu0 0.0
    %1689 = vmatprep.subr.mxu0 0.0
    %1690 = vmatpush1.xpose.msra.mxu0 0.0
    %1691 = vmatprep.subr.mxu0 0.0
    %1692 = vmatpush1.xpose.msra.mxu0 0.0
    %1693 = vmatprep.subr.mxu0 0.0
    %1694 = vmatpush1.xpose.msra.mxu0 0.0
    %1695 = vmatprep.subr.mxu0 0.0
    %1696 = vmatpush1.xpose.msra.mxu0 0.0
    %1697 = vmatprep.subr.mxu0 0.0
    %1698 = vmatpush1.xpose.msra.mxu0 0.0
    %1699 = vmatprep.subr.mxu0 0.0
    %1700 = vmatpush1.xpose.msra.mxu0 0.0
    %1701 = vmatprep.subr.mxu0 0.0
    %1702 = vmatpush1.xpose.msra.mxu0 0.0
    %1703 = vmatprep.subr.mxu0 0.0
    %1704 = vmatpush1.xpose.msra.mxu0 0.0
    %1705 = vmatprep.subr.mxu0 0.0
    %1706 = vmatpush1.xpose.msra.mxu0 0.0
    %1707 = vmatprep.subr.mxu0 0.0
    %1708 = vmatpush1.xpose.msra.mxu0 0.0
    %1709 = vmatprep.subr.mxu0 0.0
    %1710 = vmatpush1.xpose.msra.mxu0 0.0
    %1711 = vmatprep.subr.mxu0 0.0
    %1712 = vmatpush1.xpose.msra.mxu0 0.0
    %1713 = vmatprep.subr.mxu0 0.0
    %1714 = vmatpush1.xpose.msra.mxu0 0.0
    %1715 = vmatprep.subr.mxu0 0.0
    %1716 = vmatpush1.xpose.msra.mxu0 0.0
    %1717 = vmatprep.subr.mxu0 0.0
    %1718 = vmatpush1.xpose.msra.mxu0 0.0
    %1719 = vmatprep.subr.mxu0 0.0
    %1720 = vmatpush1.xpose.msra.mxu0 0.0
    %1721 = vmatprep.subr.mxu0 0.0
    %1722 = vmatpush1.xpose.msra.mxu0 0.0
    %1723 = vmatprep.subr.mxu0 0.0
    %1724 = vmatpush1.xpose.msra.mxu0 0.0
    %1725 = vmatprep.subr.mxu0 0.0
    %1726 = vmatpush1.xpose.msra.mxu0 0.0
    %1727 = vmatprep.subr.mxu0 0.0
    %1728 = vmatpush1.xpose.msra.mxu0 0.0
    %1729 = vmatprep.subr.mxu0 0.0
    %1730 = vmatpush1.xpose.msra.mxu0 0.0
    %1731 = vmatprep.subr.mxu0 0.0
    %1732 = vmatpush1.xpose.msra.mxu0 0.0
    %1733 = vmatprep.subr.mxu0 0.0
    %1734 = vmatpush1.xpose.msra.mxu0 0.0
    %1735 = vmatprep.subr.mxu0 0.0
    %1736 = vmatpush1.xpose.msra.mxu0 0.0
    %1737 = vmatprep.mubr.f32.mxu0 %v1387
    %1738 = vmatmul.mubr.f32.gmra.mrb[0].mxu0 %v1386
    %v1739 = vpop.f32.mrb[0].mxu0
    %v1740 = vadd.f32 %v1665, %v1739
    %v1741 = vpop.f32.mrb[0].mxu0
    %1742 = vmatprep.mubr.f32.mxu0 %v1395
    %1743 = vmatmul.mubr.f32.gmra.mrb[0].mxu0 %v1394
    %v1744 = vpop.f32.mrb[0].mxu0
    %v1745 = vadd.f32 %v1670, %v1744
    %v1746 = vpop.f32.mrb[0].mxu0
    %1747 = vdwg.mxu0
    %v1748 = vadd.f32 %v974, %v1740
    %v1749 = vadd.f32 %v975, %v1745
    %v1750 = vsel %vm304, %v1748, 0.0
    %1751 = vadd.xlane.f32.xlu0 %v1750
    %v1752 = vpop.xlane.xlu0 %1751
    %v1753 = vsel %vm304, %v1749, 0.0
    %1754 = vadd.xlane.f32.xlu0 %v1753
    %v1755 = vpop.xlane.xlu0 %1754
    %v1756 = vmul.f32 %v1752, %v943
    %v1757 = vmul.f32 %v1755, %v943
    %v1758 = vsub.f32 %v1748, %v1756
    %v1759 = vsub.f32 %v1749, %v1757
    %v1760 = vmul.f32 %v1758, %v1758
    %v1761 = vmul.f32 %v1759, %v1759
    %v1762 = vsel %vm304, %v1760, 0.0
    %1763 = vadd.xlane.f32.xlu0 %v1762
    %v1764 = vpop.xlane.xlu0 %1763
    %v1765 = vsel %vm304, %v1761, 0.0
    %1766 = vadd.xlane.f32.xlu0 %v1765
    %v1767 = vpop.xlane.xlu0 %1766
    %v1768 = vmul.f32 %v1764, %v943
    %v1769 = vmul.f32 %v1767, %v943
    %v1770 = vadd.f32 %v1768, 1e-05
    %v1771 = vadd.f32 %v1769, 1e-05
    %v1772 = vrsqrt.pop %v1770
    %v1773 = vrsqrt.pop %v1771
    %v1774 = vmul.f32 %v1758, %v1772
    %v1775 = vmul.f32 %v1759, %v1773
    %v1776 = vlaneseq
    %v1777 = vshrl.u32 %v1776, 7
    %v1778 = vsub.s32 4, %v1777
    %v1779 = vrot.slane %v299, %v1778
    %v1780 = vmul.f32 %v1774, %v1779
    %v1781 = vmul.f32 %v1775, %v1779
    %v1782 = vlaneseq
    %v1783 = vshrl.u32 %v1782, 7
    %v1784 = vsub.s32 5, %v1783
    %v1785 = vrot.slane %v299, %v1784
    %v1786 = vadd.f32 %v1780, %v1785
    %v1787 = vadd.f32 %v1781, %v1785
    %s1788 = scalar_lea.vmem %s12, 8
    %v1789 = vld [vmem:[%s1788] sm:$0x3f]
    %s1790 = scalar_lea.vmem [#allocation10], 32
    %v1791 = vld [vmem:[%s1790] sm:$0xff]
    %v1792 = vld [vmem:[%s1790 + $0x8] sm:$0xff]
    %v1793 = vld [vmem:[%s1790 + $0x10] sm:$0xff]
    %v1794 = vld [vmem:[%s1790 + $0x18] sm:$0xff]
    %v1796 = vsel %vm304, %v1786, 0
    %v1799 = vsel %vm304, %v1787, 0
    %1801 = vmatprep.subr.mxu0 0.0
    %1802 = vmatpush1.msra.mxu0 %v1791
    %1803 = vmatprep.subr.mxu0 0.0
    %1804 = vmatpush1.msra.mxu0 %v1792
    %1805 = vmatprep.subr.mxu0 0.0
    %1806 = vmatpush1.msra.mxu0 %v1793
    %1807 = vmatprep.subr.mxu0 0.0
    %1808 = vmatpush1.msra.mxu0 %v1794
    %1809 = vmatprep.subr.mxu0 0.0
    %1810 = vmatpush1.msra.mxu0 0.0
    %1811 = vmatprep.subr.mxu0 0.0
    %1812 = vmatpush1.msra.mxu0 0.0
    %1813 = vmatprep.subr.mxu0 0.0
    %1814 = vmatpush1.msra.mxu0 0.0
    %1815 = vmatprep.subr.mxu0 0.0
    %1816 = vmatpush1.msra.mxu0 0.0
    %1817 = vmatprep.subr.mxu0 0.0
    %1818 = vmatpush1.msra.mxu0 0.0
    %1819 = vmatprep.subr.mxu0 0.0
    %1820 = vmatpush1.msra.mxu0 0.0
    %1821 = vmatprep.subr.mxu0 0.0
    %1822 = vmatpush1.msra.mxu0 0.0
    %1823 = vmatprep.subr.mxu0 0.0
    %1824 = vmatpush1.msra.mxu0 0.0
    %1825 = vmatprep.subr.mxu0 0.0
    %1826 = vmatpush1.msra.mxu0 0.0
    %1827 = vmatprep.subr.mxu0 0.0
    %1828 = vmatpush1.msra.mxu0 0.0
    %1829 = vmatprep.subr.mxu0 0.0
    %1830 = vmatpush1.msra.mxu0 0.0
    %1831 = vmatprep.subr.mxu0 0.0
    %1832 = vmatpush1.msra.mxu0 0.0
    %1833 = vmatprep.subr.mxu0 0.0
    %1834 = vmatpush1.msra.mxu0 0.0
    %1835 = vmatprep.subr.mxu0 0.0
    %1836 = vmatpush1.msra.mxu0 0.0
    %1837 = vmatprep.subr.mxu0 0.0
    %1838 = vmatpush1.msra.mxu0 0.0
    %1839 = vmatprep.subr.mxu0 0.0
    %1840 = vmatpush1.msra.mxu0 0.0
    %1841 = vmatprep.subr.mxu0 0.0
    %1842 = vmatpush1.msra.mxu0 0.0
    %1843 = vmatprep.subr.mxu0 0.0
    %1844 = vmatpush1.msra.mxu0 0.0
    %1845 = vmatprep.subr.mxu0 0.0
    %1846 = vmatpush1.msra.mxu0 0.0
    %1847 = vmatprep.subr.mxu0 0.0
    %1848 = vmatpush1.msra.mxu0 0.0
    %1849 = vmatprep.subr.mxu0 0.0
    %1850 = vmatpush1.msra.mxu0 0.0
    %1851 = vmatprep.subr.mxu0 0.0
    %1852 = vmatpush1.msra.mxu0 0.0
    %1853 = vmatprep.subr.mxu0 0.0
    %1854 = vmatpush1.msra.mxu0 0.0
    %1855 = vmatprep.subr.mxu0 0.0
    %1856 = vmatpush1.msra.mxu0 0.0
    %1857 = vmatprep.subr.mxu0 0.0
    %1858 = vmatpush1.msra.mxu0 0.0
    %1859 = vmatprep.subr.mxu0 0.0
    %1860 = vmatpush1.msra.mxu0 0.0
    %1861 = vmatprep.subr.mxu0 0.0
    %1862 = vmatpush1.msra.mxu0 0.0
    %1863 = vmatprep.subr.mxu0 0.0
    %1864 = vmatpush1.msra.mxu0 0.0
    %1865 = vmatprep.mubr.f32.mxu0 0.0
    %1866 = vmatmul.mubr.f32.gmra.mrb[0].mxu0 %v1796
    %v1867 = vpop.f32.mrb[0].mxu0
    %v1868 = vadd.f32 0.0, %v1867
    %v1869 = vpop.f32.mrb[0].mxu0
    %1870 = vmatprep.mubr.f32.mxu0 0.0
    %1871 = vmatmul.mubr.f32.gmra.mrb[0].mxu0 %v1799
    %v1872 = vpop.f32.mrb[0].mxu0
    %v1873 = vadd.f32 0.0, %v1872
    %v1874 = vpop.f32.mrb[0].mxu0
    %1875 = vdwg.mxu0
    %s1876 = scalar_lea.vmem [#allocation11], 32
    %v1877 = vld [vmem:[%s1876] sm:$0xff]
    %v1878 = vld [vmem:[%s1876 + $0x8] sm:$0xff]
    %v1879 = vld [vmem:[%s1876 + $0x10] sm:$0xff]
    %v1880 = vld [vmem:[%s1876 + $0x18] sm:$0xff]
    %1881 = vmatprep.subr.mxu0 0.0
    %1882 = vmatpush1.msra.mxu0 %v1877
    %1883 = vmatprep.subr.mxu0 0.0
    %1884 = vmatpush1.msra.mxu0 %v1878
    %1885 = vmatprep.subr.mxu0 0.0
    %1886 = vmatpush1.msra.mxu0 %v1879
    %1887 = vmatprep.subr.mxu0 0.0
    %1888 = vmatpush1.msra.mxu0 %v1880
    %1889 = vmatprep.subr.mxu0 0.0
    %1890 = vmatpush1.msra.mxu0 0.0
    %1891 = vmatprep.subr.mxu0 0.0
    %1892 = vmatpush1.msra.mxu0 0.0
    %1893 = vmatprep.subr.mxu0 0.0
    %1894 = vmatpush1.msra.mxu0 0.0
    %1895 = vmatprep.subr.mxu0 0.0
    %1896 = vmatpush1.msra.mxu0 0.0
    %1897 = vmatprep.subr.mxu0 0.0
    %1898 = vmatpush1.msra.mxu0 0.0
    %1899 = vmatprep.subr.mxu0 0.0
    %1900 = vmatpush1.msra.mxu0 0.0
    %1901 = vmatprep.subr.mxu0 0.0
    %1902 = vmatpush1.msra.mxu0 0.0
    %1903 = vmatprep.subr.mxu0 0.0
    %1904 = vmatpush1.msra.mxu0 0.0
    %1905 = vmatprep.subr.mxu0 0.0
    %1906 = vmatpush1.msra.mxu0 0.0
    %1907 = vmatprep.subr.mxu0 0.0
    %1908 = vmatpush1.msra.mxu0 0.0
    %1909 = vmatprep.subr.mxu0 0.0
    %1910 = vmatpush1.msra.mxu0 0.0
    %1911 = vmatprep.subr.mxu0 0.0
    %1912 = vmatpush1.msra.mxu0 0.0
    %1913 = vmatprep.subr.mxu0 0.0
    %1914 = vmatpush1.msra.mxu0 0.0
    %1915 = vmatprep.subr.mxu0 0.0
    %1916 = vmatpush1.msra.mxu0 0.0
    %1917 = vmatprep.subr.mxu0 0.0
    %1918 = vmatpush1.msra.mxu0 0.0
    %1919 = vmatprep.subr.mxu0 0.0
    %1920 = vmatpush1.msra.mxu0 0.0
    %1921 = vmatprep.subr.mxu0 0.0
    %1922 = vmatpush1.msra.mxu0 0.0
    %1923 = vmatprep.subr.mxu0 0.0
    %1924 = vmatpush1.msra.mxu0 0.0
    %1925 = vmatprep.subr.mxu0 0.0
    %1926 = vmatpush1.msra.mxu0 0.0
    %1927 = vmatprep.subr.mxu0 0.0
    %1928 = vmatpush1.msra.mxu0 0.0
    %1929 = vmatprep.subr.mxu0 0.0
    %1930 = vmatpush1.msra.mxu0 0.0
    %1931 = vmatprep.subr.mxu0 0.0
    %1932 = vmatpush1.msra.mxu0 0.0
    %1933 = vmatprep.subr.mxu0 0.0
    %1934 = vmatpush1.msra.mxu0 0.0
    %1935 = vmatprep.subr.mxu0 0.0
    %1936 = vmatpush1.msra.mxu0 0.0
    %1937 = vmatprep.subr.mxu0 0.0
    %1938 = vmatpush1.msra.mxu0 0.0
    %1939 = vmatprep.subr.mxu0 0.0
    %1940 = vmatpush1.msra.mxu0 0.0
    %1941 = vmatprep.subr.mxu0 0.0
    %1942 = vmatpush1.msra.mxu0 0.0
    %1943 = vmatprep.subr.mxu0 0.0
    %1944 = vmatpush1.msra.mxu0 0.0
    %1945 = vmatprep.mubr.f32.mxu0 0.0
    %1946 = vmatmul.mubr.f32.gmra.mrb[0].mxu0 %v1796
    %v1947 = vpop.f32.mrb[0].mxu0
    %v1948 = vadd.f32 0.0, %v1947
    %v1949 = vpop.f32.mrb[0].mxu0
    %1950 = vmatprep.mubr.f32.mxu0 0.0
    %1951 = vmatmul.mubr.f32.gmra.mrb[0].mxu0 %v1799
    %v1952 = vpop.f32.mrb[0].mxu0
    %v1953 = vadd.f32 0.0, %v1952
    %v1954 = vpop.f32.mrb[0].mxu0
    %1955 = vdwg.mxu0
    %s1956 = scalar_lea.vmem [#allocation13], 32
    %v1957 = vld [vmem:[%s1956] sm:$0xff]
    %v1958 = vld [vmem:[%s1956 + $0x8] sm:$0xff]
    %v1959 = vld [vmem:[%s1956 + $0x10] sm:$0xff]
    %v1960 = vld [vmem:[%s1956 + $0x18] sm:$0xff]
    %1961 = vmatprep.subr.mxu0 0.0
    %1962 = vmatpush1.msra.mxu0 %v1957
    %1963 = vmatprep.subr.mxu0 0.0
    %1964 = vmatpush1.msra.mxu0 %v1958
    %1965 = vmatprep.subr.mxu0 0.0
    %1966 = vmatpush1.msra.mxu0 %v1959
    %1967 = vmatprep.subr.mxu0 0.0
    %1968 = vmatpush1.msra.mxu0 %v1960
    %1969 = vmatprep.subr.mxu0 0.0
    %1970 = vmatpush1.msra.mxu0 0.0
    %1971 = vmatprep.subr.mxu0 0.0
    %1972 = vmatpush1.msra.mxu0 0.0
    %1973 = vmatprep.subr.mxu0 0.0
    %1974 = vmatpush1.msra.mxu0 0.0
    %1975 = vmatprep.subr.mxu0 0.0
    %1976 = vmatpush1.msra.mxu0 0.0
    %1977 = vmatprep.subr.mxu0 0.0
    %1978 = vmatpush1.msra.mxu0 0.0
    %1979 = vmatprep.subr.mxu0 0.0
    %1980 = vmatpush1.msra.mxu0 0.0
    %1981 = vmatprep.subr.mxu0 0.0
    %1982 = vmatpush1.msra.mxu0 0.0
    %1983 = vmatprep.subr.mxu0 0.0
    %1984 = vmatpush1.msra.mxu0 0.0
    %1985 = vmatprep.subr.mxu0 0.0
    %1986 = vmatpush1.msra.mxu0 0.0
    %1987 = vmatprep.subr.mxu0 0.0
    %1988 = vmatpush1.msra.mxu0 0.0
    %1989 = vmatprep.subr.mxu0 0.0
    %1990 = vmatpush1.msra.mxu0 0.0
    %1991 = vmatprep.subr.mxu0 0.0
    %1992 = vmatpush1.msra.mxu0 0.0
    %1993 = vmatprep.subr.mxu0 0.0
    %1994 = vmatpush1.msra.mxu0 0.0
    %1995 = vmatprep.subr.mxu0 0.0
    %1996 = vmatpush1.msra.mxu0 0.0
    %1997 = vmatprep.subr.mxu0 0.0
    %1998 = vmatpush1.msra.mxu0 0.0
    %1999 = vmatprep.subr.mxu0 0.0
    %2000 = vmatpush1.msra.mxu0 0.0
    %2001 = vmatprep.subr.mxu0 0.0
    %2002 = vmatpush1.msra.mxu0 0.0
    %2003 = vmatprep.subr.mxu0 0.0
    %2004 = vmatpush1.msra.mxu0 0.0
    %2005 = vmatprep.subr.mxu0 0.0
    %2006 = vmatpush1.msra.mxu0 0.0
    %2007 = vmatprep.subr.mxu0 0.0
    %2008 = vmatpush1.msra.mxu0 0.0
    %2009 = vmatprep.subr.mxu0 0.0
    %2010 = vmatpush1.msra.mxu0 0.0
    %2011 = vmatprep.subr.mxu0 0.0
    %2012 = vmatpush1.msra.mxu0 0.0
    %2013 = vmatprep.subr.mxu0 0.0
    %2014 = vmatpush1.msra.mxu0 0.0
    %2015 = vmatprep.subr.mxu0 0.0
    %2016 = vmatpush1.msra.mxu0 0.0
    %2017 = vmatprep.subr.mxu0 0.0
    %2018 = vmatpush1.msra.mxu0 0.0
    %2019 = vmatprep.subr.mxu0 0.0
    %2020 = vmatpush1.msra.mxu0 0.0
    %2021 = vmatprep.subr.mxu0 0.0
    %2022 = vmatpush1.msra.mxu0 0.0
    %2023 = vmatprep.subr.mxu0 0.0
    %2024 = vmatpush1.msra.mxu0 0.0
    %2025 = vmatprep.mubr.f32.mxu0 0.0
    %2026 = vmatmul.mubr.f32.gmra.mrb[0].mxu0 %v1796
    %v2027 = vpop.f32.mrb[0].mxu0
    %v2028 = vadd.f32 0.0, %v2027
    %v2029 = vpop.f32.mrb[0].mxu0
    %2030 = vmatprep.mubr.f32.mxu0 0.0
    %2031 = vmatmul.mubr.f32.gmra.mrb[0].mxu0 %v1799
    %v2032 = vpop.f32.mrb[0].mxu0
    %v2033 = vadd.f32 0.0, %v2032
    %v2034 = vpop.f32.mrb[0].mxu0
    %2035 = vdwg.mxu0
    %v2036 = vmul.f32 %v1948, %v279
    %v2037 = vmul.f32 %v1953, %v280
    %v2038 = vmul.f32 %v1948, %v281
    %v2039 = vmul.f32 %v1953, %v282
    %v2040 = vmul.f32 %v1948, %v283
    %v2041 = vmul.f32 %v1953, %v284
    %v2042 = vmul.f32 %v1948, %v285
    %v2043 = vmul.f32 %v1953, %v286
    %v2045 = vsel %vm304, %v1868, 0
    %v2048 = vsel %vm304, %v1873, 0
    %v2051 = vsel %vm304, %v2036, 0
    %v2054 = vsel %vm304, %v2037, 0
    %v2057 = vsel %vm304, %v2038, 0
    %v2060 = vsel %vm304, %v2039, 0
    %v2063 = vsel %vm304, %v2040, 0
    %v2066 = vsel %vm304, %v2041, 0
    %v2069 = vsel %vm304, %v2042, 0
    %v2072 = vsel %vm304, %v2043, 0
    %2074 = vmatprep.subr.mxu0 0.0
    %2075 = vmatpush1.xpose.msra.mxu0 %v2051
    %2076 = vmatprep.subr.mxu0 0.0
    %2077 = vmatpush1.xpose.msra.mxu0 %v2054
    %2078 = vmatprep.subr.mxu0 0.0
    %2079 = vmatpush1.xpose.msra.mxu0 %v2057
    %2080 = vmatprep.subr.mxu0 0.0
    %2081 = vmatpush1.xpose.msra.mxu0 %v2060
    %2082 = vmatprep.subr.mxu0 0.0
    %2083 = vmatpush1.xpose.msra.mxu0 %v2063
    %2084 = vmatprep.subr.mxu0 0.0
    %2085 = vmatpush1.xpose.msra.mxu0 %v2066
    %2086 = vmatprep.subr.mxu0 0.0
    %2087 = vmatpush1.xpose.msra.mxu0 %v2069
    %2088 = vmatprep.subr.mxu0 0.0
    %2089 = vmatpush1.xpose.msra.mxu0 %v2072
    %2090 = vmatprep.subr.mxu0 0.0
    %2091 = vmatpush1.xpose.msra.mxu0 0.0
    %2092 = vmatprep.subr.mxu0 0.0
    %2093 = vmatpush1.xpose.msra.mxu0 0.0
    %2094 = vmatprep.subr.mxu0 0.0
    %2095 = vmatpush1.xpose.msra.mxu0 0.0
    %2096 = vmatprep.subr.mxu0 0.0
    %2097 = vmatpush1.xpose.msra.mxu0 0.0
    %2098 = vmatprep.subr.mxu0 0.0
    %2099 = vmatpush1.xpose.msra.mxu0 0.0
    %2100 = vmatprep.subr.mxu0 0.0
    %2101 = vmatpush1.xpose.msra.mxu0 0.0
    %2102 = vmatprep.subr.mxu0 0.0
    %2103 = vmatpush1.xpose.msra.mxu0 0.0
    %2104 = vmatprep.subr.mxu0 0.0
    %2105 = vmatpush1.xpose.msra.mxu0 0.0
    %2106 = vmatprep.subr.mxu0 0.0
    %2107 = vmatpush1.xpose.msra.mxu0 0.0
    %2108 = vmatprep.subr.mxu0 0.0
    %2109 = vmatpush1.xpose.msra.mxu0 0.0
    %2110 = vmatprep.subr.mxu0 0.0
    %2111 = vmatpush1.xpose.msra.mxu0 0.0
    %2112 = vmatprep.subr.mxu0 0.0
    %2113 = vmatpush1.xpose.msra.mxu0 0.0
    %2114 = vmatprep.subr.mxu0 0.0
    %2115 = vmatpush1.xpose.msra.mxu0 0.0
    %2116 = vmatprep.subr.mxu0 0.0
    %2117 = vmatpush1.xpose.msra.mxu0 0.0
    %2118 = vmatprep.subr.mxu0 0.0
    %2119 = vmatpush1.xpose.msra.mxu0 0.0
    %2120 = vmatprep.subr.mxu0 0.0
    %2121 = vmatpush1.xpose.msra.mxu0 0.0
    %2122 = vmatprep.subr.mxu0 0.0
    %2123 = vmatpush1.xpose.msra.mxu0 0.0
    %2124 = vmatprep.subr.mxu0 0.0
    %2125 = vmatpush1.xpose.msra.mxu0 0.0
    %2126 = vmatprep.subr.mxu0 0.0
    %2127 = vmatpush1.xpose.msra.mxu0 0.0
    %2128 = vmatprep.subr.mxu0 0.0
    %2129 = vmatpush1.xpose.msra.mxu0 0.0
    %2130 = vmatprep.subr.mxu0 0.0
    %2131 = vmatpush1.xpose.msra.mxu0 0.0
    %2132 = vmatprep.subr.mxu0 0.0
    %2133 = vmatpush1.xpose.msra.mxu0 0.0
    %2134 = vmatprep.subr.mxu0 0.0
    %2135 = vmatpush1.xpose.msra.mxu0 0.0
    %2136 = vmatprep.subr.mxu0 0.0
    %2137 = vmatpush1.xpose.msra.mxu0 0.0
    %2138 = vmatprep.mubr.f32.mxu0 0.0
    %2139 = vmatmul.mubr.f32.gmra.mrb[0].mxu0 %v2045
    %v2140 = vpop.f32.mrb[0].mxu0
    %v2141 = vadd.f32 %v277, %v2140
    %v2142 = vpop.f32.mrb[0].mxu0
    %2143 = vmatprep.mubr.f32.mxu0 0.0
    %2144 = vmatmul.mubr.f32.gmra.mrb[0].mxu0 %v2048
    %v2145 = vpop.f32.mrb[0].mxu0
    %v2146 = vadd.f32 %v278, %v2145
    %v2147 = vpop.f32.mrb[0].mxu0
    %2148 = vdwg.mxu0
    %v2149 = vsel %vm657, %v2141, -inf
    %2150 = vmax.xlane.f32.xlu0 %v2149
    %v2151 = vpop.xlane.xlu0 %2150
    %v2152 = vsel %vm657, %v2146, -inf
    %2153 = vmax.xlane.f32.xlu0 %v2152
    %v2154 = vpop.xlane.xlu0 %2153
    %v2155 = vsub.f32 %v2141, %v2151
    %v2156 = vsub.f32 %v2146, %v2154
    %v2157 = vmul.f32 %v2155, 1.442695
    %v2158 = vpow.pop %v2157
    %v2159 = vmul.f32 %v2156, 1.442695
    %v2160 = vpow.pop %v2159
    %v2162 = vsel %vm657, %v2158, 0
    %v2165 = vsel %vm657, %v2160, 0
    %2167 = vmatprep.subr.mxu0 0.0
    %2168 = vmatpush1.msra.mxu0 %v291
    %2169 = vmatprep.subr.mxu0 0.0
    %2170 = vmatpush1.msra.mxu0 %v292
    %2171 = vmatprep.subr.mxu0 0.0
    %2172 = vmatpush1.msra.mxu0 %v293
    %2173 = vmatprep.subr.mxu0 0.0
    %2174 = vmatpush1.msra.mxu0 %v294
    %2175 = vmatprep.subr.mxu0 0.0
    %2176 = vmatpush1.msra.mxu0 %v295
    %2177 = vmatprep.subr.mxu0 0.0
    %2178 = vmatpush1.msra.mxu0 %v296
    %2179 = vmatprep.subr.mxu0 0.0
    %2180 = vmatpush1.msra.mxu0 %v297
    %2181 = vmatprep.subr.mxu0 0.0
    %2182 = vmatpush1.msra.mxu0 %v298
    %2183 = vmatprep.subr.mxu0 0.0
    %2184 = vmatpush1.msra.mxu0 0.0
    %2185 = vmatprep.subr.mxu0 0.0
    %2186 = vmatpush1.msra.mxu0 0.0
    %2187 = vmatprep.subr.mxu0 0.0
    %2188 = vmatpush1.msra.mxu0 0.0
    %2189 = vmatprep.subr.mxu0 0.0
    %2190 = vmatpush1.msra.mxu0 0.0
    %2191 = vmatprep.subr.mxu0 0.0
    %2192 = vmatpush1.msra.mxu0 0.0
    %2193 = vmatprep.subr.mxu0 0.0
    %2194 = vmatpush1.msra.mxu0 0.0
    %2195 = vmatprep.subr.mxu0 0.0
    %2196 = vmatpush1.msra.mxu0 0.0
    %2197 = vmatprep.subr.mxu0 0.0
    %2198 = vmatpush1.msra.mxu0 0.0
    %2199 = vmatprep.subr.mxu0 0.0
    %2200 = vmatpush1.msra.mxu0 0.0
    %2201 = vmatprep.subr.mxu0 0.0
    %2202 = vmatpush1.msra.mxu0 0.0
    %2203 = vmatprep.subr.mxu0 0.0
    %2204 = vmatpush1.msra.mxu0 0.0
    %2205 = vmatprep.subr.mxu0 0.0
    %2206 = vmatpush1.msra.mxu0 0.0
    %2207 = vmatprep.subr.mxu0 0.0
    %2208 = vmatpush1.msra.mxu0 0.0
    %2209 = vmatprep.subr.mxu0 0.0
    %2210 = vmatpush1.msra.mxu0 0.0
    %2211 = vmatprep.subr.mxu0 0.0
    %2212 = vmatpush1.msra.mxu0 0.0
    %2213 = vmatprep.subr.mxu0 0.0
    %2214 = vmatpush1.msra.mxu0 0.0
    %2215 = vmatprep.subr.mxu0 0.0
    %2216 = vmatpush1.msra.mxu0 0.0
    %2217 = vmatprep.subr.mxu0 0.0
    %2218 = vmatpush1.msra.mxu0 0.0
    %2219 = vmatprep.subr.mxu0 0.0
    %2220 = vmatpush1.msra.mxu0 0.0
    %2221 = vmatprep.subr.mxu0 0.0
    %2222 = vmatpush1.msra.mxu0 0.0
    %2223 = vmatprep.subr.mxu0 0.0
    %2224 = vmatpush1.msra.mxu0 0.0
    %2225 = vmatprep.subr.mxu0 0.0
    %2226 = vmatpush1.msra.mxu0 0.0
    %2227 = vmatprep.subr.mxu0 0.0
    %2228 = vmatpush1.msra.mxu0 0.0
    %2229 = vmatprep.subr.mxu0 0.0
    %2230 = vmatpush1.msra.mxu0 0.0
    %2231 = vmatprep.mubr.f32.mxu0 0.0
    %2232 = vmatmul.mubr.f32.gmra.mrb[0].mxu0 %v2162
    %v2233 = vpop.f32.mrb[0].mxu0
    %v2234 = vadd.f32 0.0, %v2233
    %v2235 = vpop.f32.mrb[0].mxu0
    %2236 = vmatprep.mubr.f32.mxu0 0.0
    %2237 = vmatmul.mubr.f32.gmra.mrb[0].mxu0 %v2165
    %v2238 = vpop.f32.mrb[0].mxu0
    %v2239 = vadd.f32 0.0, %v2238
    %v2240 = vpop.f32.mrb[0].mxu0
    %2241 = vdwg.mxu0
    %v2242 = vmul.f32 %v1868, %v1948
    %v2243 = vmul.f32 %v1873, %v1953
    %v2245 = vsel %vm304, %v2242, 0
    %v2248 = vsel %vm304, %v2243, 0
    %2250 = vmatprep.subr.mxu0 0.0
    %2251 = vmatpush1.msra.mxu0 %v287
    %2252 = vmatprep.subr.mxu0 0.0
    %2253 = vmatpush1.msra.mxu0 %v288
    %2254 = vmatprep.subr.mxu0 0.0
    %2255 = vmatpush1.msra.mxu0 %v289
    %2256 = vmatprep.subr.mxu0 0.0
    %2257 = vmatpush1.msra.mxu0 %v290
    %2258 = vmatprep.subr.mxu0 0.0
    %2259 = vmatpush1.msra.mxu0 0.0
    %2260 = vmatprep.subr.mxu0 0.0
    %2261 = vmatpush1.msra.mxu0 0.0
    %2262 = vmatprep.subr.mxu0 0.0
    %2263 = vmatpush1.msra.mxu0 0.0
    %2264 = vmatprep.subr.mxu0 0.0
    %2265 = vmatpush1.msra.mxu0 0.0
    %2266 = vmatprep.subr.mxu0 0.0
    %2267 = vmatpush1.msra.mxu0 0.0
    %2268 = vmatprep.subr.mxu0 0.0
    %2269 = vmatpush1.msra.mxu0 0.0
    %2270 = vmatprep.subr.mxu0 0.0
    %2271 = vmatpush1.msra.mxu0 0.0
    %2272 = vmatprep.subr.mxu0 0.0
    %2273 = vmatpush1.msra.mxu0 0.0
    %2274 = vmatprep.subr.mxu0 0.0
    %2275 = vmatpush1.msra.mxu0 0.0
    %2276 = vmatprep.subr.mxu0 0.0
    %2277 = vmatpush1.msra.mxu0 0.0
    %2278 = vmatprep.subr.mxu0 0.0
    %2279 = vmatpush1.msra.mxu0 0.0
    %2280 = vmatprep.subr.mxu0 0.0
    %2281 = vmatpush1.msra.mxu0 0.0
    %2282 = vmatprep.subr.mxu0 0.0
    %2283 = vmatpush1.msra.mxu0 0.0
    %2284 = vmatprep.subr.mxu0 0.0
    %2285 = vmatpush1.msra.mxu0 0.0
    %2286 = vmatprep.subr.mxu0 0.0
    %2287 = vmatpush1.msra.mxu0 0.0
    %2288 = vmatprep.subr.mxu0 0.0
    %2289 = vmatpush1.msra.mxu0 0.0
    %2290 = vmatprep.subr.mxu0 0.0
    %2291 = vmatpush1.msra.mxu0 0.0
    %2292 = vmatprep.subr.mxu0 0.0
    %2293 = vmatpush1.msra.mxu0 0.0
    %2294 = vmatprep.subr.mxu0 0.0
    %2295 = vmatpush1.msra.mxu0 0.0
    %2296 = vmatprep.subr.mxu0 0.0
    %2297 = vmatpush1.msra.mxu0 0.0
    %2298 = vmatprep.subr.mxu0 0.0
    %2299 = vmatpush1.msra.mxu0 0.0
    %2300 = vmatprep.subr.mxu0 0.0
    %2301 = vmatpush1.msra.mxu0 0.0
    %2302 = vmatprep.subr.mxu0 0.0
    %2303 = vmatpush1.msra.mxu0 0.0
    %2304 = vmatprep.subr.mxu0 0.0
    %2305 = vmatpush1.msra.mxu0 0.0
    %2306 = vmatprep.subr.mxu0 0.0
    %2307 = vmatpush1.msra.mxu0 0.0
    %2308 = vmatprep.subr.mxu0 0.0
    %2309 = vmatpush1.msra.mxu0 0.0
    %2310 = vmatprep.subr.mxu0 0.0
    %2311 = vmatpush1.msra.mxu0 0.0
    %2312 = vmatprep.subr.mxu0 0.0
    %2313 = vmatpush1.msra.mxu0 0.0
    %2314 = vmatprep.mubr.f32.mxu0 0.0
    %2315 = vmatmul.mubr.f32.gmra.mrb[0].mxu0 %v2245
    %v2316 = vpop.f32.mrb[0].mxu0
    %v2317 = vadd.f32 0.0, %v2316
    %v2318 = vpop.f32.mrb[0].mxu0
    %2319 = vmatprep.mubr.f32.mxu0 0.0
    %2320 = vmatmul.mubr.f32.gmra.mrb[0].mxu0 %v2248
    %v2321 = vpop.f32.mrb[0].mxu0
    %v2322 = vadd.f32 0.0, %v2321
    %v2323 = vpop.f32.mrb[0].mxu0
    %2324 = vdwg.mxu0
    %v2325 = vsub.f32 %v2317, %v2151
    %v2326 = vsub.f32 %v2322, %v2154
    %v2327 = vmul.f32 %v2325, 1.442695
    %v2328 = vpow.pop %v2327
    %v2329 = vmul.f32 %v2326, 1.442695
    %v2330 = vpow.pop %v2329
    %v2331 = vrcp.pop %v2234
    %v2332 = vmul.f32 %v2328, %v2331
    %v2333 = vrcp.pop %v2239
    %v2334 = vmul.f32 %v2330, %v2333
    %v2335 = vmul.f32 %v2332, %v2028
    %v2336 = vmul.f32 %v2334, %v2033
    %s2337 = scalar_lea.vmem [#allocation14], 32
    %v2338 = vld [vmem:[%s2337] sm:$0xff]
    %v2339 = vld [vmem:[%s2337 + $0x8] sm:$0xff]
    %v2340 = vld [vmem:[%s2337 + $0x10] sm:$0xff]
    %v2341 = vld [vmem:[%s2337 + $0x18] sm:$0xff]
    %v2342 = vlaneseq
    %v2343 = vshrl.u32 %v2342, 7
    %v2344 = vsub.s32 0, %v2343
    %v2345 = vrot.slane %v1789, %v2344
    %v2347 = vsel %vm304, %v2335, 0
    %v2350 = vsel %vm304, %v2336, 0
    %2352 = vmatprep.subr.mxu0 0.0
    %2353 = vmatpush1.msra.mxu0 %v2338
    %2354 = vmatprep.subr.mxu0 0.0
    %2355 = vmatpush1.msra.mxu0 %v2339
    %2356 = vmatprep.subr.mxu0 0.0
    %2357 = vmatpush1.msra.mxu0 %v2340
    %2358 = vmatprep.subr.mxu0 0.0
    %2359 = vmatpush1.msra.mxu0 %v2341
    %2360 = vmatprep.subr.mxu0 0.0
    %2361 = vmatpush1.msra.mxu0 0.0
    %2362 = vmatprep.subr.mxu0 0.0
    %2363 = vmatpush1.msra.mxu0 0.0
    %2364 = vmatprep.subr.mxu0 0.0
    %2365 = vmatpush1.msra.mxu0 0.0
    %2366 = vmatprep.subr.mxu0 0.0
    %2367 = vmatpush1.msra.mxu0 0.0
    %2368 = vmatprep.subr.mxu0 0.0
    %2369 = vmatpush1.msra.mxu0 0.0
    %2370 = vmatprep.subr.mxu0 0.0
    %2371 = vmatpush1.msra.mxu0 0.0
    %2372 = vmatprep.subr.mxu0 0.0
    %2373 = vmatpush1.msra.mxu0 0.0
    %2374 = vmatprep.subr.mxu0 0.0
    %2375 = vmatpush1.msra.mxu0 0.0
    %2376 = vmatprep.subr.mxu0 0.0
    %2377 = vmatpush1.msra.mxu0 0.0
    %2378 = vmatprep.subr.mxu0 0.0
    %2379 = vmatpush1.msra.mxu0 0.0
    %2380 = vmatprep.subr.mxu0 0.0
    %2381 = vmatpush1.msra.mxu0 0.0
    %2382 = vmatprep.subr.mxu0 0.0
    %2383 = vmatpush1.msra.mxu0 0.0
    %2384 = vmatprep.subr.mxu0 0.0
    %2385 = vmatpush1.msra.mxu0 0.0
    %2386 = vmatprep.subr.mxu0 0.0
    %2387 = vmatpush1.msra.mxu0 0.0
    %2388 = vmatprep.subr.mxu0 0.0
    %2389 = vmatpush1.msra.mxu0 0.0
    %2390 = vmatprep.subr.mxu0 0.0
    %2391 = vmatpush1.msra.mxu0 0.0
    %2392 = vmatprep.subr.mxu0 0.0
    %2393 = vmatpush1.msra.mxu0 0.0
    %2394 = vmatprep.subr.mxu0 0.0
    %2395 = vmatpush1.msra.mxu0 0.0
    %2396 = vmatprep.subr.mxu0 0.0
    %2397 = vmatpush1.msra.mxu0 0.0
    %2398 = vmatprep.subr.mxu0 0.0
    %2399 = vmatpush1.msra.mxu0 0.0
    %2400 = vmatprep.subr.mxu0 0.0
    %2401 = vmatpush1.msra.mxu0 0.0
    %2402 = vmatprep.subr.mxu0 0.0
    %2403 = vmatpush1.msra.mxu0 0.0
    %2404 = vmatprep.subr.mxu0 0.0
    %2405 = vmatpush1.msra.mxu0 0.0
    %2406 = vmatprep.subr.mxu0 0.0
    %2407 = vmatpush1.msra.mxu0 0.0
    %2408 = vmatprep.subr.mxu0 0.0
    %2409 = vmatpush1.msra.mxu0 0.0
    %2410 = vmatprep.subr.mxu0 0.0
    %2411 = vmatpush1.msra.mxu0 0.0
    %2412 = vmatprep.subr.mxu0 0.0
    %2413 = vmatpush1.msra.mxu0 0.0
    %2414 = vmatprep.subr.mxu0 0.0
    %2415 = vmatpush1.msra.mxu0 0.0
    %2416 = vmatprep.mubr.f32.mxu0 0.0
    %2417 = vmatmul.mubr.f32.gmra.mrb[0].mxu0 %v2347
    %v2418 = vpop.f32.mrb[0].mxu0
    %v2419 = vadd.f32 %v2345, %v2418
    %v2420 = vpop.f32.mrb[0].mxu0
    %2421 = vmatprep.mubr.f32.mxu0 0.0
    %2422 = vmatmul.mubr.f32.gmra.mrb[0].mxu0 %v2350
    %v2423 = vpop.f32.mrb[0].mxu0
    %v2424 = vadd.f32 %v2345, %v2423
    %v2425 = vpop.f32.mrb[0].mxu0
    %2426 = vdwg.mxu0
    %v2427 = vadd.f32 %v2419, %v269
    %v2428 = vadd.f32 %v2424, %v274
    %v2429 = vsel %vm304, %v2427, 0.0
    %2430 = vadd.xlane.f32.xlu0 %v2429
    %v2431 = vpop.xlane.xlu0 %2430
    %v2432 = vsel %vm304, %v2428, 0.0
    %2433 = vadd.xlane.f32.xlu0 %v2432
    %v2434 = vpop.xlane.xlu0 %2433
    %v2435 = vmul.f32 %v2431, %v943
    %v2436 = vmul.f32 %v2434, %v943
    %v2437 = vsub.f32 %v2427, %v2435
    %v2438 = vsub.f32 %v2428, %v2436
    %v2439 = vmul.f32 %v2437, %v2437
    %v2440 = vmul.f32 %v2438, %v2438
    %v2441 = vsel %vm304, %v2439, 0.0
    %2442 = vadd.xlane.f32.xlu0 %v2441
    %v2443 = vpop.xlane.xlu0 %2442
    %v2444 = vsel %vm304, %v2440, 0.0
    %2445 = vadd.xlane.f32.xlu0 %v2444
    %v2446 = vpop.xlane.xlu0 %2445
    %v2447 = vmul.f32 %v2443, %v943
    %v2448 = vmul.f32 %v2446, %v943
    %v2449 = vadd.f32 %v2447, 1e-05
    %v2450 = vadd.f32 %v2448, 1e-05
    %v2451 = vrsqrt.pop %v2449
    %v2452 = vrsqrt.pop %v2450
    %v2453 = vmul.f32 %v2437, %v2451
    %v2454 = vmul.f32 %v2438, %v2452
    %v2455 = vlaneseq
    %v2456 = vshrl.u32 %v2455, 7
    %v2457 = vsub.s32 1, %v2456
    %v2458 = vrot.slane %v1789, %v2457
    %v2459 = vmul.f32 %v2453, %v2458
    %v2460 = vmul.f32 %v2454, %v2458
    %v2461 = vlaneseq
    %v2462 = vshrl.u32 %v2461, 7
    %v2463 = vsub.s32 2, %v2462
    %v2464 = vrot.slane %v1789, %v2463
    %v2465 = vadd.f32 %v2459, %v2464
    %v2466 = vadd.f32 %v2460, %v2464
    %s2467 = scalar_lea.vmem %s13, 128
    %v2468 = vld [vmem:[%s2467] sm:$0xff]
    %v2469 = vld [vmem:[%s2467 + $0x8] sm:$0xff]
    %v2470 = vld [vmem:[%s2467 + $0x10] sm:$0xff]
    %v2471 = vld [vmem:[%s2467 + $0x18] sm:$0xff]
    %v2472 = vld [vmem:[%s2467 + $0x20] sm:$0xff]
    %v2473 = vld [vmem:[%s2467 + $0x28] sm:$0xff]
    %v2474 = vld [vmem:[%s2467 + $0x30] sm:$0xff]
    %v2475 = vld [vmem:[%s2467 + $0x38] sm:$0xff]
    %v2476 = vld [vmem:[%s2467 + $0x40] sm:$0xff]
    %v2477 = vld [vmem:[%s2467 + $0x48] sm:$0xff]
    %v2478 = vld [vmem:[%s2467 + $0x50] sm:$0xff]
    %v2479 = vld [vmem:[%s2467 + $0x58] sm:$0xff]
    %v2480 = vld [vmem:[%s2467 + $0x60] sm:$0xff]
    %v2481 = vld [vmem:[%s2467 + $0x68] sm:$0xff]
    %v2482 = vld [vmem:[%s2467 + $0x70] sm:$0xff]
    %v2483 = vld [vmem:[%s2467 + $0x78] sm:$0xff]
    %v2484 = vunpack.c.l.bf16 %v2468
    %v2485 = vunpack.c.h.bf16 %v2468
    %v2486 = vunpack.c.l.bf16 %v2469
    %v2487 = vunpack.c.h.bf16 %v2469
    %v2488 = vunpack.c.l.bf16 %v2470
    %v2489 = vunpack.c.h.bf16 %v2470
    %v2490 = vunpack.c.l.bf16 %v2471
    %v2491 = vunpack.c.h.bf16 %v2471
    %v2492 = vunpack.c.l.bf16 %v2472
    %v2493 = vunpack.c.h.bf16 %v2472
    %v2494 = vunpack.c.l.bf16 %v2473
    %v2495 = vunpack.c.h.bf16 %v2473
    %v2496 = vunpack.c.l.bf16 %v2474
    %v2497 = vunpack.c.h.bf16 %v2474
    %v2498 = vunpack.c.l.bf16 %v2475
    %v2499 = vunpack.c.h.bf16 %v2475
    %v2500 = vunpack.c.l.bf16 %v2476
    %v2501 = vunpack.c.h.bf16 %v2476
    %v2502 = vunpack.c.l.bf16 %v2477
    %v2503 = vunpack.c.h.bf16 %v2477
    %v2504 = vunpack.c.l.bf16 %v2478
    %v2505 = vunpack.c.h.bf16 %v2478
    %v2506 = vunpack.c.l.bf16 %v2479
    %v2507 = vunpack.c.h.bf16 %v2479
    %v2508 = vunpack.c.l.bf16 %v2480
    %v2509 = vunpack.c.h.bf16 %v2480
    %v2510 = vunpack.c.l.bf16 %v2481
    %v2511 = vunpack.c.h.bf16 %v2481
    %v2512 = vunpack.c.l.bf16 %v2482
    %v2513 = vunpack.c.h.bf16 %v2482
    %v2514 = vunpack.c.l.bf16 %v2483
    %v2515 = vunpack.c.h.bf16 %v2483
    %s2516 = scalar_lea.vmem %s14, 8
    %v2517 = vld [vmem:[%s2516] sm:$0xff]
    %v2519 = vlaneseq
    %v2520 = vshrl.u32 %v2519, 7
    %v2521 = vsub.s32 0, %v2520
    %v2522 = vrot.slane %v2517, %v2521
    %v2523 = vlaneseq
    %v2524 = vshrl.u32 %v2523, 7
    %v2525 = vsub.s32 1, %v2524
    %v2526 = vrot.slane %v2517, %v2525
    %v2527 = vlaneseq
    %v2528 = vshrl.u32 %v2527, 7
    %v2529 = vsub.s32 2, %v2528
    %v2530 = vrot.slane %v2517, %v2529
    %v2531 = vlaneseq
    %v2532 = vshrl.u32 %v2531, 7
    %v2533 = vsub.s32 3, %v2532
    %v2534 = vrot.slane %v2517, %v2533
    %v2535 = vlaneseq
    %v2536 = vshrl.u32 %v2535, 7
    %v2537 = vsub.s32 4, %v2536
    %v2538 = vrot.slane %v2517, %v2537
    %v2539 = vlaneseq
    %v2540 = vshrl.u32 %v2539, 7
    %v2541 = vsub.s32 5, %v2540
    %v2542 = vrot.slane %v2517, %v2541
    %v2543 = vlaneseq
    %v2544 = vshrl.u32 %v2543, 7
    %v2545 = vsub.s32 6, %v2544
    %v2546 = vrot.slane %v2517, %v2545
    %v2547 = vlaneseq
    %v2548 = vshrl.u32 %v2547, 7
    %v2549 = vsub.s32 7, %v2548
    %v2550 = vrot.slane %v2517, %v2549
    %v2560 = vsel %vm304, %v2465, 0
    %v2563 = vsel %vm304, %v2466, 0
    %2565 = vmatprep.subr.mxu0 %v2485
    %2566 = vmatpush1.msra.mxu0 %v2484
    %2567 = vmatprep.subr.mxu0 %v2493
    %2568 = vmatpush1.msra.mxu0 %v2492
    %2569 = vmatprep.subr.mxu0 %v2501
    %2570 = vmatpush1.msra.mxu0 %v2500
    %2571 = vmatprep.subr.mxu0 %v2509
    %2572 = vmatpush1.msra.mxu0 %v2508
    %2573 = vmatprep.subr.mxu0 0.0
    %2574 = vmatpush1.msra.mxu0 0.0
    %2575 = vmatprep.subr.mxu0 0.0
    %2576 = vmatpush1.msra.mxu0 0.0
    %2577 = vmatprep.subr.mxu0 0.0
    %2578 = vmatpush1.msra.mxu0 0.0
    %2579 = vmatprep.subr.mxu0 0.0
    %2580 = vmatpush1.msra.mxu0 0.0
    %2581 = vmatprep.subr.mxu0 0.0
    %2582 = vmatpush1.msra.mxu0 0.0
    %2583 = vmatprep.subr.mxu0 0.0
    %2584 = vmatpush1.msra.mxu0 0.0
    %2585 = vmatprep.subr.mxu0 0.0
    %2586 = vmatpush1.msra.mxu0 0.0
    %2587 = vmatprep.subr.mxu0 0.0
    %2588 = vmatpush1.msra.mxu0 0.0
    %2589 = vmatprep.subr.mxu0 0.0
    %2590 = vmatpush1.msra.mxu0 0.0
    %2591 = vmatprep.subr.mxu0 0.0
    %2592 = vmatpush1.msra.mxu0 0.0
    %2593 = vmatprep.subr.mxu0 0.0
    %2594 = vmatpush1.msra.mxu0 0.0
    %2595 = vmatprep.subr.mxu0 0.0
    %2596 = vmatpush1.msra.mxu0 0.0
    %2597 = vmatprep.subr.mxu0 0.0
    %2598 = vmatpush1.msra.mxu0 0.0
    %2599 = vmatprep.subr.mxu0 0.0
    %2600 = vmatpush1.msra.mxu0 0.0
    %2601 = vmatprep.subr.mxu0 0.0
    %2602 = vmatpush1.msra.mxu0 0.0
    %2603 = vmatprep.subr.mxu0 0.0
    %2604 = vmatpush1.msra.mxu0 0.0
    %2605 = vmatprep.subr.mxu0 0.0
    %2606 = vmatpush1.msra.mxu0 0.0
    %2607 = vmatprep.subr.mxu0 0.0
    %2608 = vmatpush1.msra.mxu0 0.0
    %2609 = vmatprep.subr.mxu0 0.0
    %2610 = vmatpush1.msra.mxu0 0.0
    %2611 = vmatprep.subr.mxu0 0.0
    %2612 = vmatpush1.msra.mxu0 0.0
    %2613 = vmatprep.subr.mxu0 0.0
    %2614 = vmatpush1.msra.mxu0 0.0
    %2615 = vmatprep.subr.mxu0 0.0
    %2616 = vmatpush1.msra.mxu0 0.0
    %2617 = vmatprep.subr.mxu0 0.0
    %2618 = vmatpush1.msra.mxu0 0.0
    %2619 = vmatprep.subr.mxu0 0.0
    %2620 = vmatpush1.msra.mxu0 0.0
    %2621 = vmatprep.subr.mxu0 0.0
    %2622 = vmatpush1.msra.mxu0 0.0
    %2623 = vmatprep.subr.mxu0 0.0
    %2624 = vmatpush1.msra.mxu0 0.0
    %2625 = vmatprep.subr.mxu0 0.0
    %2626 = vmatpush1.msra.mxu0 0.0
    %2627 = vmatprep.subr.mxu0 0.0
    %2628 = vmatpush1.msra.mxu0 0.0
    %2629 = vmatprep.mubr.f32.mxu0 0.0
    %2630 = vmatmul.mubr.f32.gmra.mrb[0].mxu0 %v2560
    %v2631 = vpop.f32.mrb[0].mxu0
    %v2632 = vadd.f32 %v2522, %v2631
    %v2633 = vpop.f32.mrb[0].mxu0
    %v2634 = vadd.f32 %v2526, %v2633
    %2635 = vmatprep.mubr.f32.mxu0 0.0
    %2636 = vmatmul.mubr.f32.gmra.mrb[0].mxu0 %v2563
    %v2637 = vpop.f32.mrb[0].mxu0
    %v2638 = vadd.f32 %v2522, %v2637
    %v2639 = vpop.f32.mrb[0].mxu0
    %v2640 = vadd.f32 %v2526, %v2639
    %2641 = vdwg.mxu0
    %2642 = vmatprep.subr.mxu0 %v2487
    %2643 = vmatpush1.msra.mxu0 %v2486
    %2644 = vmatprep.subr.mxu0 %v2495
    %2645 = vmatpush1.msra.mxu0 %v2494
    %2646 = vmatprep.subr.mxu0 %v2503
    %2647 = vmatpush1.msra.mxu0 %v2502
    %2648 = vmatprep.subr.mxu0 %v2511
    %2649 = vmatpush1.msra.mxu0 %v2510
    %2650 = vmatprep.subr.mxu0 0.0
    %2651 = vmatpush1.msra.mxu0 0.0
    %2652 = vmatprep.subr.mxu0 0.0
    %2653 = vmatpush1.msra.mxu0 0.0
    %2654 = vmatprep.subr.mxu0 0.0
    %2655 = vmatpush1.msra.mxu0 0.0
    %2656 = vmatprep.subr.mxu0 0.0
    %2657 = vmatpush1.msra.mxu0 0.0
    %2658 = vmatprep.subr.mxu0 0.0
    %2659 = vmatpush1.msra.mxu0 0.0
    %2660 = vmatprep.subr.mxu0 0.0
    %2661 = vmatpush1.msra.mxu0 0.0
    %2662 = vmatprep.subr.mxu0 0.0
    %2663 = vmatpush1.msra.mxu0 0.0
    %2664 = vmatprep.subr.mxu0 0.0
    %2665 = vmatpush1.msra.mxu0 0.0
    %2666 = vmatprep.subr.mxu0 0.0
    %2667 = vmatpush1.msra.mxu0 0.0
    %2668 = vmatprep.subr.mxu0 0.0
    %2669 = vmatpush1.msra.mxu0 0.0
    %2670 = vmatprep.subr.mxu0 0.0
    %2671 = vmatpush1.msra.mxu0 0.0
    %2672 = vmatprep.subr.mxu0 0.0
    %2673 = vmatpush1.msra.mxu0 0.0
    %2674 = vmatprep.subr.mxu0 0.0
    %2675 = vmatpush1.msra.mxu0 0.0
    %2676 = vmatprep.subr.mxu0 0.0
    %2677 = vmatpush1.msra.mxu0 0.0
    %2678 = vmatprep.subr.mxu0 0.0
    %2679 = vmatpush1.msra.mxu0 0.0
    %2680 = vmatprep.subr.mxu0 0.0
    %2681 = vmatpush1.msra.mxu0 0.0
    %2682 = vmatprep.subr.mxu0 0.0
    %2683 = vmatpush1.msra.mxu0 0.0
    %2684 = vmatprep.subr.mxu0 0.0
    %2685 = vmatpush1.msra.mxu0 0.0
    %2686 = vmatprep.subr.mxu0 0.0
    %2687 = vmatpush1.msra.mxu0 0.0
    %2688 = vmatprep.subr.mxu0 0.0
    %2689 = vmatpush1.msra.mxu0 0.0
    %2690 = vmatprep.subr.mxu0 0.0
    %2691 = vmatpush1.msra.mxu0 0.0
    %2692 = vmatprep.subr.mxu0 0.0
    %2693 = vmatpush1.msra.mxu0 0.0
    %2694 = vmatprep.subr.mxu0 0.0
    %2695 = vmatpush1.msra.mxu0 0.0
    %2696 = vmatprep.subr.mxu0 0.0
    %2697 = vmatpush1.msra.mxu0 0.0
    %2698 = vmatprep.subr.mxu0 0.0
    %2699 = vmatpush1.msra.mxu0 0.0
    %2700 = vmatprep.subr.mxu0 0.0
    %2701 = vmatpush1.msra.mxu0 0.0
    %2702 = vmatprep.subr.mxu0 0.0
    %2703 = vmatpush1.msra.mxu0 0.0
    %2704 = vmatprep.subr.mxu0 0.0
    %2705 = vmatpush1.msra.mxu0 0.0
    %2706 = vmatprep.mubr.f32.mxu0 0.0
    %2707 = vmatmul.mubr.f32.gmra.mrb[0].mxu0 %v2560
    %v2708 = vpop.f32.mrb[0].mxu0
    %v2709 = vadd.f32 %v2530, %v2708
    %v2710 = vpop.f32.mrb[0].mxu0
    %v2711 = vadd.f32 %v2534, %v2710
    %2712 = vmatprep.mubr.f32.mxu0 0.0
    %2713 = vmatmul.mubr.f32.gmra.mrb[0].mxu0 %v2563
    %v2714 = vpop.f32.mrb[0].mxu0
    %v2715 = vadd.f32 %v2530, %v2714
    %v2716 = vpop.f32.mrb[0].mxu0
    %v2717 = vadd.f32 %v2534, %v2716
    %2718 = vdwg.mxu0
    %2719 = vmatprep.subr.mxu0 %v2489
    %2720 = vmatpush1.msra.mxu0 %v2488
    %2721 = vmatprep.subr.mxu0 %v2497
    %2722 = vmatpush1.msra.mxu0 %v2496
    %2723 = vmatprep.subr.mxu0 %v2505
    %2724 = vmatpush1.msra.mxu0 %v2504
    %2725 = vmatprep.subr.mxu0 %v2513
    %2726 = vmatpush1.msra.mxu0 %v2512
    %2727 = vmatprep.subr.mxu0 0.0
    %2728 = vmatpush1.msra.mxu0 0.0
    %2729 = vmatprep.subr.mxu0 0.0
    %2730 = vmatpush1.msra.mxu0 0.0
    %2731 = vmatprep.subr.mxu0 0.0
    %2732 = vmatpush1.msra.mxu0 0.0
    %2733 = vmatprep.subr.mxu0 0.0
    %2734 = vmatpush1.msra.mxu0 0.0
    %2735 = vmatprep.subr.mxu0 0.0
    %2736 = vmatpush1.msra.mxu0 0.0
    %2737 = vmatprep.subr.mxu0 0.0
    %2738 = vmatpush1.msra.mxu0 0.0
    %2739 = vmatprep.subr.mxu0 0.0
    %2740 = vmatpush1.msra.mxu0 0.0
    %2741 = vmatprep.subr.mxu0 0.0
    %2742 = vmatpush1.msra.mxu0 0.0
    %2743 = vmatprep.subr.mxu0 0.0
    %2744 = vmatpush1.msra.mxu0 0.0
    %2745 = vmatprep.subr.mxu0 0.0
    %2746 = vmatpush1.msra.mxu0 0.0
    %2747 = vmatprep.subr.mxu0 0.0
    %2748 = vmatpush1.msra.mxu0 0.0
    %2749 = vmatprep.subr.mxu0 0.0
    %2750 = vmatpush1.msra.mxu0 0.0
    %2751 = vmatprep.subr.mxu0 0.0
    %2752 = vmatpush1.msra.mxu0 0.0
    %2753 = vmatprep.subr.mxu0 0.0
    %2754 = vmatpush1.msra.mxu0 0.0
    %2755 = vmatprep.subr.mxu0 0.0
    %2756 = vmatpush1.msra.mxu0 0.0
    %2757 = vmatprep.subr.mxu0 0.0
    %2758 = vmatpush1.msra.mxu0 0.0
    %2759 = vmatprep.subr.mxu0 0.0
    %2760 = vmatpush1.msra.mxu0 0.0
    %2761 = vmatprep.subr.mxu0 0.0
    %2762 = vmatpush1.msra.mxu0 0.0
    %2763 = vmatprep.subr.mxu0 0.0
    %2764 = vmatpush1.msra.mxu0 0.0
    %2765 = vmatprep.subr.mxu0 0.0
    %2766 = vmatpush1.msra.mxu0 0.0
    %2767 = vmatprep.subr.mxu0 0.0
    %2768 = vmatpush1.msra.mxu0 0.0
    %2769 = vmatprep.subr.mxu0 0.0
    %2770 = vmatpush1.msra.mxu0 0.0
    %2771 = vmatprep.subr.mxu0 0.0
    %2772 = vmatpush1.msra.mxu0 0.0
    %2773 = vmatprep.subr.mxu0 0.0
    %2774 = vmatpush1.msra.mxu0 0.0
    %2775 = vmatprep.subr.mxu0 0.0
    %2776 = vmatpush1.msra.mxu0 0.0
    %2777 = vmatprep.subr.mxu0 0.0
    %2778 = vmatpush1.msra.mxu0 0.0
    %2779 = vmatprep.subr.mxu0 0.0
    %2780 = vmatpush1.msra.mxu0 0.0
    %2781 = vmatprep.subr.mxu0 0.0
    %2782 = vmatpush1.msra.mxu0 0.0
    %2783 = vmatprep.mubr.f32.mxu0 0.0
    %2784 = vmatmul.mubr.f32.gmra.mrb[0].mxu0 %v2560
    %v2785 = vpop.f32.mrb[0].mxu0
    %v2786 = vadd.f32 %v2538, %v2785
    %v2787 = vpop.f32.mrb[0].mxu0
    %v2788 = vadd.f32 %v2542, %v2787
    %2789 = vmatprep.mubr.f32.mxu0 0.0
    %2790 = vmatmul.mubr.f32.gmra.mrb[0].mxu0 %v2563
    %v2791 = vpop.f32.mrb[0].mxu0
    %v2792 = vadd.f32 %v2538, %v2791
    %v2793 = vpop.f32.mrb[0].mxu0
    %v2794 = vadd.f32 %v2542, %v2793
    %2795 = vdwg.mxu0
    %2796 = vmatprep.subr.mxu0 %v2491
    %2797 = vmatpush1.msra.mxu0 %v2490
    %2798 = vmatprep.subr.mxu0 %v2499
    %2799 = vmatpush1.msra.mxu0 %v2498
    %2800 = vmatprep.subr.mxu0 %v2507
    %2801 = vmatpush1.msra.mxu0 %v2506
    %2802 = vmatprep.subr.mxu0 %v2515
    %2803 = vmatpush1.msra.mxu0 %v2514
    %2804 = vmatprep.subr.mxu0 0.0
    %2805 = vmatpush1.msra.mxu0 0.0
    %2806 = vmatprep.subr.mxu0 0.0
    %2807 = vmatpush1.msra.mxu0 0.0
    %2808 = vmatprep.subr.mxu0 0.0
    %2809 = vmatpush1.msra.mxu0 0.0
    %2810 = vmatprep.subr.mxu0 0.0
    %2811 = vmatpush1.msra.mxu0 0.0
    %2812 = vmatprep.subr.mxu0 0.0
    %2813 = vmatpush1.msra.mxu0 0.0
    %2814 = vmatprep.subr.mxu0 0.0
    %2815 = vmatpush1.msra.mxu0 0.0
    %2816 = vmatprep.subr.mxu0 0.0
    %2817 = vmatpush1.msra.mxu0 0.0
    %2818 = vmatprep.subr.mxu0 0.0
    %2819 = vmatpush1.msra.mxu0 0.0
    %2820 = vmatprep.subr.mxu0 0.0
    %2821 = vmatpush1.msra.mxu0 0.0
    %2822 = vmatprep.subr.mxu0 0.0
    %2823 = vmatpush1.msra.mxu0 0.0
    %2824 = vmatprep.subr.mxu0 0.0
    %2825 = vmatpush1.msra.mxu0 0.0
    %2826 = vmatprep.subr.mxu0 0.0
    %2827 = vmatpush1.msra.mxu0 0.0
    %2828 = vmatprep.subr.mxu0 0.0
    %2829 = vmatpush1.msra.mxu0 0.0
    %2830 = vmatprep.subr.mxu0 0.0
    %2831 = vmatpush1.msra.mxu0 0.0
    %2832 = vmatprep.subr.mxu0 0.0
    %2833 = vmatpush1.msra.mxu0 0.0
    %2834 = vmatprep.subr.mxu0 0.0
    %2835 = vmatpush1.msra.mxu0 0.0
    %2836 = vmatprep.subr.mxu0 0.0
    %2837 = vmatpush1.msra.mxu0 0.0
    %2838 = vmatprep.subr.mxu0 0.0
    %2839 = vmatpush1.msra.mxu0 0.0
    %2840 = vmatprep.subr.mxu0 0.0
    %2841 = vmatpush1.msra.mxu0 0.0
    %2842 = vmatprep.subr.mxu0 0.0
    %2843 = vmatpush1.msra.mxu0 0.0
    %2844 = vmatprep.subr.mxu0 0.0
    %2845 = vmatpush1.msra.mxu0 0.0
    %2846 = vmatprep.subr.mxu0 0.0
    %2847 = vmatpush1.msra.mxu0 0.0
    %2848 = vmatprep.subr.mxu0 0.0
    %2849 = vmatpush1.msra.mxu0 0.0
    %2850 = vmatprep.subr.mxu0 0.0
    %2851 = vmatpush1.msra.mxu0 0.0
    %2852 = vmatprep.subr.mxu0 0.0
    %2853 = vmatpush1.msra.mxu0 0.0
    %2854 = vmatprep.subr.mxu0 0.0
    %2855 = vmatpush1.msra.mxu0 0.0
    %2856 = vmatprep.subr.mxu0 0.0
    %2857 = vmatpush1.msra.mxu0 0.0
    %2858 = vmatprep.subr.mxu0 0.0
    %2859 = vmatpush1.msra.mxu0 0.0
    %2860 = vmatprep.mubr.f32.mxu0 0.0
    %2861 = vmatmul.mubr.f32.gmra.mrb[0].mxu0 %v2560
    %v2862 = vpop.f32.mrb[0].mxu0
    %v2863 = vadd.f32 %v2546, %v2862
    %v2864 = vpop.f32.mrb[0].mxu0
    %v2865 = vadd.f32 %v2550, %v2864
    %2866 = vmatprep.mubr.f32.mxu0 0.0
    %2867 = vmatmul.mubr.f32.gmra.mrb[0].mxu0 %v2563
    %v2868 = vpop.f32.mrb[0].mxu0
    %v2869 = vadd.f32 %v2546, %v2868
    %v2870 = vpop.f32.mrb[0].mxu0
    %v2871 = vadd.f32 %v2550, %v2870
    %2872 = vdwg.mxu0
    %v2873 = vmax.f32 %v2632, 0.0
    %v2874 = vmax.f32 %v2634, 0.0
    %v2875 = vmax.f32 %v2709, 0.0
    %v2876 = vmax.f32 %v2711, 0.0
    %v2877 = vmax.f32 %v2786, 0.0
    %v2878 = vmax.f32 %v2788, 0.0
    %v2879 = vmax.f32 %v2863, 0.0
    %v2880 = vmax.f32 %v2865, 0.0
    %v2881 = vmax.f32 %v2638, 0.0
    %v2882 = vmax.f32 %v2640, 0.0
    %v2883 = vmax.f32 %v2715, 0.0
    %v2884 = vmax.f32 %v2717, 0.0
    %v2885 = vmax.f32 %v2792, 0.0
    %v2886 = vmax.f32 %v2794, 0.0
    %v2887 = vmax.f32 %v2869, 0.0
    %v2888 = vmax.f32 %v2871, 0.0
    %s2889 = scalar_lea.vmem [#allocation16], 128
    %v2890 = vld [vmem:[%s2889] sm:$0xff]
    %v2891 = vld [vmem:[%s2889 + $0x8] sm:$0xff]
    %v2892 = vld [vmem:[%s2889 + $0x10] sm:$0xff]
    %v2893 = vld [vmem:[%s2889 + $0x18] sm:$0xff]
    %v2894 = vld [vmem:[%s2889 + $0x20] sm:$0xff]
    %v2895 = vld [vmem:[%s2889 + $0x28] sm:$0xff]
    %v2896 = vld [vmem:[%s2889 + $0x30] sm:$0xff]
    %v2897 = vld [vmem:[%s2889 + $0x38] sm:$0xff]
    %v2898 = vld [vmem:[%s2889 + $0x40] sm:$0xff]
    %v2899 = vld [vmem:[%s2889 + $0x48] sm:$0xff]
    %v2900 = vld [vmem:[%s2889 + $0x50] sm:$0xff]
    %v2901 = vld [vmem:[%s2889 + $0x58] sm:$0xff]
    %v2902 = vld [vmem:[%s2889 + $0x60] sm:$0xff]
    %v2903 = vld [vmem:[%s2889 + $0x68] sm:$0xff]
    %v2904 = vld [vmem:[%s2889 + $0x70] sm:$0xff]
    %v2905 = vld [vmem:[%s2889 + $0x78] sm:$0xff]
    %v2906 = vunpack.c.l.bf16 %v2890
    %v2907 = vunpack.c.h.bf16 %v2890
    %v2908 = vunpack.c.l.bf16 %v2891
    %v2909 = vunpack.c.h.bf16 %v2891
    %v2910 = vunpack.c.l.bf16 %v2892
    %v2911 = vunpack.c.h.bf16 %v2892
    %v2912 = vunpack.c.l.bf16 %v2893
    %v2913 = vunpack.c.h.bf16 %v2893
    %v2914 = vunpack.c.l.bf16 %v2894
    %v2915 = vunpack.c.h.bf16 %v2894
    %v2916 = vunpack.c.l.bf16 %v2895
    %v2917 = vunpack.c.h.bf16 %v2895
    %v2918 = vunpack.c.l.bf16 %v2896
    %v2919 = vunpack.c.h.bf16 %v2896
    %v2920 = vunpack.c.l.bf16 %v2897
    %v2921 = vunpack.c.h.bf16 %v2897
    %v2922 = vunpack.c.l.bf16 %v2898
    %v2923 = vunpack.c.h.bf16 %v2898
    %v2924 = vunpack.c.l.bf16 %v2899
    %v2925 = vunpack.c.h.bf16 %v2899
    %v2926 = vunpack.c.l.bf16 %v2900
    %v2927 = vunpack.c.h.bf16 %v2900
    %v2928 = vunpack.c.l.bf16 %v2901
    %v2929 = vunpack.c.h.bf16 %v2901
    %v2930 = vunpack.c.l.bf16 %v2902
    %v2931 = vunpack.c.h.bf16 %v2902
    %v2932 = vunpack.c.l.bf16 %v2903
    %v2933 = vunpack.c.h.bf16 %v2903
    %v2934 = vunpack.c.l.bf16 %v2904
    %v2935 = vunpack.c.h.bf16 %v2904
    %v2936 = vunpack.c.l.bf16 %v2905
    %v2937 = vunpack.c.h.bf16 %v2905
    %v2938 = vlaneseq
    %v2939 = vshrl.u32 %v2938, 7
    %v2940 = vsub.s32 3, %v2939
    %v2941 = vrot.slane %v1789, %v2940
    %2942 = vmatprep.subr.mxu0 %v2907
    %2943 = vmatpush1.xpose.msra.mxu0 %v2906
    %2944 = vmatprep.subr.mxu0 %v2915
    %2945 = vmatpush1.xpose.msra.mxu0 %v2914
    %2946 = vmatprep.subr.mxu0 %v2923
    %2947 = vmatpush1.xpose.msra.mxu0 %v2922
    %2948 = vmatprep.subr.mxu0 %v2931
    %2949 = vmatpush1.xpose.msra.mxu0 %v2930
    %2950 = vmatprep.subr.mxu0 0.0
    %2951 = vmatpush1.xpose.msra.mxu0 0.0
    %2952 = vmatprep.subr.mxu0 0.0
    %2953 = vmatpush1.xpose.msra.mxu0 0.0
    %2954 = vmatprep.subr.mxu0 0.0
    %2955 = vmatpush1.xpose.msra.mxu0 0.0
    %2956 = vmatprep.subr.mxu0 0.0
    %2957 = vmatpush1.xpose.msra.mxu0 0.0
    %2958 = vmatprep.subr.mxu0 0.0
    %2959 = vmatpush1.xpose.msra.mxu0 0.0
    %2960 = vmatprep.subr.mxu0 0.0
    %2961 = vmatpush1.xpose.msra.mxu0 0.0
    %2962 = vmatprep.subr.mxu0 0.0
    %2963 = vmatpush1.xpose.msra.mxu0 0.0
    %2964 = vmatprep.subr.mxu0 0.0
    %2965 = vmatpush1.xpose.msra.mxu0 0.0
    %2966 = vmatprep.subr.mxu0 0.0
    %2967 = vmatpush1.xpose.msra.mxu0 0.0
    %2968 = vmatprep.subr.mxu0 0.0
    %2969 = vmatpush1.xpose.msra.mxu0 0.0
    %2970 = vmatprep.subr.mxu0 0.0
    %2971 = vmatpush1.xpose.msra.mxu0 0.0
    %2972 = vmatprep.subr.mxu0 0.0
    %2973 = vmatpush1.xpose.msra.mxu0 0.0
    %2974 = vmatprep.subr.mxu0 0.0
    %2975 = vmatpush1.xpose.msra.mxu0 0.0
    %2976 = vmatprep.subr.mxu0 0.0
    %2977 = vmatpush1.xpose.msra.mxu0 0.0
    %2978 = vmatprep.subr.mxu0 0.0
    %2979 = vmatpush1.xpose.msra.mxu0 0.0
    %2980 = vmatprep.subr.mxu0 0.0
    %2981 = vmatpush1.xpose.msra.mxu0 0.0
    %2982 = vmatprep.subr.mxu0 0.0
    %2983 = vmatpush1.xpose.msra.mxu0 0.0
    %2984 = vmatprep.subr.mxu0 0.0
    %2985 = vmatpush1.xpose.msra.mxu0 0.0
    %2986 = vmatprep.subr.mxu0 0.0
    %2987 = vmatpush1.xpose.msra.mxu0 0.0
    %2988 = vmatprep.subr.mxu0 0.0
    %2989 = vmatpush1.xpose.msra.mxu0 0.0
    %2990 = vmatprep.subr.mxu0 0.0
    %2991 = vmatpush1.xpose.msra.mxu0 0.0
    %2992 = vmatprep.subr.mxu0 0.0
    %2993 = vmatpush1.xpose.msra.mxu0 0.0
    %2994 = vmatprep.subr.mxu0 0.0
    %2995 = vmatpush1.xpose.msra.mxu0 0.0
    %2996 = vmatprep.subr.mxu0 0.0
    %2997 = vmatpush1.xpose.msra.mxu0 0.0
    %2998 = vmatprep.subr.mxu0 0.0
    %2999 = vmatpush1.xpose.msra.mxu0 0.0
    %3000 = vmatprep.subr.mxu0 0.0
    %3001 = vmatpush1.xpose.msra.mxu0 0.0
    %3002 = vmatprep.subr.mxu0 0.0
    %3003 = vmatpush1.xpose.msra.mxu0 0.0
    %3004 = vmatprep.subr.mxu0 0.0
    %3005 = vmatpush1.xpose.msra.mxu0 0.0
    %3006 = vmatprep.mubr.f32.mxu0 %v2874
    %3007 = vmatmul.mubr.f32.gmra.mrb[0].mxu0 %v2873
    %v3008 = vpop.f32.mrb[0].mxu0
    %v3009 = vadd.f32 %v2941, %v3008
    %v3010 = vpop.f32.mrb[0].mxu0
    %3011 = vmatprep.mubr.f32.mxu0 %v2882
    %3012 = vmatmul.mubr.f32.gmra.mrb[0].mxu0 %v2881
    %v3013 = vpop.f32.mrb[0].mxu0
    %v3014 = vadd.f32 %v2941, %v3013
    %v3015 = vpop.f32.mrb[0].mxu0
    %3016 = vdwg.mxu0
    %3017 = vmatprep.subr.mxu0 %v2909
    %3018 = vmatpush1.xpose.msra.mxu0 %v2908
    %3019 = vmatprep.subr.mxu0 %v2917
    %3020 = vmatpush1.xpose.msra.mxu0 %v2916
    %3021 = vmatprep.subr.mxu0 %v2925
    %3022 = vmatpush1.xpose.msra.mxu0 %v2924
    %3023 = vmatprep.subr.mxu0 %v2933
    %3024 = vmatpush1.xpose.msra.mxu0 %v2932
    %3025 = vmatprep.subr.mxu0 0.0
    %3026 = vmatpush1.xpose.msra.mxu0 0.0
    %3027 = vmatprep.subr.mxu0 0.0
    %3028 = vmatpush1.xpose.msra.mxu0 0.0
    %3029 = vmatprep.subr.mxu0 0.0
    %3030 = vmatpush1.xpose.msra.mxu0 0.0
    %3031 = vmatprep.subr.mxu0 0.0
    %3032 = vmatpush1.xpose.msra.mxu0 0.0
    %3033 = vmatprep.subr.mxu0 0.0
    %3034 = vmatpush1.xpose.msra.mxu0 0.0
    %3035 = vmatprep.subr.mxu0 0.0
    %3036 = vmatpush1.xpose.msra.mxu0 0.0
    %3037 = vmatprep.subr.mxu0 0.0
    %3038 = vmatpush1.xpose.msra.mxu0 0.0
    %3039 = vmatprep.subr.mxu0 0.0
    %3040 = vmatpush1.xpose.msra.mxu0 0.0
    %3041 = vmatprep.subr.mxu0 0.0
    %3042 = vmatpush1.xpose.msra.mxu0 0.0
    %3043 = vmatprep.subr.mxu0 0.0
    %3044 = vmatpush1.xpose.msra.mxu0 0.0
    %3045 = vmatprep.subr.mxu0 0.0
    %3046 = vmatpush1.xpose.msra.mxu0 0.0
    %3047 = vmatprep.subr.mxu0 0.0
    %3048 = vmatpush1.xpose.msra.mxu0 0.0
    %3049 = vmatprep.subr.mxu0 0.0
    %3050 = vmatpush1.xpose.msra.mxu0 0.0
    %3051 = vmatprep.subr.mxu0 0.0
    %3052 = vmatpush1.xpose.msra.mxu0 0.0
    %3053 = vmatprep.subr.mxu0 0.0
    %3054 = vmatpush1.xpose.msra.mxu0 0.0
    %3055 = vmatprep.subr.mxu0 0.0
    %3056 = vmatpush1.xpose.msra.mxu0 0.0
    %3057 = vmatprep.subr.mxu0 0.0
    %3058 = vmatpush1.xpose.msra.mxu0 0.0
    %3059 = vmatprep.subr.mxu0 0.0
    %3060 = vmatpush1.xpose.msra.mxu0 0.0
    %3061 = vmatprep.subr.mxu0 0.0
    %3062 = vmatpush1.xpose.msra.mxu0 0.0
    %3063 = vmatprep.subr.mxu0 0.0
    %3064 = vmatpush1.xpose.msra.mxu0 0.0
    %3065 = vmatprep.subr.mxu0 0.0
    %3066 = vmatpush1.xpose.msra.mxu0 0.0
    %3067 = vmatprep.subr.mxu0 0.0
    %3068 = vmatpush1.xpose.msra.mxu0 0.0
    %3069 = vmatprep.subr.mxu0 0.0
    %3070 = vmatpush1.xpose.msra.mxu0 0.0
    %3071 = vmatprep.subr.mxu0 0.0
    %3072 = vmatpush1.xpose.msra.mxu0 0.0
    %3073 = vmatprep.subr.mxu0 0.0
    %3074 = vmatpush1.xpose.msra.mxu0 0.0
    %3075 = vmatprep.subr.mxu0 0.0
    %3076 = vmatpush1.xpose.msra.mxu0 0.0
    %3077 = vmatprep.subr.mxu0 0.0
    %3078 = vmatpush1.xpose.msra.mxu0 0.0
    %3079 = vmatprep.subr.mxu0 0.0
    %3080 = vmatpush1.xpose.msra.mxu0 0.0
    %3081 = vmatprep.mubr.f32.mxu0 %v2876
    %3082 = vmatmul.mubr.f32.gmra.mrb[0].mxu0 %v2875
    %v3083 = vpop.f32.mrb[0].mxu0
    %v3084 = vadd.f32 %v3009, %v3083
    %v3085 = vpop.f32.mrb[0].mxu0
    %3086 = vmatprep.mubr.f32.mxu0 %v2884
    %3087 = vmatmul.mubr.f32.gmra.mrb[0].mxu0 %v2883
    %v3088 = vpop.f32.mrb[0].mxu0
    %v3089 = vadd.f32 %v3014, %v3088
    %v3090 = vpop.f32.mrb[0].mxu0
    %3091 = vdwg.mxu0
    %3092 = vmatprep.subr.mxu0 %v2911
    %3093 = vmatpush1.xpose.msra.mxu0 %v2910
    %3094 = vmatprep.subr.mxu0 %v2919
    %3095 = vmatpush1.xpose.msra.mxu0 %v2918
    %3096 = vmatprep.subr.mxu0 %v2927
    %3097 = vmatpush1.xpose.msra.mxu0 %v2926
    %3098 = vmatprep.subr.mxu0 %v2935
    %3099 = vmatpush1.xpose.msra.mxu0 %v2934
    %3100 = vmatprep.subr.mxu0 0.0
    %3101 = vmatpush1.xpose.msra.mxu0 0.0
    %3102 = vmatprep.subr.mxu0 0.0
    %3103 = vmatpush1.xpose.msra.mxu0 0.0
    %3104 = vmatprep.subr.mxu0 0.0
    %3105 = vmatpush1.xpose.msra.mxu0 0.0
    %3106 = vmatprep.subr.mxu0 0.0
    %3107 = vmatpush1.xpose.msra.mxu0 0.0
    %3108 = vmatprep.subr.mxu0 0.0
    %3109 = vmatpush1.xpose.msra.mxu0 0.0
    %3110 = vmatprep.subr.mxu0 0.0
    %3111 = vmatpush1.xpose.msra.mxu0 0.0
    %3112 = vmatprep.subr.mxu0 0.0
    %3113 = vmatpush1.xpose.msra.mxu0 0.0
    %3114 = vmatprep.subr.mxu0 0.0
    %3115 = vmatpush1.xpose.msra.mxu0 0.0
    %3116 = vmatprep.subr.mxu0 0.0
    %3117 = vmatpush1.xpose.msra.mxu0 0.0
    %3118 = vmatprep.subr.mxu0 0.0
    %3119 = vmatpush1.xpose.msra.mxu0 0.0
    %3120 = vmatprep.subr.mxu0 0.0
    %3121 = vmatpush1.xpose.msra.mxu0 0.0
    %3122 = vmatprep.subr.mxu0 0.0
    %3123 = vmatpush1.xpose.msra.mxu0 0.0
    %3124 = vmatprep.subr.mxu0 0.0
    %3125 = vmatpush1.xpose.msra.mxu0 0.0
    %3126 = vmatprep.subr.mxu0 0.0
    %3127 = vmatpush1.xpose.msra.mxu0 0.0
    %3128 = vmatprep.subr.mxu0 0.0
    %3129 = vmatpush1.xpose.msra.mxu0 0.0
    %3130 = vmatprep.subr.mxu0 0.0
    %3131 = vmatpush1.xpose.msra.mxu0 0.0
    %3132 = vmatprep.subr.mxu0 0.0
    %3133 = vmatpush1.xpose.msra.mxu0 0.0
    %3134 = vmatprep.subr.mxu0 0.0
    %3135 = vmatpush1.xpose.msra.mxu0 0.0
    %3136 = vmatprep.subr.mxu0 0.0
    %3137 = vmatpush1.xpose.msra.mxu0 0.0
    %3138 = vmatprep.subr.mxu0 0.0
    %3139 = vmatpush1.xpose.msra.mxu0 0.0
    %3140 = vmatprep.subr.mxu0 0.0
    %3141 = vmatpush1.xpose.msra.mxu0 0.0
    %3142 = vmatprep.subr.mxu0 0.0
    %3143 = vmatpush1.xpose.msra.mxu0 0.0
    %3144 = vmatprep.subr.mxu0 0.0
    %3145 = vmatpush1.xpose.msra.mxu0 0.0
    %3146 = vmatprep.subr.mxu0 0.0
    %3147 = vmatpush1.xpose.msra.mxu0 0.0
    %3148 = vmatprep.subr.mxu0 0.0
    %3149 = vmatpush1.xpose.msra.mxu0 0.0
    %3150 = vmatprep.subr.mxu0 0.0
    %3151 = vmatpush1.xpose.msra.mxu0 0.0
    %3152 = vmatprep.subr.mxu0 0.0
    %3153 = vmatpush1.xpose.msra.mxu0 0.0
    %3154 = vmatprep.subr.mxu0 0.0
    %3155 = vmatpush1.xpose.msra.mxu0 0.0
    %3156 = vmatprep.mubr.f32.mxu0 %v2878
    %3157 = vmatmul.mubr.f32.gmra.mrb[0].mxu0 %v2877
    %v3158 = vpop.f32.mrb[0].mxu0
    %v3159 = vadd.f32 %v3084, %v3158
    %v3160 = vpop.f32.mrb[0].mxu0
    %3161 = vmatprep.mubr.f32.mxu0 %v2886
    %3162 = vmatmul.mubr.f32.gmra.mrb[0].mxu0 %v2885
    %v3163 = vpop.f32.mrb[0].mxu0
    %v3164 = vadd.f32 %v3089, %v3163
    %v3165 = vpop.f32.mrb[0].mxu0
    %3166 = vdwg.mxu0
    %3167 = vmatprep.subr.mxu0 %v2913
    %3168 = vmatpush1.xpose.msra.mxu0 %v2912
    %3169 = vmatprep.subr.mxu0 %v2921
    %3170 = vmatpush1.xpose.msra.mxu0 %v2920
    %3171 = vmatprep.subr.mxu0 %v2929
    %3172 = vmatpush1.xpose.msra.mxu0 %v2928
    %3173 = vmatprep.subr.mxu0 %v2937
    %3174 = vmatpush1.xpose.msra.mxu0 %v2936
    %3175 = vmatprep.subr.mxu0 0.0
    %3176 = vmatpush1.xpose.msra.mxu0 0.0
    %3177 = vmatprep.subr.mxu0 0.0
    %3178 = vmatpush1.xpose.msra.mxu0 0.0
    %3179 = vmatprep.subr.mxu0 0.0
    %3180 = vmatpush1.xpose.msra.mxu0 0.0
    %3181 = vmatprep.subr.mxu0 0.0
    %3182 = vmatpush1.xpose.msra.mxu0 0.0
    %3183 = vmatprep.subr.mxu0 0.0
    %3184 = vmatpush1.xpose.msra.mxu0 0.0
    %3185 = vmatprep.subr.mxu0 0.0
    %3186 = vmatpush1.xpose.msra.mxu0 0.0
    %3187 = vmatprep.subr.mxu0 0.0
    %3188 = vmatpush1.xpose.msra.mxu0 0.0
    %3189 = vmatprep.subr.mxu0 0.0
    %3190 = vmatpush1.xpose.msra.mxu0 0.0
    %3191 = vmatprep.subr.mxu0 0.0
    %3192 = vmatpush1.xpose.msra.mxu0 0.0
    %3193 = vmatprep.subr.mxu0 0.0
    %3194 = vmatpush1.xpose.msra.mxu0 0.0
    %3195 = vmatprep.subr.mxu0 0.0
    %3196 = vmatpush1.xpose.msra.mxu0 0.0
    %3197 = vmatprep.subr.mxu0 0.0
    %3198 = vmatpush1.xpose.msra.mxu0 0.0
    %3199 = vmatprep.subr.mxu0 0.0
    %3200 = vmatpush1.xpose.msra.mxu0 0.0
    %3201 = vmatprep.subr.mxu0 0.0
    %3202 = vmatpush1.xpose.msra.mxu0 0.0
    %3203 = vmatprep.subr.mxu0 0.0
    %3204 = vmatpush1.xpose.msra.mxu0 0.0
    %3205 = vmatprep.subr.mxu0 0.0
    %3206 = vmatpush1.xpose.msra.mxu0 0.0
    %3207 = vmatprep.subr.mxu0 0.0
    %3208 = vmatpush1.xpose.msra.mxu0 0.0
    %3209 = vmatprep.subr.mxu0 0.0
    %3210 = vmatpush1.xpose.msra.mxu0 0.0
    %3211 = vmatprep.subr.mxu0 0.0
    %3212 = vmatpush1.xpose.msra.mxu0 0.0
    %3213 = vmatprep.subr.mxu0 0.0
    %3214 = vmatpush1.xpose.msra.mxu0 0.0
    %3215 = vmatprep.subr.mxu0 0.0
    %3216 = vmatpush1.xpose.msra.mxu0 0.0
    %3217 = vmatprep.subr.mxu0 0.0
    %3218 = vmatpush1.xpose.msra.mxu0 0.0
    %3219 = vmatprep.subr.mxu0 0.0
    %3220 = vmatpush1.xpose.msra.mxu0 0.0
    %3221 = vmatprep.subr.mxu0 0.0
    %3222 = vmatpush1.xpose.msra.mxu0 0.0
    %3223 = vmatprep.subr.mxu0 0.0
    %3224 = vmatpush1.xpose.msra.mxu0 0.0
    %3225 = vmatprep.subr.mxu0 0.0
    %3226 = vmatpush1.xpose.msra.mxu0 0.0
    %3227 = vmatprep.subr.mxu0 0.0
    %3228 = vmatpush1.xpose.msra.mxu0 0.0
    %3229 = vmatprep.subr.mxu0 0.0
    %3230 = vmatpush1.xpose.msra.mxu0 0.0
    %3231 = vmatprep.mubr.f32.mxu0 %v2880
    %3232 = vmatmul.mubr.f32.gmra.mrb[0].mxu0 %v2879
    %v3233 = vpop.f32.mrb[0].mxu0
    %v3234 = vadd.f32 %v3159, %v3233
    %v3235 = vpop.f32.mrb[0].mxu0
    %3236 = vmatprep.mubr.f32.mxu0 %v2888
    %3237 = vmatmul.mubr.f32.gmra.mrb[0].mxu0 %v2887
    %v3238 = vpop.f32.mrb[0].mxu0
    %v3239 = vadd.f32 %v3164, %v3238
    %v3240 = vpop.f32.mrb[0].mxu0
    %3241 = vdwg.mxu0
    %v3242 = vadd.f32 %v2465, %v3234
    %v3243 = vadd.f32 %v2466, %v3239
    %v3244 = vsel %vm304, %v3242, 0.0
    %3245 = vadd.xlane.f32.xlu0 %v3244
    %v3246 = vpop.xlane.xlu0 %3245
    %v3247 = vsel %vm304, %v3243, 0.0
    %3248 = vadd.xlane.f32.xlu0 %v3247
    %v3249 = vpop.xlane.xlu0 %3248
    %v3250 = vmul.f32 %v3246, %v943
    %v3251 = vmul.f32 %v3249, %v943
    %v3252 = vsub.f32 %v3242, %v3250
    %v3253 = vsub.f32 %v3243, %v3251
    %v3254 = vmul.f32 %v3252, %v3252
    %v3255 = vmul.f32 %v3253, %v3253
    %v3256 = vsel %vm304, %v3254, 0.0
    %3257 = vadd.xlane.f32.xlu0 %v3256
    %v3258 = vpop.xlane.xlu0 %3257
    %v3259 = vsel %vm304, %v3255, 0.0
    %3260 = vadd.xlane.f32.xlu0 %v3259
    %v3261 = vpop.xlane.xlu0 %3260
    %v3262 = vmul.f32 %v3258, %v943
    %v3263 = vmul.f32 %v3261, %v943
    %v3264 = vadd.f32 %v3262, 1e-05
    %v3265 = vadd.f32 %v3263, 1e-05
    %v3266 = vrsqrt.pop %v3264
    %v3267 = vrsqrt.pop %v3265
    %v3268 = vmul.f32 %v3252, %v3266
    %v3269 = vmul.f32 %v3253, %v3267
    %v3270 = vlaneseq
    %v3271 = vshrl.u32 %v3270, 7
    %v3272 = vsub.s32 4, %v3271
    %v3273 = vrot.slane %v1789, %v3272
    %v3274 = vmul.f32 %v3268, %v3273
    %v3275 = vmul.f32 %v3269, %v3273
    %v3276 = vlaneseq
    %v3277 = vshrl.u32 %v3276, 7
    %v3278 = vsub.s32 5, %v3277
    %v3279 = vrot.slane %v1789, %v3278
    %v3280 = vadd.f32 %v3274, %v3279
    %v3281 = vadd.f32 %v3275, %v3279
    %v3282 = vld [vmem:[%s16] sm:$0xff]
    %v3283 = vld [vmem:[%s16 + $0x8] sm:$0xff]
    %v3284 = vld [vmem:[%s16 + $0x10] sm:$0xff]
    %v3285 = vld [vmem:[%s16 + $0x18] sm:$0xff]
    %v3286 = vld [vmem:[%s17] sm:$0x1]
    %v3288 = vlaneseq
    %v3289 = vshrl.u32 %v3288, 7
    %v3290 = vsub.s32 0, %v3289
    %v3291 = vrot.slane %v3286, %v3290
    %v3294 = vsel %vm304, %v3280, 0
    %v3297 = vsel %vm304, %v3281, 0
    %3299 = vmatprep.subr.mxu0 0.0
    %3300 = vmatpush1.msra.mxu0 %v3282
    %3301 = vmatprep.subr.mxu0 0.0
    %3302 = vmatpush1.msra.mxu0 %v3283
    %3303 = vmatprep.subr.mxu0 0.0
    %3304 = vmatpush1.msra.mxu0 %v3284
    %3305 = vmatprep.subr.mxu0 0.0
    %3306 = vmatpush1.msra.mxu0 %v3285
    %3307 = vmatprep.subr.mxu0 0.0
    %3308 = vmatpush1.msra.mxu0 0.0
    %3309 = vmatprep.subr.mxu0 0.0
    %3310 = vmatpush1.msra.mxu0 0.0
    %3311 = vmatprep.subr.mxu0 0.0
    %3312 = vmatpush1.msra.mxu0 0.0
    %3313 = vmatprep.subr.mxu0 0.0
    %3314 = vmatpush1.msra.mxu0 0.0
    %3315 = vmatprep.subr.mxu0 0.0
    %3316 = vmatpush1.msra.mxu0 0.0
    %3317 = vmatprep.subr.mxu0 0.0
    %3318 = vmatpush1.msra.mxu0 0.0
    %3319 = vmatprep.subr.mxu0 0.0
    %3320 = vmatpush1.msra.mxu0 0.0
    %3321 = vmatprep.subr.mxu0 0.0
    %3322 = vmatpush1.msra.mxu0 0.0
    %3323 = vmatprep.subr.mxu0 0.0
    %3324 = vmatpush1.msra.mxu0 0.0
    %3325 = vmatprep.subr.mxu0 0.0
    %3326 = vmatpush1.msra.mxu0 0.0
    %3327 = vmatprep.subr.mxu0 0.0
    %3328 = vmatpush1.msra.mxu0 0.0
    %3329 = vmatprep.subr.mxu0 0.0
    %3330 = vmatpush1.msra.mxu0 0.0
    %3331 = vmatprep.subr.mxu0 0.0
    %3332 = vmatpush1.msra.mxu0 0.0
    %3333 = vmatprep.subr.mxu0 0.0
    %3334 = vmatpush1.msra.mxu0 0.0
    %3335 = vmatprep.subr.mxu0 0.0
    %3336 = vmatpush1.msra.mxu0 0.0
    %3337 = vmatprep.subr.mxu0 0.0
    %3338 = vmatpush1.msra.mxu0 0.0
    %3339 = vmatprep.subr.mxu0 0.0
    %3340 = vmatpush1.msra.mxu0 0.0
    %3341 = vmatprep.subr.mxu0 0.0
    %3342 = vmatpush1.msra.mxu0 0.0
    %3343 = vmatprep.subr.mxu0 0.0
    %3344 = vmatpush1.msra.mxu0 0.0
    %3345 = vmatprep.subr.mxu0 0.0
    %3346 = vmatpush1.msra.mxu0 0.0
    %3347 = vmatprep.subr.mxu0 0.0
    %3348 = vmatpush1.msra.mxu0 0.0
    %3349 = vmatprep.subr.mxu0 0.0
    %3350 = vmatpush1.msra.mxu0 0.0
    %3351 = vmatprep.subr.mxu0 0.0
    %3352 = vmatpush1.msra.mxu0 0.0
    %3353 = vmatprep.subr.mxu0 0.0
    %3354 = vmatpush1.msra.mxu0 0.0
    %3355 = vmatprep.subr.mxu0 0.0
    %3356 = vmatpush1.msra.mxu0 0.0
    %3357 = vmatprep.subr.mxu0 0.0
    %3358 = vmatpush1.msra.mxu0 0.0
    %3359 = vmatprep.subr.mxu0 0.0
    %3360 = vmatpush1.msra.mxu0 0.0
    %3361 = vmatprep.subr.mxu0 0.0
    %3362 = vmatpush1.msra.mxu0 0.0
    %3363 = vmatprep.mubr.f32.mxu0 0.0
    %3364 = vmatmul.mubr.f32.gmra.mrb[0].mxu0 %v3294
    %v3365 = vpop.f32.mrb[0].mxu0
    %v3366 = vadd.f32 %v3291, %v3365
    %v3367 = vpop.f32.mrb[0].mxu0
    %3368 = vmatprep.mubr.f32.mxu0 0.0
    %3369 = vmatmul.mubr.f32.gmra.mrb[0].mxu0 %v3297
    %v3370 = vpop.f32.mrb[0].mxu0
    %v3371 = vadd.f32 %v3291, %v3370
    %v3372 = vpop.f32.mrb[0].mxu0
    %3373 = vdwg.mxu0
    %3374 = vst.msk [vmem:[#allocation17] sm:$0xff] %vm195, %v3366
    %3375 = vst.msk [vmem:[#allocation17 + $0x8] sm:$0xff] %vm195, %v3371
    // Predicated region
    $region110: #{tpu_custom_call.1} parent=1 // pred_check
      _
    $region111: #{tpu_custom_call.1} parent=1 // pred_check_branch
      %3377 = sbr.rel (0) target = $region113
    $region112: #{tpu_custom_call.1} parent=1 // pred_region
      %s3379 = ssub.s32 256, 256
      %3380 = vsyncadd [#allocation4], %s3379
      %s3381 = sshll.u32 [#allocation17], 4
      %s3382 = int_to_ptr.vmem [resolvable:$true] %s3381
      %3387 = dma.vmem_to_hbm [thread:$0]  %s3382, 256, %s18, [#allocation4], 128, 128, 8
    $region113: #{tpu_custom_call.1} parent=1 // pred_fallthru
      _
    // Predicated region
    $region114: #{tpu_custom_call.1} parent=1 // pred_check
      _
    $region115: #{tpu_custom_call.1} parent=1 // pred_check_branch
      %3389 = sbr.rel (0) target = $region117
    $region116: #{tpu_custom_call.1} parent=1 // pred_region
      %3390 = dma.done [#allocation4], 256
    $region117: #{tpu_custom_call.1} parent=1 // pred_fallthru
      _
    %3391 = vsyncpa [#allocation3], 1
    %3392 = vsyncpa [#allocation6], 1
    %3393 = vsyncpa [#allocation9], 1
    %3394 = vsyncpa [#allocation12], 1
    %3395 = vsyncpa [#allocation15], 1
    %3396 = vsyncpa [#allocation4], 1

</llo_original>
